<compile_context>
chip_gen: v5e
topology: v5e:2x2
jax: 0.10.0
libtpu: 0.0.40
codegen_flags: <defaults>
</compile_context>

<pallas_src>
import functools

import jax
import jax.numpy as jnp
from jax import lax
from jax.experimental import pallas as pl
from jax.experimental.pallas import tpu as pltpu

# ---- model sizes (small, consistent with the forward pass) -----------------
H = 32        # hidden size
E = 32        # embedding size
V = 32        # vocabulary size
T = 8         # encoder sequence length
K = 3         # beam width (self.k)
LANES = 128   # lane-dense width of the backtrack / output buffer


# ----------------------------------------------------------------------------
# Fused beam-search kernel (encoder + decoder + beam bookkeeping)
# ----------------------------------------------------------------------------
def beam_search_kernel(seq_ref, len_ref, bos_ref, wA_ref, wB_ref,
                       tokens_ref, enc_scratch, *, k, max_length):
    f32 = jnp.float32
    L = max_length

    length = len_ref[0, 0]                      # int32 scalar (SMEM)
    bos_f = bos_ref[0, 0].astype(f32)           # scalar

    def lstm_gates(gates, c_prev):
        i = jax.nn.sigmoid(gates[:, 0 * H:1 * H])
        f = jax.nn.sigmoid(gates[:, 1 * H:2 * H])
        g = jnp.tanh(gates[:, 2 * H:3 * H])
        o = jax.nn.sigmoid(gates[:, 3 * H:4 * H])
        c_new = f * c_prev + i * g
        return o * jnp.tanh(c_new), c_new

    # ------------------------------------------------------------------ encoder
    seq = seq_ref[...]                                                   # (T,1) i32
    seq_onehot = (seq == lax.broadcasted_iota(jnp.int32, (T, V), 1)).astype(f32)
    enc_in_gate = wA_ref[0:V, :]               # (V, 4H): emb @ W_ih + b (fused)
    xw = jnp.dot(seq_onehot, enc_in_gate, preferred_element_type=f32)    # (T, 4H)
    enc_whh = wA_ref[V:V + H, :]               # (H, 4H)

    h = jnp.zeros((1, H), f32)
    c = jnp.zeros((1, H), f32)
    for t in range(T):                         # serial recurrence (static unroll)
        gates = xw[t:t + 1, :] + jnp.dot(h, enc_whh, preferred_element_type=f32)
        h_n, c_n = lstm_gates(gates, c)
        enc_scratch[t:t + 1, :] = h_n          # row store into VMEM scratch
        valid = length > t                     # freeze state after input_length
        h = jnp.where(valid, h_n, h)
        c = jnp.where(valid, c_n, c)

    valid_col = lax.broadcasted_iota(jnp.int32, (T, 1), 0) < length      # (T,1)
    enc_out = jnp.where(valid_col, enc_scratch[...], 0.0)                # (T, H)

    # ------------------------------------------------------------ decoder setup
    w_in = wA_ref[V + H:V + H + V + H, :]      # (V+H, 4H) = [emb@W_ih + b ; W_hh]
    w_c = wB_ref[0:2 * H, :]                   # (2H, H)   = [w_c1 ; w_c2]
    w_out = wB_ref[2 * H:3 * H, :]             # (H, V)
    b_out = wB_ref[3 * H:3 * H + 1, :]         # (1, V)

    def dec_step(tok_col, hd, cd):
        R = hd.shape[0]
        onehot = (tok_col ==
                  lax.broadcasted_iota(jnp.int32, (R, V), 1).astype(f32)).astype(f32)
        xin = jnp.concatenate([onehot, hd], axis=1)                       # (R, V+H)
        gates = jnp.dot(xin, w_in, preferred_element_type=f32)            # (R, 4H)
        h_new, c_new = lstm_gates(gates, cd)
        # Luong "dot" attention over encoder outputs
        att = lax.dot_general(h_new, enc_out, (((1,), (1,)), ((), ())),
                              preferred_element_type=f32)                 # (R, T)
        att = att - jnp.max(att, axis=1, keepdims=True)
        e = jnp.exp(att)
        attw = e * pl.reciprocal(jnp.sum(e, axis=1, keepdims=True), approx=True)
        ctx = jnp.dot(attw, enc_out, preferred_element_type=f32)          # (R, H)
        cat = jnp.tanh(jnp.dot(jnp.concatenate([h_new, ctx], axis=1), w_c,
                               preferred_element_type=f32))               # (R, H)
        logits = jnp.dot(cat, w_out, preferred_element_type=f32) + b_out  # (R, V)
        m = jnp.max(logits, axis=1, keepdims=True)                        # log_softmax
        lse = jnp.log(jnp.sum(jnp.exp(logits - m), axis=1, keepdims=True)) + m
        return logits - lse, h_new, c_new

    def reduce_all(x, op):
        return op(op(x, axis=1, keepdims=True), axis=0, keepdims=True)    # (1,1)

    out_row = lax.broadcasted_iota(jnp.int32, (k, 1), 0)                  # (k,1)

    def topk_flat(x):
        # Selection top-k over the row-major flattened (R, C) matrix x.
        # Returns values, tokens (= column) and origins (= row) as (k,1) f32.
        R, C = x.shape
        col_f = lax.broadcasted_iota(jnp.int32, (R, C), 1).astype(f32)
        row_f = lax.broadcasted_iota(jnp.int32, (R, C), 0).astype(f32)
        flat_f = row_f * float(C) + col_f
        vals = jnp.zeros((k, 1), f32)
        toks = jnp.zeros((k, 1), f32)
        origs = jnp.zeros((k, 1), f32)
        cur = x
        for j in range(k):
            m = reduce_all(cur, jnp.max)                                   # (1,1)
            fidx = reduce_all(jnp.where(cur == m, flat_f, float(R * C)), jnp.min)
            sel = flat_f == fidx                                           # (R,C)
            tok = reduce_all(jnp.where(sel, col_f, 0.0), jnp.sum)
            org = reduce_all(jnp.where(sel, row_f, 0.0), jnp.sum)
            vals = jnp.where(out_row == j, m, vals)
            toks = jnp.where(out_row == j, tok, toks)
            origs = jnp.where(out_row == j, org, origs)
            cur = jnp.where(sel, -1e30, cur)
        return vals, toks, origs

    # --------------------------------------------- first decoder step on <BOS>
    tok_bos = jnp.zeros((1, 1), f32) + bos_f
    logp0, h1, c1 = dec_step(tok_bos, h, c)                                # (1, V)
    scores, cand_tok, _ = topk_flat(logp0)                                 # (k, 1)
    h_dec = jnp.zeros((k, H), f32) + h1                                    # repeat k
    c_dec = jnp.zeros((k, H), f32) + c1

    col_L = lax.broadcasted_iota(jnp.int32, (k, LANES), 1)                 # (k,128)
    bt = jnp.where(col_L == 0, bos_f, 0.0)                                 # backtrack
    col_kk_f = lax.broadcasted_iota(jnp.int32, (k, k), 1).astype(f32)

    # ------------------------------------------------------ beam expansion loop
    for t in range(L - 1):
        logp, h_new, c_new = dec_step(cand_tok, h_dec, c_dec)              # (k, V)
        cum = logp + scores                                                # (k, V)
        new_scores, new_tok, origins = topk_flat(cum)
        # one-hot gather matrix G[j, r] = (origins[j] == r); beam reorder on MXU
        gmat = (origins == col_kk_f).astype(f32)                           # (k, k)
        # append PREVIOUS tokens, then reorder rows by origin (last-step tokens
        # are never appended, matching the reference).
        bt = jnp.where(col_L == (t + 1), cand_tok, bt)
        bt = jnp.dot(gmat, bt, preferred_element_type=f32)
        h_dec = jnp.dot(gmat, h_new, preferred_element_type=f32)
        c_dec = jnp.dot(gmat, c_new, preferred_element_type=f32)
        scores = new_scores
        cand_tok = new_tok

    # ------------------------------------------------- pick best beam, emit it
    row_k_f = out_row.astype(f32)
    mx = jnp.max(scores, axis=0, keepdims=True)                            # (1,1)
    best = jnp.min(jnp.where(scores == mx, row_k_f, float(k)),
                   axis=0, keepdims=True)                                  # (1,1)
    out = jnp.sum(jnp.where(row_k_f == best, bt, 0.0),
                  axis=0, keepdims=True)                                   # (1,128)
    tokens_ref[...] = out.astype(jnp.int32)


# ----------------------------------------------------------------------------
# Wrapper: one pallas_call for the whole BeamSearchDecoder.forward
# ----------------------------------------------------------------------------
def _vmem():
    return pl.BlockSpec(memory_space=pltpu.MemorySpace.VMEM)


def _smem():
    return pl.BlockSpec(memory_space=pltpu.MemorySpace.SMEM)


@functools.partial(jax.jit, static_argnames=("max_length", "k"))
def beam_search_decode(params, input_seq, input_length, max_length, bos, k=K):
    assert max_length <= LANES
    assert input_seq.shape[0] == T
    f32 = jnp.float32
    emb = params["embedding"]

    # ---- pack weights into two lane-dense arrays (2 weight DMAs, not 11) ----
    enc_in_gate = jnp.dot(emb, params["enc_w_ih"]) + params["enc_b"]       # (V, 4H)
    dec_in_gate = jnp.dot(emb, params["dec_w_ih"]) + params["dec_b"]       # (V, 4H)
    w_in = jnp.concatenate([dec_in_gate, params["dec_w_hh"]], axis=0)      # (V+H, 4H)
    packA = jnp.concatenate([enc_in_gate, params["enc_w_hh"], w_in],
                            axis=0).astype(f32)                            # (128, 128)
    packB = jnp.concatenate([params["w_c1"], params["w_c2"], params["w_out"],
                             params["b_out"], jnp.zeros((7, V), f32)],
                            axis=0).astype(f32)                            # (104, 32)

    seq2d = input_seq.astype(jnp.int32).reshape(T, 1)
    len2d = jnp.asarray(input_length, jnp.int32).reshape(1, 1)
    bos2d = jnp.asarray(bos, jnp.int32).reshape(1, 1)

    kern = functools.partial(beam_search_kernel, k=k, max_length=max_length)
    tokens = pl.pallas_call(
        kern,
        in_specs=[_vmem(), _smem(), _smem(), _vmem(), _vmem()],
        out_specs=_vmem(),
        out_shape=jax.ShapeDtypeStruct((1, LANES), jnp.int32),
        scratch_shapes=[pltpu.VMEM((T, H), jnp.float32)],
    )(seq2d, len2d, bos2d, packA, packB)
    return tokens[0, :max_length]                                          # (max_length,)


# ----------------------------------------------------------------------------
# deterministic parameter init
# ----------------------------------------------------------------------------
def init_params(key):
    ks = jax.random.split(key, 11)
    s = 0.1
    return {
        "embedding": s * jax.random.normal(ks[0], (V, E), jnp.float32),
        "enc_w_ih":  s * jax.random.normal(ks[1], (E, 4 * H), jnp.float32),
        "enc_w_hh":  s * jax.random.normal(ks[2], (H, 4 * H), jnp.float32),
        "enc_b":     s * jax.random.normal(ks[3], (1, 4 * H), jnp.float32),
        "dec_w_ih":  s * jax.random.normal(ks[4], (E, 4 * H), jnp.float32),
        "dec_w_hh":  s * jax.random.normal(ks[5], (H, 4 * H), jnp.float32),
        "dec_b":     s * jax.random.normal(ks[6], (1, 4 * H), jnp.float32),
        "w_c1":      s * jax.random.normal(ks[7], (H, H), jnp.float32),
        "w_c2":      s * jax.random.normal(ks[8], (H, H), jnp.float32),
        "w_out":     s * jax.random.normal(ks[9], (H, V), jnp.float32),
        "b_out":     s * jax.random.normal(ks[10], (1, V), jnp.float32),
    }


if __name__ == "__main__":
    key = jax.random.PRNGKey(0)
    pkey, skey = jax.random.split(key)
    params = init_params(pkey)

    input_seq = jax.random.randint(skey, (T,), 0, V, dtype=jnp.int32)
    input_length = jnp.array(T, dtype=jnp.int32)
    max_length = 6
    bos = 1

    tokens = beam_search_decode(params, input_seq, input_length,
                                max_length=max_length, bos=bos, k=K)
    tokens = jax.block_until_ready(tokens)
    assert tokens.shape == (max_length,)
    assert tokens.dtype == jnp.int32
    print("KERNEL_OK")
</pallas_src>

<mosaic_0001>
module attributes {stable_mosaic.version = 11 : i64} {
  func.func @beam_search_kernel(%arg0: memref<8x1xi32, #tpu.memory_space<vmem>>, %arg1: memref<1x1xi32, #tpu.memory_space<smem>>, %arg2: memref<1x1xi32, #tpu.memory_space<smem>>, %arg3: memref<128x128xf32, #tpu.memory_space<vmem>>, %arg4: memref<104x32xf32, #tpu.memory_space<vmem>>, %arg5: memref<1x128xi32, #tpu.memory_space<vmem>>, %arg6: memref<8x32xf32, #tpu.memory_space<vmem>>) attributes {dimension_semantics = [], scalar_prefetch = 0 : i64, scratch_operands = 1 : i64, tpu.core_type = #tpu.core_type<tc>} {
    %c0 = arith.constant 0 : index
    %c0_0 = arith.constant 0 : index
    %0 = memref.load %arg1[%c0, %c0_0] : memref<1x1xi32, #tpu.memory_space<smem>>
    %c0_1 = arith.constant 0 : index
    %c0_2 = arith.constant 0 : index
    %1 = memref.load %arg2[%c0_1, %c0_2] : memref<1x1xi32, #tpu.memory_space<smem>>
    %2 = arith.sitofp %1 : i32 to f32
    %c0_3 = arith.constant 0 : index
    %c0_4 = arith.constant 0 : index
    %3 = vector.load %arg0[%c0_3, %c0_4] : memref<8x1xi32, #tpu.memory_space<vmem>>, vector<8x1xi32>
    %4 = tpu.iota {dimensions = array<i32: 1>} : vector<8x32xi32>
    %5 = vector.broadcast %3 : vector<8x1xi32> to vector<8x32xi32>
    %6 = arith.cmpi eq, %5, %4 : vector<8x32xi32>
    %7 = arith.extui %6 : vector<8x32xi1> to vector<8x32xi32>
    %8 = arith.sitofp %7 : vector<8x32xi32> to vector<8x32xf32>
    %c0_5 = arith.constant 0 : index
    %c0_6 = arith.constant 0 : index
    %9 = vector.load %arg3[%c0_5, %c0_6] : memref<128x128xf32, #tpu.memory_space<vmem>>, vector<32x128xf32>
    %cst = arith.constant dense<0.000000e+00> : vector<8x128xf32>
    %10 = tpu.matmul %8, %9, %cst {dimension_numbers = #tpu.dot_dimension_numbers<[1], [0], [0], [1], [0, 0, 1, 1], [], []>} : vector<8x32xf32>, vector<32x128xf32>, vector<8x128xf32> -> vector<8x128xf32>
    %c32 = arith.constant 32 : index
    %c0_7 = arith.constant 0 : index
    %11 = vector.load %arg3[%c32, %c0_7] : memref<128x128xf32, #tpu.memory_space<vmem>>, vector<32x128xf32>
    %cst_8 = arith.constant 0.000000e+00 : f32
    %12 = vector.broadcast %cst_8 : f32 to vector<1x32xf32>
    %cst_9 = arith.constant 0.000000e+00 : f32
    %13 = vector.broadcast %cst_9 : f32 to vector<1x32xf32>
    %14 = vector.extract_strided_slice %10 {offsets = [0, 0], sizes = [1, 128], strides = [1, 1]} : vector<8x128xf32> to vector<1x128xf32>
    %cst_10 = arith.constant dense<0.000000e+00> : vector<1x128xf32>
    %15 = tpu.matmul %12, %11, %cst_10 {dimension_numbers = #tpu.dot_dimension_numbers<[1], [0], [0], [1], [0, 0, 1, 1], [], []>} : vector<1x32xf32>, vector<32x128xf32>, vector<1x128xf32> -> vector<1x128xf32>
    %16 = arith.addf %14, %15 : vector<1x128xf32>
    %17 = vector.extract_strided_slice %16 {offsets = [0, 0], sizes = [1, 32], strides = [1, 1]} : vector<1x128xf32> to vector<1x32xf32>
    %18 = arith.negf %17 : vector<1x32xf32>
    %19 = math.exp %18 : vector<1x32xf32>
    %cst_11 = arith.constant 1.000000e+00 : f32
    %20 = vector.broadcast %cst_11 : f32 to vector<1x32xf32>
    %21 = arith.addf %20, %19 : vector<1x32xf32>
    %22 = arith.divf %20, %21 : vector<1x32xf32>
    %23 = vector.extract_strided_slice %16 {offsets = [0, 32], sizes = [1, 32], strides = [1, 1]} : vector<1x128xf32> to vector<1x32xf32>
    %24 = arith.negf %23 : vector<1x32xf32>
    %25 = math.exp %24 : vector<1x32xf32>
    %cst_12 = arith.constant 1.000000e+00 : f32
    %26 = vector.broadcast %cst_12 : f32 to vector<1x32xf32>
    %27 = arith.addf %26, %25 : vector<1x32xf32>
    %28 = arith.divf %26, %27 : vector<1x32xf32>
    %29 = vector.extract_strided_slice %16 {offsets = [0, 64], sizes = [1, 32], strides = [1, 1]} : vector<1x128xf32> to vector<1x32xf32>
    %30 = math.tanh %29 : vector<1x32xf32>
    %31 = vector.extract_strided_slice %16 {offsets = [0, 96], sizes = [1, 32], strides = [1, 1]} : vector<1x128xf32> to vector<1x32xf32>
    %32 = arith.negf %31 : vector<1x32xf32>
    %33 = math.exp %32 : vector<1x32xf32>
    %cst_13 = arith.constant 1.000000e+00 : f32
    %34 = vector.broadcast %cst_13 : f32 to vector<1x32xf32>
    %35 = arith.addf %34, %33 : vector<1x32xf32>
    %36 = arith.divf %34, %35 : vector<1x32xf32>
    %37 = arith.mulf %28, %13 : vector<1x32xf32>
    %38 = arith.mulf %22, %30 : vector<1x32xf32>
    %39 = arith.addf %37, %38 : vector<1x32xf32>
    %40 = math.tanh %39 : vector<1x32xf32>
    %41 = arith.mulf %36, %40 : vector<1x32xf32>
    %c0_14 = arith.constant 0 : index
    %c0_15 = arith.constant 0 : index
    %42 = vector.load %arg6[%c0_14, %c0_15] : memref<8x32xf32, #tpu.memory_space<vmem>>, vector<1x32xf32>
    tpu.vector_store %arg6[%c0_14, %c0_15], %41 {strides = array<i32>} : memref<8x32xf32, #tpu.memory_space<vmem>>, vector<1x32xf32>,
    %c0_i32 = arith.constant 0 : i32
    %43 = arith.cmpi sgt, %0, %c0_i32 : i32
    %44 = arith.select %43, %41, %12 : vector<1x32xf32>
    %45 = arith.select %43, %39, %13 : vector<1x32xf32>
    %46 = vector.extract_strided_slice %10 {offsets = [1, 0], sizes = [1, 128], strides = [1, 1]} : vector<8x128xf32> to vector<1x128xf32>
    %cst_16 = arith.constant dense<0.000000e+00> : vector<1x128xf32>
    %47 = tpu.matmul %44, %11, %cst_16 {dimension_numbers = #tpu.dot_dimension_numbers<[1], [0], [0], [1], [0, 0, 1, 1], [], []>} : vector<1x32xf32>, vector<32x128xf32>, vector<1x128xf32> -> vector<1x128xf32>
    %48 = arith.addf %46, %47 : vector<1x128xf32>
    %49 = vector.extract_strided_slice %48 {offsets = [0, 0], sizes = [1, 32], strides = [1, 1]} : vector<1x128xf32> to vector<1x32xf32>
    %50 = arith.negf %49 : vector<1x32xf32>
    %51 = math.exp %50 : vector<1x32xf32>
    %cst_17 = arith.constant 1.000000e+00 : f32
    %52 = vector.broadcast %cst_17 : f32 to vector<1x32xf32>
    %53 = arith.addf %52, %51 : vector<1x32xf32>
    %54 = arith.divf %52, %53 : vector<1x32xf32>
    %55 = vector.extract_strided_slice %48 {offsets = [0, 32], sizes = [1, 32], strides = [1, 1]} : vector<1x128xf32> to vector<1x32xf32>
    %56 = arith.negf %55 : vector<1x32xf32>
    %57 = math.exp %56 : vector<1x32xf32>
    %cst_18 = arith.constant 1.000000e+00 : f32
    %58 = vector.broadcast %cst_18 : f32 to vector<1x32xf32>
    %59 = arith.addf %58, %57 : vector<1x32xf32>
    %60 = arith.divf %58, %59 : vector<1x32xf32>
    %61 = vector.extract_strided_slice %48 {offsets = [0, 64], sizes = [1, 32], strides = [1, 1]} : vector<1x128xf32> to vector<1x32xf32>
    %62 = math.tanh %61 : vector<1x32xf32>
    %63 = vector.extract_strided_slice %48 {offsets = [0, 96], sizes = [1, 32], strides = [1, 1]} : vector<1x128xf32> to vector<1x32xf32>
    %64 = arith.negf %63 : vector<1x32xf32>
    %65 = math.exp %64 : vector<1x32xf32>
    %cst_19 = arith.constant 1.000000e+00 : f32
    %66 = vector.broadcast %cst_19 : f32 to vector<1x32xf32>
    %67 = arith.addf %66, %65 : vector<1x32xf32>
    %68 = arith.divf %66, %67 : vector<1x32xf32>
    %69 = arith.mulf %60, %45 : vector<1x32xf32>
    %70 = arith.mulf %54, %62 : vector<1x32xf32>
    %71 = arith.addf %69, %70 : vector<1x32xf32>
    %72 = math.tanh %71 : vector<1x32xf32>
    %73 = arith.mulf %68, %72 : vector<1x32xf32>
    %c1 = arith.constant 1 : index
    %c0_20 = arith.constant 0 : index
    %74 = vector.load %arg6[%c1, %c0_20] : memref<8x32xf32, #tpu.memory_space<vmem>>, vector<1x32xf32>
    tpu.vector_store %arg6[%c1, %c0_20], %73 {strides = array<i32>} : memref<8x32xf32, #tpu.memory_space<vmem>>, vector<1x32xf32>,
    %c1_i32 = arith.constant 1 : i32
    %75 = arith.cmpi sgt, %0, %c1_i32 : i32
    %76 = arith.select %75, %73, %44 : vector<1x32xf32>
    %77 = arith.select %75, %71, %45 : vector<1x32xf32>
    %78 = vector.extract_strided_slice %10 {offsets = [2, 0], sizes = [1, 128], strides = [1, 1]} : vector<8x128xf32> to vector<1x128xf32>
    %cst_21 = arith.constant dense<0.000000e+00> : vector<1x128xf32>
    %79 = tpu.matmul %76, %11, %cst_21 {dimension_numbers = #tpu.dot_dimension_numbers<[1], [0], [0], [1], [0, 0, 1, 1], [], []>} : vector<1x32xf32>, vector<32x128xf32>, vector<1x128xf32> -> vector<1x128xf32>
    %80 = arith.addf %78, %79 : vector<1x128xf32>
    %81 = vector.extract_strided_slice %80 {offsets = [0, 0], sizes = [1, 32], strides = [1, 1]} : vector<1x128xf32> to vector<1x32xf32>
    %82 = arith.negf %81 : vector<1x32xf32>
    %83 = math.exp %82 : vector<1x32xf32>
    %cst_22 = arith.constant 1.000000e+00 : f32
    %84 = vector.broadcast %cst_22 : f32 to vector<1x32xf32>
    %85 = arith.addf %84, %83 : vector<1x32xf32>
    %86 = arith.divf %84, %85 : vector<1x32xf32>
    %87 = vector.extract_strided_slice %80 {offsets = [0, 32], sizes = [1, 32], strides = [1, 1]} : vector<1x128xf32> to vector<1x32xf32>
    %88 = arith.negf %87 : vector<1x32xf32>
    %89 = math.exp %88 : vector<1x32xf32>
    %cst_23 = arith.constant 1.000000e+00 : f32
    %90 = vector.broadcast %cst_23 : f32 to vector<1x32xf32>
    %91 = arith.addf %90, %89 : vector<1x32xf32>
    %92 = arith.divf %90, %91 : vector<1x32xf32>
    %93 = vector.extract_strided_slice %80 {offsets = [0, 64], sizes = [1, 32], strides = [1, 1]} : vector<1x128xf32> to vector<1x32xf32>
    %94 = math.tanh %93 : vector<1x32xf32>
    %95 = vector.extract_strided_slice %80 {offsets = [0, 96], sizes = [1, 32], strides = [1, 1]} : vector<1x128xf32> to vector<1x32xf32>
    %96 = arith.negf %95 : vector<1x32xf32>
    %97 = math.exp %96 : vector<1x32xf32>
    %cst_24 = arith.constant 1.000000e+00 : f32
    %98 = vector.broadcast %cst_24 : f32 to vector<1x32xf32>
    %99 = arith.addf %98, %97 : vector<1x32xf32>
    %100 = arith.divf %98, %99 : vector<1x32xf32>
    %101 = arith.mulf %92, %77 : vector<1x32xf32>
    %102 = arith.mulf %86, %94 : vector<1x32xf32>
    %103 = arith.addf %101, %102 : vector<1x32xf32>
    %104 = math.tanh %103 : vector<1x32xf32>
    %105 = arith.mulf %100, %104 : vector<1x32xf32>
    %c2 = arith.constant 2 : index
    %c0_25 = arith.constant 0 : index
    %106 = vector.load %arg6[%c2, %c0_25] : memref<8x32xf32, #tpu.memory_space<vmem>>, vector<1x32xf32>
    tpu.vector_store %arg6[%c2, %c0_25], %105 {strides = array<i32>} : memref<8x32xf32, #tpu.memory_space<vmem>>, vector<1x32xf32>,
    %c2_i32 = arith.constant 2 : i32
    %107 = arith.cmpi sgt, %0, %c2_i32 : i32
    %108 = arith.select %107, %105, %76 : vector<1x32xf32>
    %109 = arith.select %107, %103, %77 : vector<1x32xf32>
    %110 = vector.extract_strided_slice %10 {offsets = [3, 0], sizes = [1, 128], strides = [1, 1]} : vector<8x128xf32> to vector<1x128xf32>
    %cst_26 = arith.constant dense<0.000000e+00> : vector<1x128xf32>
    %111 = tpu.matmul %108, %11, %cst_26 {dimension_numbers = #tpu.dot_dimension_numbers<[1], [0], [0], [1], [0, 0, 1, 1], [], []>} : vector<1x32xf32>, vector<32x128xf32>, vector<1x128xf32> -> vector<1x128xf32>
    %112 = arith.addf %110, %111 : vector<1x128xf32>
    %113 = vector.extract_strided_slice %112 {offsets = [0, 0], sizes = [1, 32], strides = [1, 1]} : vector<1x128xf32> to vector<1x32xf32>
    %114 = arith.negf %113 : vector<1x32xf32>
    %115 = math.exp %114 : vector<1x32xf32>
    %cst_27 = arith.constant 1.000000e+00 : f32
    %116 = vector.broadcast %cst_27 : f32 to vector<1x32xf32>
    %117 = arith.addf %116, %115 : vector<1x32xf32>
    %118 = arith.divf %116, %117 : vector<1x32xf32>
    %119 = vector.extract_strided_slice %112 {offsets = [0, 32], sizes = [1, 32], strides = [1, 1]} : vector<1x128xf32> to vector<1x32xf32>
    %120 = arith.negf %119 : vector<1x32xf32>
    %121 = math.exp %120 : vector<1x32xf32>
    %cst_28 = arith.constant 1.000000e+00 : f32
    %122 = vector.broadcast %cst_28 : f32 to vector<1x32xf32>
    %123 = arith.addf %122, %121 : vector<1x32xf32>
    %124 = arith.divf %122, %123 : vector<1x32xf32>
    %125 = vector.extract_strided_slice %112 {offsets = [0, 64], sizes = [1, 32], strides = [1, 1]} : vector<1x128xf32> to vector<1x32xf32>
    %126 = math.tanh %125 : vector<1x32xf32>
    %127 = vector.extract_strided_slice %112 {offsets = [0, 96], sizes = [1, 32], strides = [1, 1]} : vector<1x128xf32> to vector<1x32xf32>
    %128 = arith.negf %127 : vector<1x32xf32>
    %129 = math.exp %128 : vector<1x32xf32>
    %cst_29 = arith.constant 1.000000e+00 : f32
    %130 = vector.broadcast %cst_29 : f32 to vector<1x32xf32>
    %131 = arith.addf %130, %129 : vector<1x32xf32>
    %132 = arith.divf %130, %131 : vector<1x32xf32>
    %133 = arith.mulf %124, %109 : vector<1x32xf32>
    %134 = arith.mulf %118, %126 : vector<1x32xf32>
    %135 = arith.addf %133, %134 : vector<1x32xf32>
    %136 = math.tanh %135 : vector<1x32xf32>
    %137 = arith.mulf %132, %136 : vector<1x32xf32>
    %c3 = arith.constant 3 : index
    %c0_30 = arith.constant 0 : index
    %138 = vector.load %arg6[%c3, %c0_30] : memref<8x32xf32, #tpu.memory_space<vmem>>, vector<1x32xf32>
    tpu.vector_store %arg6[%c3, %c0_30], %137 {strides = array<i32>} : memref<8x32xf32, #tpu.memory_space<vmem>>, vector<1x32xf32>,
    %c3_i32 = arith.constant 3 : i32
    %139 = arith.cmpi sgt, %0, %c3_i32 : i32
    %140 = arith.select %139, %137, %108 : vector<1x32xf32>
    %141 = arith.select %139, %135, %109 : vector<1x32xf32>
    %142 = vector.extract_strided_slice %10 {offsets = [4, 0], sizes = [1, 128], strides = [1, 1]} : vector<8x128xf32> to vector<1x128xf32>
    %cst_31 = arith.constant dense<0.000000e+00> : vector<1x128xf32>
    %143 = tpu.matmul %140, %11, %cst_31 {dimension_numbers = #tpu.dot_dimension_numbers<[1], [0], [0], [1], [0, 0, 1, 1], [], []>} : vector<1x32xf32>, vector<32x128xf32>, vector<1x128xf32> -> vector<1x128xf32>
    %144 = arith.addf %142, %143 : vector<1x128xf32>
    %145 = vector.extract_strided_slice %144 {offsets = [0, 0], sizes = [1, 32], strides = [1, 1]} : vector<1x128xf32> to vector<1x32xf32>
    %146 = arith.negf %145 : vector<1x32xf32>
    %147 = math.exp %146 : vector<1x32xf32>
    %cst_32 = arith.constant 1.000000e+00 : f32
    %148 = vector.broadcast %cst_32 : f32 to vector<1x32xf32>
    %149 = arith.addf %148, %147 : vector<1x32xf32>
    %150 = arith.divf %148, %149 : vector<1x32xf32>
    %151 = vector.extract_strided_slice %144 {offsets = [0, 32], sizes = [1, 32], strides = [1, 1]} : vector<1x128xf32> to vector<1x32xf32>
    %152 = arith.negf %151 : vector<1x32xf32>
    %153 = math.exp %152 : vector<1x32xf32>
    %cst_33 = arith.constant 1.000000e+00 : f32
    %154 = vector.broadcast %cst_33 : f32 to vector<1x32xf32>
    %155 = arith.addf %154, %153 : vector<1x32xf32>
    %156 = arith.divf %154, %155 : vector<1x32xf32>
    %157 = vector.extract_strided_slice %144 {offsets = [0, 64], sizes = [1, 32], strides = [1, 1]} : vector<1x128xf32> to vector<1x32xf32>
    %158 = math.tanh %157 : vector<1x32xf32>
    %159 = vector.extract_strided_slice %144 {offsets = [0, 96], sizes = [1, 32], strides = [1, 1]} : vector<1x128xf32> to vector<1x32xf32>
    %160 = arith.negf %159 : vector<1x32xf32>
    %161 = math.exp %160 : vector<1x32xf32>
    %cst_34 = arith.constant 1.000000e+00 : f32
    %162 = vector.broadcast %cst_34 : f32 to vector<1x32xf32>
    %163 = arith.addf %162, %161 : vector<1x32xf32>
    %164 = arith.divf %162, %163 : vector<1x32xf32>
    %165 = arith.mulf %156, %141 : vector<1x32xf32>
    %166 = arith.mulf %150, %158 : vector<1x32xf32>
    %167 = arith.addf %165, %166 : vector<1x32xf32>
    %168 = math.tanh %167 : vector<1x32xf32>
    %169 = arith.mulf %164, %168 : vector<1x32xf32>
    %c4 = arith.constant 4 : index
    %c0_35 = arith.constant 0 : index
    %170 = vector.load %arg6[%c4, %c0_35] : memref<8x32xf32, #tpu.memory_space<vmem>>, vector<1x32xf32>
    tpu.vector_store %arg6[%c4, %c0_35], %169 {strides = array<i32>} : memref<8x32xf32, #tpu.memory_space<vmem>>, vector<1x32xf32>,
    %c4_i32 = arith.constant 4 : i32
    %171 = arith.cmpi sgt, %0, %c4_i32 : i32
    %172 = arith.select %171, %169, %140 : vector<1x32xf32>
    %173 = arith.select %171, %167, %141 : vector<1x32xf32>
    %174 = vector.extract_strided_slice %10 {offsets = [5, 0], sizes = [1, 128], strides = [1, 1]} : vector<8x128xf32> to vector<1x128xf32>
    %cst_36 = arith.constant dense<0.000000e+00> : vector<1x128xf32>
    %175 = tpu.matmul %172, %11, %cst_36 {dimension_numbers = #tpu.dot_dimension_numbers<[1], [0], [0], [1], [0, 0, 1, 1], [], []>} : vector<1x32xf32>, vector<32x128xf32>, vector<1x128xf32> -> vector<1x128xf32>
    %176 = arith.addf %174, %175 : vector<1x128xf32>
    %177 = vector.extract_strided_slice %176 {offsets = [0, 0], sizes = [1, 32], strides = [1, 1]} : vector<1x128xf32> to vector<1x32xf32>
    %178 = arith.negf %177 : vector<1x32xf32>
    %179 = math.exp %178 : vector<1x32xf32>
    %cst_37 = arith.constant 1.000000e+00 : f32
    %180 = vector.broadcast %cst_37 : f32 to vector<1x32xf32>
    %181 = arith.addf %180, %179 : vector<1x32xf32>
    %182 = arith.divf %180, %181 : vector<1x32xf32>
    %183 = vector.extract_strided_slice %176 {offsets = [0, 32], sizes = [1, 32], strides = [1, 1]} : vector<1x128xf32> to vector<1x32xf32>
    %184 = arith.negf %183 : vector<1x32xf32>
    %185 = math.exp %184 : vector<1x32xf32>
    %cst_38 = arith.constant 1.000000e+00 : f32
    %186 = vector.broadcast %cst_38 : f32 to vector<1x32xf32>
    %187 = arith.addf %186, %185 : vector<1x32xf32>
    %188 = arith.divf %186, %187 : vector<1x32xf32>
    %189 = vector.extract_strided_slice %176 {offsets = [0, 64], sizes = [1, 32], strides = [1, 1]} : vector<1x128xf32> to vector<1x32xf32>
    %190 = math.tanh %189 : vector<1x32xf32>
    %191 = vector.extract_strided_slice %176 {offsets = [0, 96], sizes = [1, 32], strides = [1, 1]} : vector<1x128xf32> to vector<1x32xf32>
    %192 = arith.negf %191 : vector<1x32xf32>
    %193 = math.exp %192 : vector<1x32xf32>
    %cst_39 = arith.constant 1.000000e+00 : f32
    %194 = vector.broadcast %cst_39 : f32 to vector<1x32xf32>
    %195 = arith.addf %194, %193 : vector<1x32xf32>
    %196 = arith.divf %194, %195 : vector<1x32xf32>
    %197 = arith.mulf %188, %173 : vector<1x32xf32>
    %198 = arith.mulf %182, %190 : vector<1x32xf32>
    %199 = arith.addf %197, %198 : vector<1x32xf32>
    %200 = math.tanh %199 : vector<1x32xf32>
    %201 = arith.mulf %196, %200 : vector<1x32xf32>
    %c5 = arith.constant 5 : index
    %c0_40 = arith.constant 0 : index
    %202 = vector.load %arg6[%c5, %c0_40] : memref<8x32xf32, #tpu.memory_space<vmem>>, vector<1x32xf32>
    tpu.vector_store %arg6[%c5, %c0_40], %201 {strides = array<i32>} : memref<8x32xf32, #tpu.memory_space<vmem>>, vector<1x32xf32>,
    %c5_i32 = arith.constant 5 : i32
    %203 = arith.cmpi sgt, %0, %c5_i32 : i32
    %204 = arith.select %203, %201, %172 : vector<1x32xf32>
    %205 = arith.select %203, %199, %173 : vector<1x32xf32>
    %206 = vector.extract_strided_slice %10 {offsets = [6, 0], sizes = [1, 128], strides = [1, 1]} : vector<8x128xf32> to vector<1x128xf32>
    %cst_41 = arith.constant dense<0.000000e+00> : vector<1x128xf32>
    %207 = tpu.matmul %204, %11, %cst_41 {dimension_numbers = #tpu.dot_dimension_numbers<[1], [0], [0], [1], [0, 0, 1, 1], [], []>} : vector<1x32xf32>, vector<32x128xf32>, vector<1x128xf32> -> vector<1x128xf32>
    %208 = arith.addf %206, %207 : vector<1x128xf32>
    %209 = vector.extract_strided_slice %208 {offsets = [0, 0], sizes = [1, 32], strides = [1, 1]} : vector<1x128xf32> to vector<1x32xf32>
    %210 = arith.negf %209 : vector<1x32xf32>
    %211 = math.exp %210 : vector<1x32xf32>
    %cst_42 = arith.constant 1.000000e+00 : f32
    %212 = vector.broadcast %cst_42 : f32 to vector<1x32xf32>
    %213 = arith.addf %212, %211 : vector<1x32xf32>
    %214 = arith.divf %212, %213 : vector<1x32xf32>
    %215 = vector.extract_strided_slice %208 {offsets = [0, 32], sizes = [1, 32], strides = [1, 1]} : vector<1x128xf32> to vector<1x32xf32>
    %216 = arith.negf %215 : vector<1x32xf32>
    %217 = math.exp %216 : vector<1x32xf32>
    %cst_43 = arith.constant 1.000000e+00 : f32
    %218 = vector.broadcast %cst_43 : f32 to vector<1x32xf32>
    %219 = arith.addf %218, %217 : vector<1x32xf32>
    %220 = arith.divf %218, %219 : vector<1x32xf32>
    %221 = vector.extract_strided_slice %208 {offsets = [0, 64], sizes = [1, 32], strides = [1, 1]} : vector<1x128xf32> to vector<1x32xf32>
    %222 = math.tanh %221 : vector<1x32xf32>
    %223 = vector.extract_strided_slice %208 {offsets = [0, 96], sizes = [1, 32], strides = [1, 1]} : vector<1x128xf32> to vector<1x32xf32>
    %224 = arith.negf %223 : vector<1x32xf32>
    %225 = math.exp %224 : vector<1x32xf32>
    %cst_44 = arith.constant 1.000000e+00 : f32
    %226 = vector.broadcast %cst_44 : f32 to vector<1x32xf32>
    %227 = arith.addf %226, %225 : vector<1x32xf32>
    %228 = arith.divf %226, %227 : vector<1x32xf32>
    %229 = arith.mulf %220, %205 : vector<1x32xf32>
    %230 = arith.mulf %214, %222 : vector<1x32xf32>
    %231 = arith.addf %229, %230 : vector<1x32xf32>
    %232 = math.tanh %231 : vector<1x32xf32>
    %233 = arith.mulf %228, %232 : vector<1x32xf32>
    %c6 = arith.constant 6 : index
    %c0_45 = arith.constant 0 : index
    %234 = vector.load %arg6[%c6, %c0_45] : memref<8x32xf32, #tpu.memory_space<vmem>>, vector<1x32xf32>
    tpu.vector_store %arg6[%c6, %c0_45], %233 {strides = array<i32>} : memref<8x32xf32, #tpu.memory_space<vmem>>, vector<1x32xf32>,
    %c6_i32 = arith.constant 6 : i32
    %235 = arith.cmpi sgt, %0, %c6_i32 : i32
    %236 = arith.select %235, %233, %204 : vector<1x32xf32>
    %237 = arith.select %235, %231, %205 : vector<1x32xf32>
    %238 = vector.extract_strided_slice %10 {offsets = [7, 0], sizes = [1, 128], strides = [1, 1]} : vector<8x128xf32> to vector<1x128xf32>
    %cst_46 = arith.constant dense<0.000000e+00> : vector<1x128xf32>
    %239 = tpu.matmul %236, %11, %cst_46 {dimension_numbers = #tpu.dot_dimension_numbers<[1], [0], [0], [1], [0, 0, 1, 1], [], []>} : vector<1x32xf32>, vector<32x128xf32>, vector<1x128xf32> -> vector<1x128xf32>
    %240 = arith.addf %238, %239 : vector<1x128xf32>
    %241 = vector.extract_strided_slice %240 {offsets = [0, 0], sizes = [1, 32], strides = [1, 1]} : vector<1x128xf32> to vector<1x32xf32>
    %242 = arith.negf %241 : vector<1x32xf32>
    %243 = math.exp %242 : vector<1x32xf32>
    %cst_47 = arith.constant 1.000000e+00 : f32
    %244 = vector.broadcast %cst_47 : f32 to vector<1x32xf32>
    %245 = arith.addf %244, %243 : vector<1x32xf32>
    %246 = arith.divf %244, %245 : vector<1x32xf32>
    %247 = vector.extract_strided_slice %240 {offsets = [0, 32], sizes = [1, 32], strides = [1, 1]} : vector<1x128xf32> to vector<1x32xf32>
    %248 = arith.negf %247 : vector<1x32xf32>
    %249 = math.exp %248 : vector<1x32xf32>
    %cst_48 = arith.constant 1.000000e+00 : f32
    %250 = vector.broadcast %cst_48 : f32 to vector<1x32xf32>
    %251 = arith.addf %250, %249 : vector<1x32xf32>
    %252 = arith.divf %250, %251 : vector<1x32xf32>
    %253 = vector.extract_strided_slice %240 {offsets = [0, 64], sizes = [1, 32], strides = [1, 1]} : vector<1x128xf32> to vector<1x32xf32>
    %254 = math.tanh %253 : vector<1x32xf32>
    %255 = vector.extract_strided_slice %240 {offsets = [0, 96], sizes = [1, 32], strides = [1, 1]} : vector<1x128xf32> to vector<1x32xf32>
    %256 = arith.negf %255 : vector<1x32xf32>
    %257 = math.exp %256 : vector<1x32xf32>
    %cst_49 = arith.constant 1.000000e+00 : f32
    %258 = vector.broadcast %cst_49 : f32 to vector<1x32xf32>
    %259 = arith.addf %258, %257 : vector<1x32xf32>
    %260 = arith.divf %258, %259 : vector<1x32xf32>
    %261 = arith.mulf %252, %237 : vector<1x32xf32>
    %262 = arith.mulf %246, %254 : vector<1x32xf32>
    %263 = arith.addf %261, %262 : vector<1x32xf32>
    %264 = math.tanh %263 : vector<1x32xf32>
    %265 = arith.mulf %260, %264 : vector<1x32xf32>
    %c7 = arith.constant 7 : index
    %c0_50 = arith.constant 0 : index
    %266 = vector.load %arg6[%c7, %c0_50] : memref<8x32xf32, #tpu.memory_space<vmem>>, vector<1x32xf32>
    tpu.vector_store %arg6[%c7, %c0_50], %265 {strides = array<i32>} : memref<8x32xf32, #tpu.memory_space<vmem>>, vector<1x32xf32>,
    %c7_i32 = arith.constant 7 : i32
    %267 = arith.cmpi sgt, %0, %c7_i32 : i32
    %268 = arith.select %267, %265, %236 : vector<1x32xf32>
    %269 = arith.select %267, %263, %237 : vector<1x32xf32>
    %270 = tpu.iota {dimensions = array<i32: 0>} : vector<8x1xi32>
    %271 = vector.broadcast %0 : i32 to vector<8x1xi32>
    %272 = arith.cmpi slt, %270, %271 : vector<8x1xi32>
    %c0_51 = arith.constant 0 : index
    %c0_52 = arith.constant 0 : index
    %273 = vector.load %arg6[%c0_51, %c0_52] : memref<8x32xf32, #tpu.memory_space<vmem>>, vector<8x32xf32>
    %cst_53 = arith.constant 0.000000e+00 : f32
    %274 = vector.shape_cast %272 : vector<8x1xi1> to vector<8x1xi1>
    %275 = vector.broadcast %274 : vector<8x1xi1> to vector<8x32xi1>
    %276 = vector.broadcast %cst_53 : f32 to vector<8x32xf32>
    %277 = arith.select %275, %273, %276 : vector<8x32xi1>, vector<8x32xf32>
    %c64 = arith.constant 64 : index
    %c0_54 = arith.constant 0 : index
    %278 = vector.load %arg3[%c64, %c0_54] : memref<128x128xf32, #tpu.memory_space<vmem>>, vector<64x128xf32>
    %c0_55 = arith.constant 0 : index
    %c0_56 = arith.constant 0 : index
    %279 = vector.load %arg4[%c0_55, %c0_56] : memref<104x32xf32, #tpu.memory_space<vmem>>, vector<64x32xf32>
    %c64_57 = arith.constant 64 : index
    %c0_58 = arith.constant 0 : index
    %280 = vector.load %arg4[%c64_57, %c0_58] : memref<104x32xf32, #tpu.memory_space<vmem>>, vector<32x32xf32>
    %c96 = arith.constant 96 : index
    %c0_59 = arith.constant 0 : index
    %281 = vector.load %arg4[%c96, %c0_59] : memref<104x32xf32, #tpu.memory_space<vmem>>, vector<1x32xf32>
    %282 = tpu.iota {dimensions = array<i32: 0>} : vector<3x1xi32>
    %cst_60 = arith.constant 0.000000e+00 : f32
    %283 = vector.broadcast %cst_60 : f32 to vector<1x1xf32>
    %284 = vector.broadcast %2 : f32 to vector<1x1xf32>
    %285 = arith.addf %283, %284 : vector<1x1xf32>
    %286 = tpu.iota {dimensions = array<i32: 1>} : vector<1x32xi32>
    %287 = arith.sitofp %286 : vector<1x32xi32> to vector<1x32xf32>
    %288 = vector.broadcast %285 : vector<1x1xf32> to vector<1x32xf32>
    %289 = arith.cmpf oeq, %288, %287 : vector<1x32xf32>
    %290 = arith.extui %289 : vector<1x32xi1> to vector<1x32xi32>
    %291 = arith.sitofp %290 : vector<1x32xi32> to vector<1x32xf32>
    %292 = tpu.concatenate %291, %268 in 1 : vector<1x32xf32>, vector<1x32xf32> -> vector<1x64xf32>
    %cst_61 = arith.constant dense<0.000000e+00> : vector<1x128xf32>
    %293 = tpu.matmul %292, %278, %cst_61 {dimension_numbers = #tpu.dot_dimension_numbers<[1], [0], [0], [1], [0, 0, 1, 1], [], []>} : vector<1x64xf32>, vector<64x128xf32>, vector<1x128xf32> -> vector<1x128xf32>
    %294 = vector.extract_strided_slice %293 {offsets = [0, 0], sizes = [1, 32], strides = [1, 1]} : vector<1x128xf32> to vector<1x32xf32>
    %295 = arith.negf %294 : vector<1x32xf32>
    %296 = math.exp %295 : vector<1x32xf32>
    %cst_62 = arith.constant 1.000000e+00 : f32
    %297 = vector.broadcast %cst_62 : f32 to vector<1x32xf32>
    %298 = arith.addf %297, %296 : vector<1x32xf32>
    %299 = arith.divf %297, %298 : vector<1x32xf32>
    %300 = vector.extract_strided_slice %293 {offsets = [0, 32], sizes = [1, 32], strides = [1, 1]} : vector<1x128xf32> to vector<1x32xf32>
    %301 = arith.negf %300 : vector<1x32xf32>
    %302 = math.exp %301 : vector<1x32xf32>
    %cst_63 = arith.constant 1.000000e+00 : f32
    %303 = vector.broadcast %cst_63 : f32 to vector<1x32xf32>
    %304 = arith.addf %303, %302 : vector<1x32xf32>
    %305 = arith.divf %303, %304 : vector<1x32xf32>
    %306 = vector.extract_strided_slice %293 {offsets = [0, 64], sizes = [1, 32], strides = [1, 1]} : vector<1x128xf32> to vector<1x32xf32>
    %307 = math.tanh %306 : vector<1x32xf32>
    %308 = vector.extract_strided_slice %293 {offsets = [0, 96], sizes = [1, 32], strides = [1, 1]} : vector<1x128xf32> to vector<1x32xf32>
    %309 = arith.negf %308 : vector<1x32xf32>
    %310 = math.exp %309 : vector<1x32xf32>
    %cst_64 = arith.constant 1.000000e+00 : f32
    %311 = vector.broadcast %cst_64 : f32 to vector<1x32xf32>
    %312 = arith.addf %311, %310 : vector<1x32xf32>
    %313 = arith.divf %311, %312 : vector<1x32xf32>
    %314 = arith.mulf %305, %269 : vector<1x32xf32>
    %315 = arith.mulf %299, %307 : vector<1x32xf32>
    %316 = arith.addf %314, %315 : vector<1x32xf32>
    %317 = math.tanh %316 : vector<1x32xf32>
    %318 = arith.mulf %313, %317 : vector<1x32xf32>
    %cst_65 = arith.constant dense<0.000000e+00> : vector<1x8xf32>
    %319 = tpu.matmul %318, %277, %cst_65 {dimension_numbers = #tpu.dot_dimension_numbers<[1], [1], [0], [0], [0, 0, 1, 0], [], []>} : vector<1x32xf32>, vector<8x32xf32>, vector<1x8xf32> -> vector<1x8xf32>
    %cst_66 = arith.constant dense<0xFF800000> : vector<1xf32>
    %320 = vector.multi_reduction <maximumf>, %319, %cst_66 [1] : vector<1x8xf32> to vector<1xf32>
    %321 = vector.shape_cast %320 : vector<1xf32> to vector<1x1xf32>
    %322 = vector.broadcast %321 : vector<1x1xf32> to vector<1x8xf32>
    %323 = arith.subf %319, %322 : vector<1x8xf32>
    %324 = math.exp %323 : vector<1x8xf32>
    %cst_67 = arith.constant dense<0.000000e+00> : vector<1xf32>
    %325 = vector.multi_reduction <add>, %324, %cst_67 [1] : vector<1x8xf32> to vector<1xf32>
    %326 = vector.shape_cast %325 : vector<1xf32> to vector<1x1xf32>
    %327 = tpu.reciprocal %326 {approx = true} : vector<1x1xf32> -> vector<1x1xf32>
    %328 = vector.broadcast %327 : vector<1x1xf32> to vector<1x8xf32>
    %329 = arith.mulf %324, %328 : vector<1x8xf32>
    %cst_68 = arith.constant dense<0.000000e+00> : vector<1x32xf32>
    %330 = tpu.matmul %329, %277, %cst_68 {dimension_numbers = #tpu.dot_dimension_numbers<[1], [0], [0], [1], [0, 0, 1, 1], [], []>} : vector<1x8xf32>, vector<8x32xf32>, vector<1x32xf32> -> vector<1x32xf32>
    %331 = tpu.concatenate %318, %330 in 1 : vector<1x32xf32>, vector<1x32xf32> -> vector<1x64xf32>
    %cst_69 = arith.constant dense<0.000000e+00> : vector<1x32xf32>
    %332 = tpu.matmul %331, %279, %cst_69 {dimension_numbers = #tpu.dot_dimension_numbers<[1], [0], [0], [1], [0, 0, 1, 1], [], []>} : vector<1x64xf32>, vector<64x32xf32>, vector<1x32xf32> -> vector<1x32xf32>
    %333 = math.tanh %332 : vector<1x32xf32>
    %cst_70 = arith.constant dense<0.000000e+00> : vector<1x32xf32>
    %334 = tpu.matmul %333, %280, %cst_70 {dimension_numbers = #tpu.dot_dimension_numbers<[1], [0], [0], [1], [0, 0, 1, 1], [], []>} : vector<1x32xf32>, vector<32x32xf32>, vector<1x32xf32> -> vector<1x32xf32>
    %335 = arith.addf %334, %281 : vector<1x32xf32>
    %cst_71 = arith.constant dense<0xFF800000> : vector<1xf32>
    %336 = vector.multi_reduction <maximumf>, %335, %cst_71 [1] : vector<1x32xf32> to vector<1xf32>
    %337 = vector.shape_cast %336 : vector<1xf32> to vector<1x1xf32>
    %338 = vector.broadcast %337 : vector<1x1xf32> to vector<1x32xf32>
    %339 = arith.subf %335, %338 : vector<1x32xf32>
    %340 = math.exp %339 : vector<1x32xf32>
    %cst_72 = arith.constant dense<0.000000e+00> : vector<1xf32>
    %341 = vector.multi_reduction <add>, %340, %cst_72 [1] : vector<1x32xf32> to vector<1xf32>
    %342 = vector.shape_cast %341 : vector<1xf32> to vector<1x1xf32>
    %343 = math.log %342 : vector<1x1xf32>
    %344 = arith.addf %343, %337 : vector<1x1xf32>
    %345 = vector.broadcast %344 : vector<1x1xf32> to vector<1x32xf32>
    %346 = arith.subf %335, %345 : vector<1x32xf32>
    %347 = tpu.iota {dimensions = array<i32: 1>} : vector<1x32xi32>
    %348 = arith.sitofp %347 : vector<1x32xi32> to vector<1x32xf32>
    %349 = tpu.iota {dimensions = array<i32: 0>} : vector<1x32xi32>
    %350 = arith.sitofp %349 : vector<1x32xi32> to vector<1x32xf32>
    %cst_73 = arith.constant 3.200000e+01 : f32
    %351 = vector.broadcast %cst_73 : f32 to vector<1x32xf32>
    %352 = arith.mulf %350, %351 : vector<1x32xf32>
    %353 = arith.addf %352, %348 : vector<1x32xf32>
    %cst_74 = arith.constant 0.000000e+00 : f32
    %354 = vector.broadcast %cst_74 : f32 to vector<3x1xf32>
    %cst_75 = arith.constant 0.000000e+00 : f32
    %355 = vector.broadcast %cst_75 : f32 to vector<3x1xf32>
    %cst_76 = arith.constant dense<0xFF800000> : vector<1xf32>
    %356 = vector.multi_reduction <maximumf>, %346, %cst_76 [1] : vector<1x32xf32> to vector<1xf32>
    %357 = vector.shape_cast %356 : vector<1xf32> to vector<1x1xf32>
    %cst_77 = arith.constant dense<0xFF800000> : vector<1xf32>
    %358 = vector.multi_reduction <maximumf>, %357, %cst_77 [0] : vector<1x1xf32> to vector<1xf32>
    %359 = vector.shape_cast %358 : vector<1xf32> to vector<1x1xf32>
    %360 = vector.broadcast %359 : vector<1x1xf32> to vector<1x32xf32>
    %361 = arith.cmpf oeq, %346, %360 : vector<1x32xf32>
    %cst_78 = arith.constant 3.200000e+01 : f32
    %362 = vector.broadcast %cst_78 : f32 to vector<1x32xf32>
    %363 = arith.select %361, %353, %362 : vector<1x32xi1>, vector<1x32xf32>
    %cst_79 = arith.constant dense<0x7F800000> : vector<1xf32>
    %364 = vector.multi_reduction <minimumf>, %363, %cst_79 [1] : vector<1x32xf32> to vector<1xf32>
    %365 = vector.shape_cast %364 : vector<1xf32> to vector<1x1xf32>
    %cst_80 = arith.constant dense<0x7F800000> : vector<1xf32>
    %366 = vector.multi_reduction <minimumf>, %365, %cst_80 [0] : vector<1x1xf32> to vector<1xf32>
    %367 = vector.shape_cast %366 : vector<1xf32> to vector<1x1xf32>
    %368 = vector.broadcast %367 : vector<1x1xf32> to vector<1x32xf32>
    %369 = arith.cmpf oeq, %353, %368 : vector<1x32xf32>
    %cst_81 = arith.constant 0.000000e+00 : f32
    %370 = vector.broadcast %cst_81 : f32 to vector<1x32xf32>
    %371 = arith.select %369, %348, %370 : vector<1x32xi1>, vector<1x32xf32>
    %cst_82 = arith.constant dense<0.000000e+00> : vector<1xf32>
    %372 = vector.multi_reduction <add>, %371, %cst_82 [1] : vector<1x32xf32> to vector<1xf32>
    %373 = vector.shape_cast %372 : vector<1xf32> to vector<1x1xf32>
    %cst_83 = arith.constant dense<0.000000e+00> : vector<1xf32>
    %374 = vector.multi_reduction <add>, %373, %cst_83 [0] : vector<1x1xf32> to vector<1xf32>
    %375 = vector.shape_cast %374 : vector<1xf32> to vector<1x1xf32>
    %c0_i32_84 = arith.constant 0 : i32
    %376 = vector.broadcast %c0_i32_84 : i32 to vector<3x1xi32>
    %377 = arith.cmpi eq, %282, %376 : vector<3x1xi32>
    %378 = vector.shape_cast %359 : vector<1x1xf32> to vector<1x1xf32>
    %379 = vector.broadcast %378 : vector<1x1xf32> to vector<3x1xf32>
    %380 = arith.select %377, %379, %354 : vector<3x1xi1>, vector<3x1xf32>
    %c0_i32_85 = arith.constant 0 : i32
    %381 = vector.broadcast %c0_i32_85 : i32 to vector<3x1xi32>
    %382 = arith.cmpi eq, %282, %381 : vector<3x1xi32>
    %383 = vector.shape_cast %375 : vector<1x1xf32> to vector<1x1xf32>
    %384 = vector.broadcast %383 : vector<1x1xf32> to vector<3x1xf32>
    %385 = arith.select %382, %384, %355 : vector<3x1xi1>, vector<3x1xf32>
    %cst_86 = arith.constant -1.000000e+30 : f32
    %386 = vector.broadcast %cst_86 : f32 to vector<1x32xf32>
    %387 = arith.select %369, %386, %346 : vector<1x32xi1>, vector<1x32xf32>
    %cst_87 = arith.constant dense<0xFF800000> : vector<1xf32>
    %388 = vector.multi_reduction <maximumf>, %387, %cst_87 [1] : vector<1x32xf32> to vector<1xf32>
    %389 = vector.shape_cast %388 : vector<1xf32> to vector<1x1xf32>
    %cst_88 = arith.constant dense<0xFF800000> : vector<1xf32>
    %390 = vector.multi_reduction <maximumf>, %389, %cst_88 [0] : vector<1x1xf32> to vector<1xf32>
    %391 = vector.shape_cast %390 : vector<1xf32> to vector<1x1xf32>
    %392 = vector.broadcast %391 : vector<1x1xf32> to vector<1x32xf32>
    %393 = arith.cmpf oeq, %387, %392 : vector<1x32xf32>
    %cst_89 = arith.constant 3.200000e+01 : f32
    %394 = vector.broadcast %cst_89 : f32 to vector<1x32xf32>
    %395 = arith.select %393, %353, %394 : vector<1x32xi1>, vector<1x32xf32>
    %cst_90 = arith.constant dense<0x7F800000> : vector<1xf32>
    %396 = vector.multi_reduction <minimumf>, %395, %cst_90 [1] : vector<1x32xf32> to vector<1xf32>
    %397 = vector.shape_cast %396 : vector<1xf32> to vector<1x1xf32>
    %cst_91 = arith.constant dense<0x7F800000> : vector<1xf32>
    %398 = vector.multi_reduction <minimumf>, %397, %cst_91 [0] : vector<1x1xf32> to vector<1xf32>
    %399 = vector.shape_cast %398 : vector<1xf32> to vector<1x1xf32>
    %400 = vector.broadcast %399 : vector<1x1xf32> to vector<1x32xf32>
    %401 = arith.cmpf oeq, %353, %400 : vector<1x32xf32>
    %cst_92 = arith.constant 0.000000e+00 : f32
    %402 = vector.broadcast %cst_92 : f32 to vector<1x32xf32>
    %403 = arith.select %401, %348, %402 : vector<1x32xi1>, vector<1x32xf32>
    %cst_93 = arith.constant dense<0.000000e+00> : vector<1xf32>
    %404 = vector.multi_reduction <add>, %403, %cst_93 [1] : vector<1x32xf32> to vector<1xf32>
    %405 = vector.shape_cast %404 : vector<1xf32> to vector<1x1xf32>
    %cst_94 = arith.constant dense<0.000000e+00> : vector<1xf32>
    %406 = vector.multi_reduction <add>, %405, %cst_94 [0] : vector<1x1xf32> to vector<1xf32>
    %407 = vector.shape_cast %406 : vector<1xf32> to vector<1x1xf32>
    %c1_i32_95 = arith.constant 1 : i32
    %408 = vector.broadcast %c1_i32_95 : i32 to vector<3x1xi32>
    %409 = arith.cmpi eq, %282, %408 : vector<3x1xi32>
    %410 = vector.shape_cast %391 : vector<1x1xf32> to vector<1x1xf32>
    %411 = vector.broadcast %410 : vector<1x1xf32> to vector<3x1xf32>
    %412 = arith.select %409, %411, %380 : vector<3x1xi1>, vector<3x1xf32>
    %c1_i32_96 = arith.constant 1 : i32
    %413 = vector.broadcast %c1_i32_96 : i32 to vector<3x1xi32>
    %414 = arith.cmpi eq, %282, %413 : vector<3x1xi32>
    %415 = vector.shape_cast %407 : vector<1x1xf32> to vector<1x1xf32>
    %416 = vector.broadcast %415 : vector<1x1xf32> to vector<3x1xf32>
    %417 = arith.select %414, %416, %385 : vector<3x1xi1>, vector<3x1xf32>
    %cst_97 = arith.constant -1.000000e+30 : f32
    %418 = vector.broadcast %cst_97 : f32 to vector<1x32xf32>
    %419 = arith.select %401, %418, %387 : vector<1x32xi1>, vector<1x32xf32>
    %cst_98 = arith.constant dense<0xFF800000> : vector<1xf32>
    %420 = vector.multi_reduction <maximumf>, %419, %cst_98 [1] : vector<1x32xf32> to vector<1xf32>
    %421 = vector.shape_cast %420 : vector<1xf32> to vector<1x1xf32>
    %cst_99 = arith.constant dense<0xFF800000> : vector<1xf32>
    %422 = vector.multi_reduction <maximumf>, %421, %cst_99 [0] : vector<1x1xf32> to vector<1xf32>
    %423 = vector.shape_cast %422 : vector<1xf32> to vector<1x1xf32>
    %424 = vector.broadcast %423 : vector<1x1xf32> to vector<1x32xf32>
    %425 = arith.cmpf oeq, %419, %424 : vector<1x32xf32>
    %cst_100 = arith.constant 3.200000e+01 : f32
    %426 = vector.broadcast %cst_100 : f32 to vector<1x32xf32>
    %427 = arith.select %425, %353, %426 : vector<1x32xi1>, vector<1x32xf32>
    %cst_101 = arith.constant dense<0x7F800000> : vector<1xf32>
    %428 = vector.multi_reduction <minimumf>, %427, %cst_101 [1] : vector<1x32xf32> to vector<1xf32>
    %429 = vector.shape_cast %428 : vector<1xf32> to vector<1x1xf32>
    %cst_102 = arith.constant dense<0x7F800000> : vector<1xf32>
    %430 = vector.multi_reduction <minimumf>, %429, %cst_102 [0] : vector<1x1xf32> to vector<1xf32>
    %431 = vector.shape_cast %430 : vector<1xf32> to vector<1x1xf32>
    %432 = vector.broadcast %431 : vector<1x1xf32> to vector<1x32xf32>
    %433 = arith.cmpf oeq, %353, %432 : vector<1x32xf32>
    %cst_103 = arith.constant 0.000000e+00 : f32
    %434 = vector.broadcast %cst_103 : f32 to vector<1x32xf32>
    %435 = arith.select %433, %348, %434 : vector<1x32xi1>, vector<1x32xf32>
    %cst_104 = arith.constant dense<0.000000e+00> : vector<1xf32>
    %436 = vector.multi_reduction <add>, %435, %cst_104 [1] : vector<1x32xf32> to vector<1xf32>
    %437 = vector.shape_cast %436 : vector<1xf32> to vector<1x1xf32>
    %cst_105 = arith.constant dense<0.000000e+00> : vector<1xf32>
    %438 = vector.multi_reduction <add>, %437, %cst_105 [0] : vector<1x1xf32> to vector<1xf32>
    %439 = vector.shape_cast %438 : vector<1xf32> to vector<1x1xf32>
    %c2_i32_106 = arith.constant 2 : i32
    %440 = vector.broadcast %c2_i32_106 : i32 to vector<3x1xi32>
    %441 = arith.cmpi eq, %282, %440 : vector<3x1xi32>
    %442 = vector.shape_cast %423 : vector<1x1xf32> to vector<1x1xf32>
    %443 = vector.broadcast %442 : vector<1x1xf32> to vector<3x1xf32>
    %444 = arith.select %441, %443, %412 : vector<3x1xi1>, vector<3x1xf32>
    %c2_i32_107 = arith.constant 2 : i32
    %445 = vector.broadcast %c2_i32_107 : i32 to vector<3x1xi32>
    %446 = arith.cmpi eq, %282, %445 : vector<3x1xi32>
    %447 = vector.shape_cast %439 : vector<1x1xf32> to vector<1x1xf32>
    %448 = vector.broadcast %447 : vector<1x1xf32> to vector<3x1xf32>
    %449 = arith.select %446, %448, %417 : vector<3x1xi1>, vector<3x1xf32>
    %cst_108 = arith.constant 0.000000e+00 : f32
    %450 = vector.broadcast %cst_108 : f32 to vector<3x32xf32>
    %451 = vector.broadcast %318 : vector<1x32xf32> to vector<3x32xf32>
    %452 = arith.addf %450, %451 : vector<3x32xf32>
    %cst_109 = arith.constant 0.000000e+00 : f32
    %453 = vector.broadcast %cst_109 : f32 to vector<3x32xf32>
    %454 = vector.broadcast %316 : vector<1x32xf32> to vector<3x32xf32>
    %455 = arith.addf %453, %454 : vector<3x32xf32>
    %456 = tpu.iota {dimensions = array<i32: 1>} : vector<3x128xi32>
    %c0_i32_110 = arith.constant 0 : i32
    %457 = vector.broadcast %c0_i32_110 : i32 to vector<3x128xi32>
    %458 = arith.cmpi eq, %456, %457 : vector<3x128xi32>
    %cst_111 = arith.constant 0.000000e+00 : f32
    %459 = vector.broadcast %2 : f32 to vector<3x128xf32>
    %460 = vector.broadcast %cst_111 : f32 to vector<3x128xf32>
    %461 = arith.select %458, %459, %460 : vector<3x128xi1>, vector<3x128xf32>
    %462 = tpu.iota {dimensions = array<i32: 1>} : vector<3x3xi32>
    %463 = arith.sitofp %462 : vector<3x3xi32> to vector<3x3xf32>
    %464 = tpu.iota {dimensions = array<i32: 1>} : vector<3x32xi32>
    %465 = arith.sitofp %464 : vector<3x32xi32> to vector<3x32xf32>
    %466 = vector.broadcast %449 : vector<3x1xf32> to vector<3x32xf32>
    %467 = arith.cmpf oeq, %466, %465 : vector<3x32xf32>
    %468 = arith.extui %467 : vector<3x32xi1> to vector<3x32xi32>
    %469 = arith.sitofp %468 : vector<3x32xi32> to vector<3x32xf32>
    %470 = tpu.concatenate %469, %452 in 1 : vector<3x32xf32>, vector<3x32xf32> -> vector<3x64xf32>
    %cst_112 = arith.constant dense<0.000000e+00> : vector<3x128xf32>
    %471 = tpu.matmul %470, %278, %cst_112 {dimension_numbers = #tpu.dot_dimension_numbers<[1], [0], [0], [1], [0, 0, 1, 1], [], []>} : vector<3x64xf32>, vector<64x128xf32>, vector<3x128xf32> -> vector<3x128xf32>
    %472 = vector.extract_strided_slice %471 {offsets = [0, 0], sizes = [3, 32], strides = [1, 1]} : vector<3x128xf32> to vector<3x32xf32>
    %473 = arith.negf %472 : vector<3x32xf32>
    %474 = math.exp %473 : vector<3x32xf32>
    %cst_113 = arith.constant 1.000000e+00 : f32
    %475 = vector.broadcast %cst_113 : f32 to vector<3x32xf32>
    %476 = arith.addf %475, %474 : vector<3x32xf32>
    %477 = arith.divf %475, %476 : vector<3x32xf32>
    %478 = vector.extract_strided_slice %471 {offsets = [0, 32], sizes = [3, 32], strides = [1, 1]} : vector<3x128xf32> to vector<3x32xf32>
    %479 = arith.negf %478 : vector<3x32xf32>
    %480 = math.exp %479 : vector<3x32xf32>
    %cst_114 = arith.constant 1.000000e+00 : f32
    %481 = vector.broadcast %cst_114 : f32 to vector<3x32xf32>
    %482 = arith.addf %481, %480 : vector<3x32xf32>
    %483 = arith.divf %481, %482 : vector<3x32xf32>
    %484 = vector.extract_strided_slice %471 {offsets = [0, 64], sizes = [3, 32], strides = [1, 1]} : vector<3x128xf32> to vector<3x32xf32>
    %485 = math.tanh %484 : vector<3x32xf32>
    %486 = vector.extract_strided_slice %471 {offsets = [0, 96], sizes = [3, 32], strides = [1, 1]} : vector<3x128xf32> to vector<3x32xf32>
    %487 = arith.negf %486 : vector<3x32xf32>
    %488 = math.exp %487 : vector<3x32xf32>
    %cst_115 = arith.constant 1.000000e+00 : f32
    %489 = vector.broadcast %cst_115 : f32 to vector<3x32xf32>
    %490 = arith.addf %489, %488 : vector<3x32xf32>
    %491 = arith.divf %489, %490 : vector<3x32xf32>
    %492 = arith.mulf %483, %455 : vector<3x32xf32>
    %493 = arith.mulf %477, %485 : vector<3x32xf32>
    %494 = arith.addf %492, %493 : vector<3x32xf32>
    %495 = math.tanh %494 : vector<3x32xf32>
    %496 = arith.mulf %491, %495 : vector<3x32xf32>
    %cst_116 = arith.constant dense<0.000000e+00> : vector<3x8xf32>
    %497 = tpu.matmul %496, %277, %cst_116 {dimension_numbers = #tpu.dot_dimension_numbers<[1], [1], [0], [0], [0, 0, 1, 0], [], []>} : vector<3x32xf32>, vector<8x32xf32>, vector<3x8xf32> -> vector<3x8xf32>
    %cst_117 = arith.constant dense<0xFF800000> : vector<3xf32>
    %498 = vector.multi_reduction <maximumf>, %497, %cst_117 [1] : vector<3x8xf32> to vector<3xf32>
    %499 = vector.shape_cast %498 : vector<3xf32> to vector<3x1xf32>
    %500 = vector.broadcast %499 : vector<3x1xf32> to vector<3x8xf32>
    %501 = arith.subf %497, %500 : vector<3x8xf32>
    %502 = math.exp %501 : vector<3x8xf32>
    %cst_118 = arith.constant dense<0.000000e+00> : vector<3xf32>
    %503 = vector.multi_reduction <add>, %502, %cst_118 [1] : vector<3x8xf32> to vector<3xf32>
    %504 = vector.shape_cast %503 : vector<3xf32> to vector<3x1xf32>
    %505 = tpu.reciprocal %504 {approx = true} : vector<3x1xf32> -> vector<3x1xf32>
    %506 = vector.broadcast %505 : vector<3x1xf32> to vector<3x8xf32>
    %507 = arith.mulf %502, %506 : vector<3x8xf32>
    %cst_119 = arith.constant dense<0.000000e+00> : vector<3x32xf32>
    %508 = tpu.matmul %507, %277, %cst_119 {dimension_numbers = #tpu.dot_dimension_numbers<[1], [0], [0], [1], [0, 0, 1, 1], [], []>} : vector<3x8xf32>, vector<8x32xf32>, vector<3x32xf32> -> vector<3x32xf32>
    %509 = tpu.concatenate %496, %508 in 1 : vector<3x32xf32>, vector<3x32xf32> -> vector<3x64xf32>
    %cst_120 = arith.constant dense<0.000000e+00> : vector<3x32xf32>
    %510 = tpu.matmul %509, %279, %cst_120 {dimension_numbers = #tpu.dot_dimension_numbers<[1], [0], [0], [1], [0, 0, 1, 1], [], []>} : vector<3x64xf32>, vector<64x32xf32>, vector<3x32xf32> -> vector<3x32xf32>
    %511 = math.tanh %510 : vector<3x32xf32>
    %cst_121 = arith.constant dense<0.000000e+00> : vector<3x32xf32>
    %512 = tpu.matmul %511, %280, %cst_121 {dimension_numbers = #tpu.dot_dimension_numbers<[1], [0], [0], [1], [0, 0, 1, 1], [], []>} : vector<3x32xf32>, vector<32x32xf32>, vector<3x32xf32> -> vector<3x32xf32>
    %513 = vector.broadcast %281 : vector<1x32xf32> to vector<3x32xf32>
    %514 = arith.addf %512, %513 : vector<3x32xf32>
    %cst_122 = arith.constant dense<0xFF800000> : vector<3xf32>
    %515 = vector.multi_reduction <maximumf>, %514, %cst_122 [1] : vector<3x32xf32> to vector<3xf32>
    %516 = vector.shape_cast %515 : vector<3xf32> to vector<3x1xf32>
    %517 = vector.broadcast %516 : vector<3x1xf32> to vector<3x32xf32>
    %518 = arith.subf %514, %517 : vector<3x32xf32>
    %519 = math.exp %518 : vector<3x32xf32>
    %cst_123 = arith.constant dense<0.000000e+00> : vector<3xf32>
    %520 = vector.multi_reduction <add>, %519, %cst_123 [1] : vector<3x32xf32> to vector<3xf32>
    %521 = vector.shape_cast %520 : vector<3xf32> to vector<3x1xf32>
    %522 = math.log %521 : vector<3x1xf32>
    %523 = arith.addf %522, %516 : vector<3x1xf32>
    %524 = vector.broadcast %523 : vector<3x1xf32> to vector<3x32xf32>
    %525 = arith.subf %514, %524 : vector<3x32xf32>
    %526 = vector.broadcast %444 : vector<3x1xf32> to vector<3x32xf32>
    %527 = arith.addf %525, %526 : vector<3x32xf32>
    %528 = tpu.iota {dimensions = array<i32: 1>} : vector<3x32xi32>
    %529 = arith.sitofp %528 : vector<3x32xi32> to vector<3x32xf32>
    %530 = tpu.iota {dimensions = array<i32: 0>} : vector<3x32xi32>
    %531 = arith.sitofp %530 : vector<3x32xi32> to vector<3x32xf32>
    %cst_124 = arith.constant 3.200000e+01 : f32
    %532 = vector.broadcast %cst_124 : f32 to vector<3x32xf32>
    %533 = arith.mulf %531, %532 : vector<3x32xf32>
    %534 = arith.addf %533, %529 : vector<3x32xf32>
    %cst_125 = arith.constant 0.000000e+00 : f32
    %535 = vector.broadcast %cst_125 : f32 to vector<3x1xf32>
    %cst_126 = arith.constant 0.000000e+00 : f32
    %536 = vector.broadcast %cst_126 : f32 to vector<3x1xf32>
    %cst_127 = arith.constant 0.000000e+00 : f32
    %537 = vector.broadcast %cst_127 : f32 to vector<3x1xf32>
    %cst_128 = arith.constant dense<0xFF800000> : vector<3xf32>
    %538 = vector.multi_reduction <maximumf>, %527, %cst_128 [1] : vector<3x32xf32> to vector<3xf32>
    %539 = vector.shape_cast %538 : vector<3xf32> to vector<3x1xf32>
    %cst_129 = arith.constant dense<0xFF800000> : vector<1xf32>
    %540 = vector.multi_reduction <maximumf>, %539, %cst_129 [0] : vector<3x1xf32> to vector<1xf32>
    %541 = vector.shape_cast %540 : vector<1xf32> to vector<1x1xf32>
    %542 = vector.broadcast %541 : vector<1x1xf32> to vector<3x32xf32>
    %543 = arith.cmpf oeq, %527, %542 : vector<3x32xf32>
    %cst_130 = arith.constant 9.600000e+01 : f32
    %544 = vector.broadcast %cst_130 : f32 to vector<3x32xf32>
    %545 = arith.select %543, %534, %544 : vector<3x32xi1>, vector<3x32xf32>
    %cst_131 = arith.constant dense<0x7F800000> : vector<3xf32>
    %546 = vector.multi_reduction <minimumf>, %545, %cst_131 [1] : vector<3x32xf32> to vector<3xf32>
    %547 = vector.shape_cast %546 : vector<3xf32> to vector<3x1xf32>
    %cst_132 = arith.constant dense<0x7F800000> : vector<1xf32>
    %548 = vector.multi_reduction <minimumf>, %547, %cst_132 [0] : vector<3x1xf32> to vector<1xf32>
    %549 = vector.shape_cast %548 : vector<1xf32> to vector<1x1xf32>
    %550 = vector.broadcast %549 : vector<1x1xf32> to vector<3x32xf32>
    %551 = arith.cmpf oeq, %534, %550 : vector<3x32xf32>
    %cst_133 = arith.constant 0.000000e+00 : f32
    %552 = vector.broadcast %cst_133 : f32 to vector<3x32xf32>
    %553 = arith.select %551, %529, %552 : vector<3x32xi1>, vector<3x32xf32>
    %cst_134 = arith.constant dense<0.000000e+00> : vector<3xf32>
    %554 = vector.multi_reduction <add>, %553, %cst_134 [1] : vector<3x32xf32> to vector<3xf32>
    %555 = vector.shape_cast %554 : vector<3xf32> to vector<3x1xf32>
    %cst_135 = arith.constant dense<0.000000e+00> : vector<1xf32>
    %556 = vector.multi_reduction <add>, %555, %cst_135 [0] : vector<3x1xf32> to vector<1xf32>
    %557 = vector.shape_cast %556 : vector<1xf32> to vector<1x1xf32>
    %cst_136 = arith.constant 0.000000e+00 : f32
    %558 = vector.broadcast %cst_136 : f32 to vector<3x32xf32>
    %559 = arith.select %551, %531, %558 : vector<3x32xi1>, vector<3x32xf32>
    %cst_137 = arith.constant dense<0.000000e+00> : vector<3xf32>
    %560 = vector.multi_reduction <add>, %559, %cst_137 [1] : vector<3x32xf32> to vector<3xf32>
    %561 = vector.shape_cast %560 : vector<3xf32> to vector<3x1xf32>
    %cst_138 = arith.constant dense<0.000000e+00> : vector<1xf32>
    %562 = vector.multi_reduction <add>, %561, %cst_138 [0] : vector<3x1xf32> to vector<1xf32>
    %563 = vector.shape_cast %562 : vector<1xf32> to vector<1x1xf32>
    %c0_i32_139 = arith.constant 0 : i32
    %564 = vector.broadcast %c0_i32_139 : i32 to vector<3x1xi32>
    %565 = arith.cmpi eq, %282, %564 : vector<3x1xi32>
    %566 = vector.shape_cast %541 : vector<1x1xf32> to vector<1x1xf32>
    %567 = vector.broadcast %566 : vector<1x1xf32> to vector<3x1xf32>
    %568 = arith.select %565, %567, %535 : vector<3x1xi1>, vector<3x1xf32>
    %c0_i32_140 = arith.constant 0 : i32
    %569 = vector.broadcast %c0_i32_140 : i32 to vector<3x1xi32>
    %570 = arith.cmpi eq, %282, %569 : vector<3x1xi32>
    %571 = vector.shape_cast %557 : vector<1x1xf32> to vector<1x1xf32>
    %572 = vector.broadcast %571 : vector<1x1xf32> to vector<3x1xf32>
    %573 = arith.select %570, %572, %536 : vector<3x1xi1>, vector<3x1xf32>
    %c0_i32_141 = arith.constant 0 : i32
    %574 = vector.broadcast %c0_i32_141 : i32 to vector<3x1xi32>
    %575 = arith.cmpi eq, %282, %574 : vector<3x1xi32>
    %576 = vector.shape_cast %563 : vector<1x1xf32> to vector<1x1xf32>
    %577 = vector.broadcast %576 : vector<1x1xf32> to vector<3x1xf32>
    %578 = arith.select %575, %577, %537 : vector<3x1xi1>, vector<3x1xf32>
    %cst_142 = arith.constant -1.000000e+30 : f32
    %579 = vector.broadcast %cst_142 : f32 to vector<3x32xf32>
    %580 = arith.select %551, %579, %527 : vector<3x32xi1>, vector<3x32xf32>
    %cst_143 = arith.constant dense<0xFF800000> : vector<3xf32>
    %581 = vector.multi_reduction <maximumf>, %580, %cst_143 [1] : vector<3x32xf32> to vector<3xf32>
    %582 = vector.shape_cast %581 : vector<3xf32> to vector<3x1xf32>
    %cst_144 = arith.constant dense<0xFF800000> : vector<1xf32>
    %583 = vector.multi_reduction <maximumf>, %582, %cst_144 [0] : vector<3x1xf32> to vector<1xf32>
    %584 = vector.shape_cast %583 : vector<1xf32> to vector<1x1xf32>
    %585 = vector.broadcast %584 : vector<1x1xf32> to vector<3x32xf32>
    %586 = arith.cmpf oeq, %580, %585 : vector<3x32xf32>
    %cst_145 = arith.constant 9.600000e+01 : f32
    %587 = vector.broadcast %cst_145 : f32 to vector<3x32xf32>
    %588 = arith.select %586, %534, %587 : vector<3x32xi1>, vector<3x32xf32>
    %cst_146 = arith.constant dense<0x7F800000> : vector<3xf32>
    %589 = vector.multi_reduction <minimumf>, %588, %cst_146 [1] : vector<3x32xf32> to vector<3xf32>
    %590 = vector.shape_cast %589 : vector<3xf32> to vector<3x1xf32>
    %cst_147 = arith.constant dense<0x7F800000> : vector<1xf32>
    %591 = vector.multi_reduction <minimumf>, %590, %cst_147 [0] : vector<3x1xf32> to vector<1xf32>
    %592 = vector.shape_cast %591 : vector<1xf32> to vector<1x1xf32>
    %593 = vector.broadcast %592 : vector<1x1xf32> to vector<3x32xf32>
    %594 = arith.cmpf oeq, %534, %593 : vector<3x32xf32>
    %cst_148 = arith.constant 0.000000e+00 : f32
    %595 = vector.broadcast %cst_148 : f32 to vector<3x32xf32>
    %596 = arith.select %594, %529, %595 : vector<3x32xi1>, vector<3x32xf32>
    %cst_149 = arith.constant dense<0.000000e+00> : vector<3xf32>
    %597 = vector.multi_reduction <add>, %596, %cst_149 [1] : vector<3x32xf32> to vector<3xf32>
    %598 = vector.shape_cast %597 : vector<3xf32> to vector<3x1xf32>
    %cst_150 = arith.constant dense<0.000000e+00> : vector<1xf32>
    %599 = vector.multi_reduction <add>, %598, %cst_150 [0] : vector<3x1xf32> to vector<1xf32>
    %600 = vector.shape_cast %599 : vector<1xf32> to vector<1x1xf32>
    %cst_151 = arith.constant 0.000000e+00 : f32
    %601 = vector.broadcast %cst_151 : f32 to vector<3x32xf32>
    %602 = arith.select %594, %531, %601 : vector<3x32xi1>, vector<3x32xf32>
    %cst_152 = arith.constant dense<0.000000e+00> : vector<3xf32>
    %603 = vector.multi_reduction <add>, %602, %cst_152 [1] : vector<3x32xf32> to vector<3xf32>
    %604 = vector.shape_cast %603 : vector<3xf32> to vector<3x1xf32>
    %cst_153 = arith.constant dense<0.000000e+00> : vector<1xf32>
    %605 = vector.multi_reduction <add>, %604, %cst_153 [0] : vector<3x1xf32> to vector<1xf32>
    %606 = vector.shape_cast %605 : vector<1xf32> to vector<1x1xf32>
    %c1_i32_154 = arith.constant 1 : i32
    %607 = vector.broadcast %c1_i32_154 : i32 to vector<3x1xi32>
    %608 = arith.cmpi eq, %282, %607 : vector<3x1xi32>
    %609 = vector.shape_cast %584 : vector<1x1xf32> to vector<1x1xf32>
    %610 = vector.broadcast %609 : vector<1x1xf32> to vector<3x1xf32>
    %611 = arith.select %608, %610, %568 : vector<3x1xi1>, vector<3x1xf32>
    %c1_i32_155 = arith.constant 1 : i32
    %612 = vector.broadcast %c1_i32_155 : i32 to vector<3x1xi32>
    %613 = arith.cmpi eq, %282, %612 : vector<3x1xi32>
    %614 = vector.shape_cast %600 : vector<1x1xf32> to vector<1x1xf32>
    %615 = vector.broadcast %614 : vector<1x1xf32> to vector<3x1xf32>
    %616 = arith.select %613, %615, %573 : vector<3x1xi1>, vector<3x1xf32>
    %c1_i32_156 = arith.constant 1 : i32
    %617 = vector.broadcast %c1_i32_156 : i32 to vector<3x1xi32>
    %618 = arith.cmpi eq, %282, %617 : vector<3x1xi32>
    %619 = vector.shape_cast %606 : vector<1x1xf32> to vector<1x1xf32>
    %620 = vector.broadcast %619 : vector<1x1xf32> to vector<3x1xf32>
    %621 = arith.select %618, %620, %578 : vector<3x1xi1>, vector<3x1xf32>
    %cst_157 = arith.constant -1.000000e+30 : f32
    %622 = vector.broadcast %cst_157 : f32 to vector<3x32xf32>
    %623 = arith.select %594, %622, %580 : vector<3x32xi1>, vector<3x32xf32>
    %cst_158 = arith.constant dense<0xFF800000> : vector<3xf32>
    %624 = vector.multi_reduction <maximumf>, %623, %cst_158 [1] : vector<3x32xf32> to vector<3xf32>
    %625 = vector.shape_cast %624 : vector<3xf32> to vector<3x1xf32>
    %cst_159 = arith.constant dense<0xFF800000> : vector<1xf32>
    %626 = vector.multi_reduction <maximumf>, %625, %cst_159 [0] : vector<3x1xf32> to vector<1xf32>
    %627 = vector.shape_cast %626 : vector<1xf32> to vector<1x1xf32>
    %628 = vector.broadcast %627 : vector<1x1xf32> to vector<3x32xf32>
    %629 = arith.cmpf oeq, %623, %628 : vector<3x32xf32>
    %cst_160 = arith.constant 9.600000e+01 : f32
    %630 = vector.broadcast %cst_160 : f32 to vector<3x32xf32>
    %631 = arith.select %629, %534, %630 : vector<3x32xi1>, vector<3x32xf32>
    %cst_161 = arith.constant dense<0x7F800000> : vector<3xf32>
    %632 = vector.multi_reduction <minimumf>, %631, %cst_161 [1] : vector<3x32xf32> to vector<3xf32>
    %633 = vector.shape_cast %632 : vector<3xf32> to vector<3x1xf32>
    %cst_162 = arith.constant dense<0x7F800000> : vector<1xf32>
    %634 = vector.multi_reduction <minimumf>, %633, %cst_162 [0] : vector<3x1xf32> to vector<1xf32>
    %635 = vector.shape_cast %634 : vector<1xf32> to vector<1x1xf32>
    %636 = vector.broadcast %635 : vector<1x1xf32> to vector<3x32xf32>
    %637 = arith.cmpf oeq, %534, %636 : vector<3x32xf32>
    %cst_163 = arith.constant 0.000000e+00 : f32
    %638 = vector.broadcast %cst_163 : f32 to vector<3x32xf32>
    %639 = arith.select %637, %529, %638 : vector<3x32xi1>, vector<3x32xf32>
    %cst_164 = arith.constant dense<0.000000e+00> : vector<3xf32>
    %640 = vector.multi_reduction <add>, %639, %cst_164 [1] : vector<3x32xf32> to vector<3xf32>
    %641 = vector.shape_cast %640 : vector<3xf32> to vector<3x1xf32>
    %cst_165 = arith.constant dense<0.000000e+00> : vector<1xf32>
    %642 = vector.multi_reduction <add>, %641, %cst_165 [0] : vector<3x1xf32> to vector<1xf32>
    %643 = vector.shape_cast %642 : vector<1xf32> to vector<1x1xf32>
    %cst_166 = arith.constant 0.000000e+00 : f32
    %644 = vector.broadcast %cst_166 : f32 to vector<3x32xf32>
    %645 = arith.select %637, %531, %644 : vector<3x32xi1>, vector<3x32xf32>
    %cst_167 = arith.constant dense<0.000000e+00> : vector<3xf32>
    %646 = vector.multi_reduction <add>, %645, %cst_167 [1] : vector<3x32xf32> to vector<3xf32>
    %647 = vector.shape_cast %646 : vector<3xf32> to vector<3x1xf32>
    %cst_168 = arith.constant dense<0.000000e+00> : vector<1xf32>
    %648 = vector.multi_reduction <add>, %647, %cst_168 [0] : vector<3x1xf32> to vector<1xf32>
    %649 = vector.shape_cast %648 : vector<1xf32> to vector<1x1xf32>
    %c2_i32_169 = arith.constant 2 : i32
    %650 = vector.broadcast %c2_i32_169 : i32 to vector<3x1xi32>
    %651 = arith.cmpi eq, %282, %650 : vector<3x1xi32>
    %652 = vector.shape_cast %627 : vector<1x1xf32> to vector<1x1xf32>
    %653 = vector.broadcast %652 : vector<1x1xf32> to vector<3x1xf32>
    %654 = arith.select %651, %653, %611 : vector<3x1xi1>, vector<3x1xf32>
    %c2_i32_170 = arith.constant 2 : i32
    %655 = vector.broadcast %c2_i32_170 : i32 to vector<3x1xi32>
    %656 = arith.cmpi eq, %282, %655 : vector<3x1xi32>
    %657 = vector.shape_cast %643 : vector<1x1xf32> to vector<1x1xf32>
    %658 = vector.broadcast %657 : vector<1x1xf32> to vector<3x1xf32>
    %659 = arith.select %656, %658, %616 : vector<3x1xi1>, vector<3x1xf32>
    %c2_i32_171 = arith.constant 2 : i32
    %660 = vector.broadcast %c2_i32_171 : i32 to vector<3x1xi32>
    %661 = arith.cmpi eq, %282, %660 : vector<3x1xi32>
    %662 = vector.shape_cast %649 : vector<1x1xf32> to vector<1x1xf32>
    %663 = vector.broadcast %662 : vector<1x1xf32> to vector<3x1xf32>
    %664 = arith.select %661, %663, %621 : vector<3x1xi1>, vector<3x1xf32>
    %665 = vector.broadcast %664 : vector<3x1xf32> to vector<3x3xf32>
    %666 = arith.cmpf oeq, %665, %463 : vector<3x3xf32>
    %667 = arith.extui %666 : vector<3x3xi1> to vector<3x3xi32>
    %668 = arith.sitofp %667 : vector<3x3xi32> to vector<3x3xf32>
    %c1_i32_172 = arith.constant 1 : i32
    %669 = vector.broadcast %c1_i32_172 : i32 to vector<3x128xi32>
    %670 = arith.cmpi eq, %456, %669 : vector<3x128xi32>
    %671 = vector.shape_cast %449 : vector<3x1xf32> to vector<3x1xf32>
    %672 = vector.broadcast %671 : vector<3x1xf32> to vector<3x128xf32>
    %673 = arith.select %670, %672, %461 : vector<3x128xi1>, vector<3x128xf32>
    %cst_173 = arith.constant dense<0.000000e+00> : vector<3x128xf32>
    %674 = tpu.matmul %668, %673, %cst_173 {dimension_numbers = #tpu.dot_dimension_numbers<[1], [0], [0], [1], [0, 0, 1, 1], [], []>} : vector<3x3xf32>, vector<3x128xf32>, vector<3x128xf32> -> vector<3x128xf32>
    %cst_174 = arith.constant dense<0.000000e+00> : vector<3x32xf32>
    %675 = tpu.matmul %668, %496, %cst_174 {dimension_numbers = #tpu.dot_dimension_numbers<[1], [0], [0], [1], [0, 0, 1, 1], [], []>} : vector<3x3xf32>, vector<3x32xf32>, vector<3x32xf32> -> vector<3x32xf32>
    %cst_175 = arith.constant dense<0.000000e+00> : vector<3x32xf32>
    %676 = tpu.matmul %668, %494, %cst_175 {dimension_numbers = #tpu.dot_dimension_numbers<[1], [0], [0], [1], [0, 0, 1, 1], [], []>} : vector<3x3xf32>, vector<3x32xf32>, vector<3x32xf32> -> vector<3x32xf32>
    %677 = tpu.iota {dimensions = array<i32: 1>} : vector<3x32xi32>
    %678 = arith.sitofp %677 : vector<3x32xi32> to vector<3x32xf32>
    %679 = vector.broadcast %659 : vector<3x1xf32> to vector<3x32xf32>
    %680 = arith.cmpf oeq, %679, %678 : vector<3x32xf32>
    %681 = arith.extui %680 : vector<3x32xi1> to vector<3x32xi32>
    %682 = arith.sitofp %681 : vector<3x32xi32> to vector<3x32xf32>
    %683 = tpu.concatenate %682, %675 in 1 : vector<3x32xf32>, vector<3x32xf32> -> vector<3x64xf32>
    %cst_176 = arith.constant dense<0.000000e+00> : vector<3x128xf32>
    %684 = tpu.matmul %683, %278, %cst_176 {dimension_numbers = #tpu.dot_dimension_numbers<[1], [0], [0], [1], [0, 0, 1, 1], [], []>} : vector<3x64xf32>, vector<64x128xf32>, vector<3x128xf32> -> vector<3x128xf32>
    %685 = vector.extract_strided_slice %684 {offsets = [0, 0], sizes = [3, 32], strides = [1, 1]} : vector<3x128xf32> to vector<3x32xf32>
    %686 = arith.negf %685 : vector<3x32xf32>
    %687 = math.exp %686 : vector<3x32xf32>
    %cst_177 = arith.constant 1.000000e+00 : f32
    %688 = vector.broadcast %cst_177 : f32 to vector<3x32xf32>
    %689 = arith.addf %688, %687 : vector<3x32xf32>
    %690 = arith.divf %688, %689 : vector<3x32xf32>
    %691 = vector.extract_strided_slice %684 {offsets = [0, 32], sizes = [3, 32], strides = [1, 1]} : vector<3x128xf32> to vector<3x32xf32>
    %692 = arith.negf %691 : vector<3x32xf32>
    %693 = math.exp %692 : vector<3x32xf32>
    %cst_178 = arith.constant 1.000000e+00 : f32
    %694 = vector.broadcast %cst_178 : f32 to vector<3x32xf32>
    %695 = arith.addf %694, %693 : vector<3x32xf32>
    %696 = arith.divf %694, %695 : vector<3x32xf32>
    %697 = vector.extract_strided_slice %684 {offsets = [0, 64], sizes = [3, 32], strides = [1, 1]} : vector<3x128xf32> to vector<3x32xf32>
    %698 = math.tanh %697 : vector<3x32xf32>
    %699 = vector.extract_strided_slice %684 {offsets = [0, 96], sizes = [3, 32], strides = [1, 1]} : vector<3x128xf32> to vector<3x32xf32>
    %700 = arith.negf %699 : vector<3x32xf32>
    %701 = math.exp %700 : vector<3x32xf32>
    %cst_179 = arith.constant 1.000000e+00 : f32
    %702 = vector.broadcast %cst_179 : f32 to vector<3x32xf32>
    %703 = arith.addf %702, %701 : vector<3x32xf32>
    %704 = arith.divf %702, %703 : vector<3x32xf32>
    %705 = arith.mulf %696, %676 : vector<3x32xf32>
    %706 = arith.mulf %690, %698 : vector<3x32xf32>
    %707 = arith.addf %705, %706 : vector<3x32xf32>
    %708 = math.tanh %707 : vector<3x32xf32>
    %709 = arith.mulf %704, %708 : vector<3x32xf32>
    %cst_180 = arith.constant dense<0.000000e+00> : vector<3x8xf32>
    %710 = tpu.matmul %709, %277, %cst_180 {dimension_numbers = #tpu.dot_dimension_numbers<[1], [1], [0], [0], [0, 0, 1, 0], [], []>} : vector<3x32xf32>, vector<8x32xf32>, vector<3x8xf32> -> vector<3x8xf32>
    %cst_181 = arith.constant dense<0xFF800000> : vector<3xf32>
    %711 = vector.multi_reduction <maximumf>, %710, %cst_181 [1] : vector<3x8xf32> to vector<3xf32>
    %712 = vector.shape_cast %711 : vector<3xf32> to vector<3x1xf32>
    %713 = vector.broadcast %712 : vector<3x1xf32> to vector<3x8xf32>
    %714 = arith.subf %710, %713 : vector<3x8xf32>
    %715 = math.exp %714 : vector<3x8xf32>
    %cst_182 = arith.constant dense<0.000000e+00> : vector<3xf32>
    %716 = vector.multi_reduction <add>, %715, %cst_182 [1] : vector<3x8xf32> to vector<3xf32>
    %717 = vector.shape_cast %716 : vector<3xf32> to vector<3x1xf32>
    %718 = tpu.reciprocal %717 {approx = true} : vector<3x1xf32> -> vector<3x1xf32>
    %719 = vector.broadcast %718 : vector<3x1xf32> to vector<3x8xf32>
    %720 = arith.mulf %715, %719 : vector<3x8xf32>
    %cst_183 = arith.constant dense<0.000000e+00> : vector<3x32xf32>
    %721 = tpu.matmul %720, %277, %cst_183 {dimension_numbers = #tpu.dot_dimension_numbers<[1], [0], [0], [1], [0, 0, 1, 1], [], []>} : vector<3x8xf32>, vector<8x32xf32>, vector<3x32xf32> -> vector<3x32xf32>
    %722 = tpu.concatenate %709, %721 in 1 : vector<3x32xf32>, vector<3x32xf32> -> vector<3x64xf32>
    %cst_184 = arith.constant dense<0.000000e+00> : vector<3x32xf32>
    %723 = tpu.matmul %722, %279, %cst_184 {dimension_numbers = #tpu.dot_dimension_numbers<[1], [0], [0], [1], [0, 0, 1, 1], [], []>} : vector<3x64xf32>, vector<64x32xf32>, vector<3x32xf32> -> vector<3x32xf32>
    %724 = math.tanh %723 : vector<3x32xf32>
    %cst_185 = arith.constant dense<0.000000e+00> : vector<3x32xf32>
    %725 = tpu.matmul %724, %280, %cst_185 {dimension_numbers = #tpu.dot_dimension_numbers<[1], [0], [0], [1], [0, 0, 1, 1], [], []>} : vector<3x32xf32>, vector<32x32xf32>, vector<3x32xf32> -> vector<3x32xf32>
    %726 = vector.broadcast %281 : vector<1x32xf32> to vector<3x32xf32>
    %727 = arith.addf %725, %726 : vector<3x32xf32>
    %cst_186 = arith.constant dense<0xFF800000> : vector<3xf32>
    %728 = vector.multi_reduction <maximumf>, %727, %cst_186 [1] : vector<3x32xf32> to vector<3xf32>
    %729 = vector.shape_cast %728 : vector<3xf32> to vector<3x1xf32>
    %730 = vector.broadcast %729 : vector<3x1xf32> to vector<3x32xf32>
    %731 = arith.subf %727, %730 : vector<3x32xf32>
    %732 = math.exp %731 : vector<3x32xf32>
    %cst_187 = arith.constant dense<0.000000e+00> : vector<3xf32>
    %733 = vector.multi_reduction <add>, %732, %cst_187 [1] : vector<3x32xf32> to vector<3xf32>
    %734 = vector.shape_cast %733 : vector<3xf32> to vector<3x1xf32>
    %735 = math.log %734 : vector<3x1xf32>
    %736 = arith.addf %735, %729 : vector<3x1xf32>
    %737 = vector.broadcast %736 : vector<3x1xf32> to vector<3x32xf32>
    %738 = arith.subf %727, %737 : vector<3x32xf32>
    %739 = vector.broadcast %654 : vector<3x1xf32> to vector<3x32xf32>
    %740 = arith.addf %738, %739 : vector<3x32xf32>
    %741 = tpu.iota {dimensions = array<i32: 1>} : vector<3x32xi32>
    %742 = arith.sitofp %741 : vector<3x32xi32> to vector<3x32xf32>
    %743 = tpu.iota {dimensions = array<i32: 0>} : vector<3x32xi32>
    %744 = arith.sitofp %743 : vector<3x32xi32> to vector<3x32xf32>
    %cst_188 = arith.constant 3.200000e+01 : f32
    %745 = vector.broadcast %cst_188 : f32 to vector<3x32xf32>
    %746 = arith.mulf %744, %745 : vector<3x32xf32>
    %747 = arith.addf %746, %742 : vector<3x32xf32>
    %cst_189 = arith.constant 0.000000e+00 : f32
    %748 = vector.broadcast %cst_189 : f32 to vector<3x1xf32>
    %cst_190 = arith.constant 0.000000e+00 : f32
    %749 = vector.broadcast %cst_190 : f32 to vector<3x1xf32>
    %cst_191 = arith.constant 0.000000e+00 : f32
    %750 = vector.broadcast %cst_191 : f32 to vector<3x1xf32>
    %cst_192 = arith.constant dense<0xFF800000> : vector<3xf32>
    %751 = vector.multi_reduction <maximumf>, %740, %cst_192 [1] : vector<3x32xf32> to vector<3xf32>
    %752 = vector.shape_cast %751 : vector<3xf32> to vector<3x1xf32>
    %cst_193 = arith.constant dense<0xFF800000> : vector<1xf32>
    %753 = vector.multi_reduction <maximumf>, %752, %cst_193 [0] : vector<3x1xf32> to vector<1xf32>
    %754 = vector.shape_cast %753 : vector<1xf32> to vector<1x1xf32>
    %755 = vector.broadcast %754 : vector<1x1xf32> to vector<3x32xf32>
    %756 = arith.cmpf oeq, %740, %755 : vector<3x32xf32>
    %cst_194 = arith.constant 9.600000e+01 : f32
    %757 = vector.broadcast %cst_194 : f32 to vector<3x32xf32>
    %758 = arith.select %756, %747, %757 : vector<3x32xi1>, vector<3x32xf32>
    %cst_195 = arith.constant dense<0x7F800000> : vector<3xf32>
    %759 = vector.multi_reduction <minimumf>, %758, %cst_195 [1] : vector<3x32xf32> to vector<3xf32>
    %760 = vector.shape_cast %759 : vector<3xf32> to vector<3x1xf32>
    %cst_196 = arith.constant dense<0x7F800000> : vector<1xf32>
    %761 = vector.multi_reduction <minimumf>, %760, %cst_196 [0] : vector<3x1xf32> to vector<1xf32>
    %762 = vector.shape_cast %761 : vector<1xf32> to vector<1x1xf32>
    %763 = vector.broadcast %762 : vector<1x1xf32> to vector<3x32xf32>
    %764 = arith.cmpf oeq, %747, %763 : vector<3x32xf32>
    %cst_197 = arith.constant 0.000000e+00 : f32
    %765 = vector.broadcast %cst_197 : f32 to vector<3x32xf32>
    %766 = arith.select %764, %742, %765 : vector<3x32xi1>, vector<3x32xf32>
    %cst_198 = arith.constant dense<0.000000e+00> : vector<3xf32>
    %767 = vector.multi_reduction <add>, %766, %cst_198 [1] : vector<3x32xf32> to vector<3xf32>
    %768 = vector.shape_cast %767 : vector<3xf32> to vector<3x1xf32>
    %cst_199 = arith.constant dense<0.000000e+00> : vector<1xf32>
    %769 = vector.multi_reduction <add>, %768, %cst_199 [0] : vector<3x1xf32> to vector<1xf32>
    %770 = vector.shape_cast %769 : vector<1xf32> to vector<1x1xf32>
    %cst_200 = arith.constant 0.000000e+00 : f32
    %771 = vector.broadcast %cst_200 : f32 to vector<3x32xf32>
    %772 = arith.select %764, %744, %771 : vector<3x32xi1>, vector<3x32xf32>
    %cst_201 = arith.constant dense<0.000000e+00> : vector<3xf32>
    %773 = vector.multi_reduction <add>, %772, %cst_201 [1] : vector<3x32xf32> to vector<3xf32>
    %774 = vector.shape_cast %773 : vector<3xf32> to vector<3x1xf32>
    %cst_202 = arith.constant dense<0.000000e+00> : vector<1xf32>
    %775 = vector.multi_reduction <add>, %774, %cst_202 [0] : vector<3x1xf32> to vector<1xf32>
    %776 = vector.shape_cast %775 : vector<1xf32> to vector<1x1xf32>
    %c0_i32_203 = arith.constant 0 : i32
    %777 = vector.broadcast %c0_i32_203 : i32 to vector<3x1xi32>
    %778 = arith.cmpi eq, %282, %777 : vector<3x1xi32>
    %779 = vector.shape_cast %754 : vector<1x1xf32> to vector<1x1xf32>
    %780 = vector.broadcast %779 : vector<1x1xf32> to vector<3x1xf32>
    %781 = arith.select %778, %780, %748 : vector<3x1xi1>, vector<3x1xf32>
    %c0_i32_204 = arith.constant 0 : i32
    %782 = vector.broadcast %c0_i32_204 : i32 to vector<3x1xi32>
    %783 = arith.cmpi eq, %282, %782 : vector<3x1xi32>
    %784 = vector.shape_cast %770 : vector<1x1xf32> to vector<1x1xf32>
    %785 = vector.broadcast %784 : vector<1x1xf32> to vector<3x1xf32>
    %786 = arith.select %783, %785, %749 : vector<3x1xi1>, vector<3x1xf32>
    %c0_i32_205 = arith.constant 0 : i32
    %787 = vector.broadcast %c0_i32_205 : i32 to vector<3x1xi32>
    %788 = arith.cmpi eq, %282, %787 : vector<3x1xi32>
    %789 = vector.shape_cast %776 : vector<1x1xf32> to vector<1x1xf32>
    %790 = vector.broadcast %789 : vector<1x1xf32> to vector<3x1xf32>
    %791 = arith.select %788, %790, %750 : vector<3x1xi1>, vector<3x1xf32>
    %cst_206 = arith.constant -1.000000e+30 : f32
    %792 = vector.broadcast %cst_206 : f32 to vector<3x32xf32>
    %793 = arith.select %764, %792, %740 : vector<3x32xi1>, vector<3x32xf32>
    %cst_207 = arith.constant dense<0xFF800000> : vector<3xf32>
    %794 = vector.multi_reduction <maximumf>, %793, %cst_207 [1] : vector<3x32xf32> to vector<3xf32>
    %795 = vector.shape_cast %794 : vector<3xf32> to vector<3x1xf32>
    %cst_208 = arith.constant dense<0xFF800000> : vector<1xf32>
    %796 = vector.multi_reduction <maximumf>, %795, %cst_208 [0] : vector<3x1xf32> to vector<1xf32>
    %797 = vector.shape_cast %796 : vector<1xf32> to vector<1x1xf32>
    %798 = vector.broadcast %797 : vector<1x1xf32> to vector<3x32xf32>
    %799 = arith.cmpf oeq, %793, %798 : vector<3x32xf32>
    %cst_209 = arith.constant 9.600000e+01 : f32
    %800 = vector.broadcast %cst_209 : f32 to vector<3x32xf32>
    %801 = arith.select %799, %747, %800 : vector<3x32xi1>, vector<3x32xf32>
    %cst_210 = arith.constant dense<0x7F800000> : vector<3xf32>
    %802 = vector.multi_reduction <minimumf>, %801, %cst_210 [1] : vector<3x32xf32> to vector<3xf32>
    %803 = vector.shape_cast %802 : vector<3xf32> to vector<3x1xf32>
    %cst_211 = arith.constant dense<0x7F800000> : vector<1xf32>
    %804 = vector.multi_reduction <minimumf>, %803, %cst_211 [0] : vector<3x1xf32> to vector<1xf32>
    %805 = vector.shape_cast %804 : vector<1xf32> to vector<1x1xf32>
    %806 = vector.broadcast %805 : vector<1x1xf32> to vector<3x32xf32>
    %807 = arith.cmpf oeq, %747, %806 : vector<3x32xf32>
    %cst_212 = arith.constant 0.000000e+00 : f32
    %808 = vector.broadcast %cst_212 : f32 to vector<3x32xf32>
    %809 = arith.select %807, %742, %808 : vector<3x32xi1>, vector<3x32xf32>
    %cst_213 = arith.constant dense<0.000000e+00> : vector<3xf32>
    %810 = vector.multi_reduction <add>, %809, %cst_213 [1] : vector<3x32xf32> to vector<3xf32>
    %811 = vector.shape_cast %810 : vector<3xf32> to vector<3x1xf32>
    %cst_214 = arith.constant dense<0.000000e+00> : vector<1xf32>
    %812 = vector.multi_reduction <add>, %811, %cst_214 [0] : vector<3x1xf32> to vector<1xf32>
    %813 = vector.shape_cast %812 : vector<1xf32> to vector<1x1xf32>
    %cst_215 = arith.constant 0.000000e+00 : f32
    %814 = vector.broadcast %cst_215 : f32 to vector<3x32xf32>
    %815 = arith.select %807, %744, %814 : vector<3x32xi1>, vector<3x32xf32>
    %cst_216 = arith.constant dense<0.000000e+00> : vector<3xf32>
    %816 = vector.multi_reduction <add>, %815, %cst_216 [1] : vector<3x32xf32> to vector<3xf32>
    %817 = vector.shape_cast %816 : vector<3xf32> to vector<3x1xf32>
    %cst_217 = arith.constant dense<0.000000e+00> : vector<1xf32>
    %818 = vector.multi_reduction <add>, %817, %cst_217 [0] : vector<3x1xf32> to vector<1xf32>
    %819 = vector.shape_cast %818 : vector<1xf32> to vector<1x1xf32>
    %c1_i32_218 = arith.constant 1 : i32
    %820 = vector.broadcast %c1_i32_218 : i32 to vector<3x1xi32>
    %821 = arith.cmpi eq, %282, %820 : vector<3x1xi32>
    %822 = vector.shape_cast %797 : vector<1x1xf32> to vector<1x1xf32>
    %823 = vector.broadcast %822 : vector<1x1xf32> to vector<3x1xf32>
    %824 = arith.select %821, %823, %781 : vector<3x1xi1>, vector<3x1xf32>
    %c1_i32_219 = arith.constant 1 : i32
    %825 = vector.broadcast %c1_i32_219 : i32 to vector<3x1xi32>
    %826 = arith.cmpi eq, %282, %825 : vector<3x1xi32>
    %827 = vector.shape_cast %813 : vector<1x1xf32> to vector<1x1xf32>
    %828 = vector.broadcast %827 : vector<1x1xf32> to vector<3x1xf32>
    %829 = arith.select %826, %828, %786 : vector<3x1xi1>, vector<3x1xf32>
    %c1_i32_220 = arith.constant 1 : i32
    %830 = vector.broadcast %c1_i32_220 : i32 to vector<3x1xi32>
    %831 = arith.cmpi eq, %282, %830 : vector<3x1xi32>
    %832 = vector.shape_cast %819 : vector<1x1xf32> to vector<1x1xf32>
    %833 = vector.broadcast %832 : vector<1x1xf32> to vector<3x1xf32>
    %834 = arith.select %831, %833, %791 : vector<3x1xi1>, vector<3x1xf32>
    %cst_221 = arith.constant -1.000000e+30 : f32
    %835 = vector.broadcast %cst_221 : f32 to vector<3x32xf32>
    %836 = arith.select %807, %835, %793 : vector<3x32xi1>, vector<3x32xf32>
    %cst_222 = arith.constant dense<0xFF800000> : vector<3xf32>
    %837 = vector.multi_reduction <maximumf>, %836, %cst_222 [1] : vector<3x32xf32> to vector<3xf32>
    %838 = vector.shape_cast %837 : vector<3xf32> to vector<3x1xf32>
    %cst_223 = arith.constant dense<0xFF800000> : vector<1xf32>
    %839 = vector.multi_reduction <maximumf>, %838, %cst_223 [0] : vector<3x1xf32> to vector<1xf32>
    %840 = vector.shape_cast %839 : vector<1xf32> to vector<1x1xf32>
    %841 = vector.broadcast %840 : vector<1x1xf32> to vector<3x32xf32>
    %842 = arith.cmpf oeq, %836, %841 : vector<3x32xf32>
    %cst_224 = arith.constant 9.600000e+01 : f32
    %843 = vector.broadcast %cst_224 : f32 to vector<3x32xf32>
    %844 = arith.select %842, %747, %843 : vector<3x32xi1>, vector<3x32xf32>
    %cst_225 = arith.constant dense<0x7F800000> : vector<3xf32>
    %845 = vector.multi_reduction <minimumf>, %844, %cst_225 [1] : vector<3x32xf32> to vector<3xf32>
    %846 = vector.shape_cast %845 : vector<3xf32> to vector<3x1xf32>
    %cst_226 = arith.constant dense<0x7F800000> : vector<1xf32>
    %847 = vector.multi_reduction <minimumf>, %846, %cst_226 [0] : vector<3x1xf32> to vector<1xf32>
    %848 = vector.shape_cast %847 : vector<1xf32> to vector<1x1xf32>
    %849 = vector.broadcast %848 : vector<1x1xf32> to vector<3x32xf32>
    %850 = arith.cmpf oeq, %747, %849 : vector<3x32xf32>
    %cst_227 = arith.constant 0.000000e+00 : f32
    %851 = vector.broadcast %cst_227 : f32 to vector<3x32xf32>
    %852 = arith.select %850, %742, %851 : vector<3x32xi1>, vector<3x32xf32>
    %cst_228 = arith.constant dense<0.000000e+00> : vector<3xf32>
    %853 = vector.multi_reduction <add>, %852, %cst_228 [1] : vector<3x32xf32> to vector<3xf32>
    %854 = vector.shape_cast %853 : vector<3xf32> to vector<3x1xf32>
    %cst_229 = arith.constant dense<0.000000e+00> : vector<1xf32>
    %855 = vector.multi_reduction <add>, %854, %cst_229 [0] : vector<3x1xf32> to vector<1xf32>
    %856 = vector.shape_cast %855 : vector<1xf32> to vector<1x1xf32>
    %cst_230 = arith.constant 0.000000e+00 : f32
    %857 = vector.broadcast %cst_230 : f32 to vector<3x32xf32>
    %858 = arith.select %850, %744, %857 : vector<3x32xi1>, vector<3x32xf32>
    %cst_231 = arith.constant dense<0.000000e+00> : vector<3xf32>
    %859 = vector.multi_reduction <add>, %858, %cst_231 [1] : vector<3x32xf32> to vector<3xf32>
    %860 = vector.shape_cast %859 : vector<3xf32> to vector<3x1xf32>
    %cst_232 = arith.constant dense<0.000000e+00> : vector<1xf32>
    %861 = vector.multi_reduction <add>, %860, %cst_232 [0] : vector<3x1xf32> to vector<1xf32>
    %862 = vector.shape_cast %861 : vector<1xf32> to vector<1x1xf32>
    %c2_i32_233 = arith.constant 2 : i32
    %863 = vector.broadcast %c2_i32_233 : i32 to vector<3x1xi32>
    %864 = arith.cmpi eq, %282, %863 : vector<3x1xi32>
    %865 = vector.shape_cast %840 : vector<1x1xf32> to vector<1x1xf32>
    %866 = vector.broadcast %865 : vector<1x1xf32> to vector<3x1xf32>
    %867 = arith.select %864, %866, %824 : vector<3x1xi1>, vector<3x1xf32>
    %c2_i32_234 = arith.constant 2 : i32
    %868 = vector.broadcast %c2_i32_234 : i32 to vector<3x1xi32>
    %869 = arith.cmpi eq, %282, %868 : vector<3x1xi32>
    %870 = vector.shape_cast %856 : vector<1x1xf32> to vector<1x1xf32>
    %871 = vector.broadcast %870 : vector<1x1xf32> to vector<3x1xf32>
    %872 = arith.select %869, %871, %829 : vector<3x1xi1>, vector<3x1xf32>
    %c2_i32_235 = arith.constant 2 : i32
    %873 = vector.broadcast %c2_i32_235 : i32 to vector<3x1xi32>
    %874 = arith.cmpi eq, %282, %873 : vector<3x1xi32>
    %875 = vector.shape_cast %862 : vector<1x1xf32> to vector<1x1xf32>
    %876 = vector.broadcast %875 : vector<1x1xf32> to vector<3x1xf32>
    %877 = arith.select %874, %876, %834 : vector<3x1xi1>, vector<3x1xf32>
    %878 = vector.broadcast %877 : vector<3x1xf32> to vector<3x3xf32>
    %879 = arith.cmpf oeq, %878, %463 : vector<3x3xf32>
    %880 = arith.extui %879 : vector<3x3xi1> to vector<3x3xi32>
    %881 = arith.sitofp %880 : vector<3x3xi32> to vector<3x3xf32>
    %c2_i32_236 = arith.constant 2 : i32
    %882 = vector.broadcast %c2_i32_236 : i32 to vector<3x128xi32>
    %883 = arith.cmpi eq, %456, %882 : vector<3x128xi32>
    %884 = vector.shape_cast %659 : vector<3x1xf32> to vector<3x1xf32>
    %885 = vector.broadcast %884 : vector<3x1xf32> to vector<3x128xf32>
    %886 = arith.select %883, %885, %674 : vector<3x128xi1>, vector<3x128xf32>
    %cst_237 = arith.constant dense<0.000000e+00> : vector<3x128xf32>
    %887 = tpu.matmul %881, %886, %cst_237 {dimension_numbers = #tpu.dot_dimension_numbers<[1], [0], [0], [1], [0, 0, 1, 1], [], []>} : vector<3x3xf32>, vector<3x128xf32>, vector<3x128xf32> -> vector<3x128xf32>
    %cst_238 = arith.constant dense<0.000000e+00> : vector<3x32xf32>
    %888 = tpu.matmul %881, %709, %cst_238 {dimension_numbers = #tpu.dot_dimension_numbers<[1], [0], [0], [1], [0, 0, 1, 1], [], []>} : vector<3x3xf32>, vector<3x32xf32>, vector<3x32xf32> -> vector<3x32xf32>
    %cst_239 = arith.constant dense<0.000000e+00> : vector<3x32xf32>
    %889 = tpu.matmul %881, %707, %cst_239 {dimension_numbers = #tpu.dot_dimension_numbers<[1], [0], [0], [1], [0, 0, 1, 1], [], []>} : vector<3x3xf32>, vector<3x32xf32>, vector<3x32xf32> -> vector<3x32xf32>
    %890 = tpu.iota {dimensions = array<i32: 1>} : vector<3x32xi32>
    %891 = arith.sitofp %890 : vector<3x32xi32> to vector<3x32xf32>
    %892 = vector.broadcast %872 : vector<3x1xf32> to vector<3x32xf32>
    %893 = arith.cmpf oeq, %892, %891 : vector<3x32xf32>
    %894 = arith.extui %893 : vector<3x32xi1> to vector<3x32xi32>
    %895 = arith.sitofp %894 : vector<3x32xi32> to vector<3x32xf32>
    %896 = tpu.concatenate %895, %888 in 1 : vector<3x32xf32>, vector<3x32xf32> -> vector<3x64xf32>
    %cst_240 = arith.constant dense<0.000000e+00> : vector<3x128xf32>
    %897 = tpu.matmul %896, %278, %cst_240 {dimension_numbers = #tpu.dot_dimension_numbers<[1], [0], [0], [1], [0, 0, 1, 1], [], []>} : vector<3x64xf32>, vector<64x128xf32>, vector<3x128xf32> -> vector<3x128xf32>
    %898 = vector.extract_strided_slice %897 {offsets = [0, 0], sizes = [3, 32], strides = [1, 1]} : vector<3x128xf32> to vector<3x32xf32>
    %899 = arith.negf %898 : vector<3x32xf32>
    %900 = math.exp %899 : vector<3x32xf32>
    %cst_241 = arith.constant 1.000000e+00 : f32
    %901 = vector.broadcast %cst_241 : f32 to vector<3x32xf32>
    %902 = arith.addf %901, %900 : vector<3x32xf32>
    %903 = arith.divf %901, %902 : vector<3x32xf32>
    %904 = vector.extract_strided_slice %897 {offsets = [0, 32], sizes = [3, 32], strides = [1, 1]} : vector<3x128xf32> to vector<3x32xf32>
    %905 = arith.negf %904 : vector<3x32xf32>
    %906 = math.exp %905 : vector<3x32xf32>
    %cst_242 = arith.constant 1.000000e+00 : f32
    %907 = vector.broadcast %cst_242 : f32 to vector<3x32xf32>
    %908 = arith.addf %907, %906 : vector<3x32xf32>
    %909 = arith.divf %907, %908 : vector<3x32xf32>
    %910 = vector.extract_strided_slice %897 {offsets = [0, 64], sizes = [3, 32], strides = [1, 1]} : vector<3x128xf32> to vector<3x32xf32>
    %911 = math.tanh %910 : vector<3x32xf32>
    %912 = vector.extract_strided_slice %897 {offsets = [0, 96], sizes = [3, 32], strides = [1, 1]} : vector<3x128xf32> to vector<3x32xf32>
    %913 = arith.negf %912 : vector<3x32xf32>
    %914 = math.exp %913 : vector<3x32xf32>
    %cst_243 = arith.constant 1.000000e+00 : f32
    %915 = vector.broadcast %cst_243 : f32 to vector<3x32xf32>
    %916 = arith.addf %915, %914 : vector<3x32xf32>
    %917 = arith.divf %915, %916 : vector<3x32xf32>
    %918 = arith.mulf %909, %889 : vector<3x32xf32>
    %919 = arith.mulf %903, %911 : vector<3x32xf32>
    %920 = arith.addf %918, %919 : vector<3x32xf32>
    %921 = math.tanh %920 : vector<3x32xf32>
    %922 = arith.mulf %917, %921 : vector<3x32xf32>
    %cst_244 = arith.constant dense<0.000000e+00> : vector<3x8xf32>
    %923 = tpu.matmul %922, %277, %cst_244 {dimension_numbers = #tpu.dot_dimension_numbers<[1], [1], [0], [0], [0, 0, 1, 0], [], []>} : vector<3x32xf32>, vector<8x32xf32>, vector<3x8xf32> -> vector<3x8xf32>
    %cst_245 = arith.constant dense<0xFF800000> : vector<3xf32>
    %924 = vector.multi_reduction <maximumf>, %923, %cst_245 [1] : vector<3x8xf32> to vector<3xf32>
    %925 = vector.shape_cast %924 : vector<3xf32> to vector<3x1xf32>
    %926 = vector.broadcast %925 : vector<3x1xf32> to vector<3x8xf32>
    %927 = arith.subf %923, %926 : vector<3x8xf32>
    %928 = math.exp %927 : vector<3x8xf32>
    %cst_246 = arith.constant dense<0.000000e+00> : vector<3xf32>
    %929 = vector.multi_reduction <add>, %928, %cst_246 [1] : vector<3x8xf32> to vector<3xf32>
    %930 = vector.shape_cast %929 : vector<3xf32> to vector<3x1xf32>
    %931 = tpu.reciprocal %930 {approx = true} : vector<3x1xf32> -> vector<3x1xf32>
    %932 = vector.broadcast %931 : vector<3x1xf32> to vector<3x8xf32>
    %933 = arith.mulf %928, %932 : vector<3x8xf32>
    %cst_247 = arith.constant dense<0.000000e+00> : vector<3x32xf32>
    %934 = tpu.matmul %933, %277, %cst_247 {dimension_numbers = #tpu.dot_dimension_numbers<[1], [0], [0], [1], [0, 0, 1, 1], [], []>} : vector<3x8xf32>, vector<8x32xf32>, vector<3x32xf32> -> vector<3x32xf32>
    %935 = tpu.concatenate %922, %934 in 1 : vector<3x32xf32>, vector<3x32xf32> -> vector<3x64xf32>
    %cst_248 = arith.constant dense<0.000000e+00> : vector<3x32xf32>
    %936 = tpu.matmul %935, %279, %cst_248 {dimension_numbers = #tpu.dot_dimension_numbers<[1], [0], [0], [1], [0, 0, 1, 1], [], []>} : vector<3x64xf32>, vector<64x32xf32>, vector<3x32xf32> -> vector<3x32xf32>
    %937 = math.tanh %936 : vector<3x32xf32>
    %cst_249 = arith.constant dense<0.000000e+00> : vector<3x32xf32>
    %938 = tpu.matmul %937, %280, %cst_249 {dimension_numbers = #tpu.dot_dimension_numbers<[1], [0], [0], [1], [0, 0, 1, 1], [], []>} : vector<3x32xf32>, vector<32x32xf32>, vector<3x32xf32> -> vector<3x32xf32>
    %939 = vector.broadcast %281 : vector<1x32xf32> to vector<3x32xf32>
    %940 = arith.addf %938, %939 : vector<3x32xf32>
    %cst_250 = arith.constant dense<0xFF800000> : vector<3xf32>
    %941 = vector.multi_reduction <maximumf>, %940, %cst_250 [1] : vector<3x32xf32> to vector<3xf32>
    %942 = vector.shape_cast %941 : vector<3xf32> to vector<3x1xf32>
    %943 = vector.broadcast %942 : vector<3x1xf32> to vector<3x32xf32>
    %944 = arith.subf %940, %943 : vector<3x32xf32>
    %945 = math.exp %944 : vector<3x32xf32>
    %cst_251 = arith.constant dense<0.000000e+00> : vector<3xf32>
    %946 = vector.multi_reduction <add>, %945, %cst_251 [1] : vector<3x32xf32> to vector<3xf32>
    %947 = vector.shape_cast %946 : vector<3xf32> to vector<3x1xf32>
    %948 = math.log %947 : vector<3x1xf32>
    %949 = arith.addf %948, %942 : vector<3x1xf32>
    %950 = vector.broadcast %949 : vector<3x1xf32> to vector<3x32xf32>
    %951 = arith.subf %940, %950 : vector<3x32xf32>
    %952 = vector.broadcast %867 : vector<3x1xf32> to vector<3x32xf32>
    %953 = arith.addf %951, %952 : vector<3x32xf32>
    %954 = tpu.iota {dimensions = array<i32: 1>} : vector<3x32xi32>
    %955 = arith.sitofp %954 : vector<3x32xi32> to vector<3x32xf32>
    %956 = tpu.iota {dimensions = array<i32: 0>} : vector<3x32xi32>
    %957 = arith.sitofp %956 : vector<3x32xi32> to vector<3x32xf32>
    %cst_252 = arith.constant 3.200000e+01 : f32
    %958 = vector.broadcast %cst_252 : f32 to vector<3x32xf32>
    %959 = arith.mulf %957, %958 : vector<3x32xf32>
    %960 = arith.addf %959, %955 : vector<3x32xf32>
    %cst_253 = arith.constant 0.000000e+00 : f32
    %961 = vector.broadcast %cst_253 : f32 to vector<3x1xf32>
    %cst_254 = arith.constant 0.000000e+00 : f32
    %962 = vector.broadcast %cst_254 : f32 to vector<3x1xf32>
    %cst_255 = arith.constant 0.000000e+00 : f32
    %963 = vector.broadcast %cst_255 : f32 to vector<3x1xf32>
    %cst_256 = arith.constant dense<0xFF800000> : vector<3xf32>
    %964 = vector.multi_reduction <maximumf>, %953, %cst_256 [1] : vector<3x32xf32> to vector<3xf32>
    %965 = vector.shape_cast %964 : vector<3xf32> to vector<3x1xf32>
    %cst_257 = arith.constant dense<0xFF800000> : vector<1xf32>
    %966 = vector.multi_reduction <maximumf>, %965, %cst_257 [0] : vector<3x1xf32> to vector<1xf32>
    %967 = vector.shape_cast %966 : vector<1xf32> to vector<1x1xf32>
    %968 = vector.broadcast %967 : vector<1x1xf32> to vector<3x32xf32>
    %969 = arith.cmpf oeq, %953, %968 : vector<3x32xf32>
    %cst_258 = arith.constant 9.600000e+01 : f32
    %970 = vector.broadcast %cst_258 : f32 to vector<3x32xf32>
    %971 = arith.select %969, %960, %970 : vector<3x32xi1>, vector<3x32xf32>
    %cst_259 = arith.constant dense<0x7F800000> : vector<3xf32>
    %972 = vector.multi_reduction <minimumf>, %971, %cst_259 [1] : vector<3x32xf32> to vector<3xf32>
    %973 = vector.shape_cast %972 : vector<3xf32> to vector<3x1xf32>
    %cst_260 = arith.constant dense<0x7F800000> : vector<1xf32>
    %974 = vector.multi_reduction <minimumf>, %973, %cst_260 [0] : vector<3x1xf32> to vector<1xf32>
    %975 = vector.shape_cast %974 : vector<1xf32> to vector<1x1xf32>
    %976 = vector.broadcast %975 : vector<1x1xf32> to vector<3x32xf32>
    %977 = arith.cmpf oeq, %960, %976 : vector<3x32xf32>
    %cst_261 = arith.constant 0.000000e+00 : f32
    %978 = vector.broadcast %cst_261 : f32 to vector<3x32xf32>
    %979 = arith.select %977, %955, %978 : vector<3x32xi1>, vector<3x32xf32>
    %cst_262 = arith.constant dense<0.000000e+00> : vector<3xf32>
    %980 = vector.multi_reduction <add>, %979, %cst_262 [1] : vector<3x32xf32> to vector<3xf32>
    %981 = vector.shape_cast %980 : vector<3xf32> to vector<3x1xf32>
    %cst_263 = arith.constant dense<0.000000e+00> : vector<1xf32>
    %982 = vector.multi_reduction <add>, %981, %cst_263 [0] : vector<3x1xf32> to vector<1xf32>
    %983 = vector.shape_cast %982 : vector<1xf32> to vector<1x1xf32>
    %cst_264 = arith.constant 0.000000e+00 : f32
    %984 = vector.broadcast %cst_264 : f32 to vector<3x32xf32>
    %985 = arith.select %977, %957, %984 : vector<3x32xi1>, vector<3x32xf32>
    %cst_265 = arith.constant dense<0.000000e+00> : vector<3xf32>
    %986 = vector.multi_reduction <add>, %985, %cst_265 [1] : vector<3x32xf32> to vector<3xf32>
    %987 = vector.shape_cast %986 : vector<3xf32> to vector<3x1xf32>
    %cst_266 = arith.constant dense<0.000000e+00> : vector<1xf32>
    %988 = vector.multi_reduction <add>, %987, %cst_266 [0] : vector<3x1xf32> to vector<1xf32>
    %989 = vector.shape_cast %988 : vector<1xf32> to vector<1x1xf32>
    %c0_i32_267 = arith.constant 0 : i32
    %990 = vector.broadcast %c0_i32_267 : i32 to vector<3x1xi32>
    %991 = arith.cmpi eq, %282, %990 : vector<3x1xi32>
    %992 = vector.shape_cast %967 : vector<1x1xf32> to vector<1x1xf32>
    %993 = vector.broadcast %992 : vector<1x1xf32> to vector<3x1xf32>
    %994 = arith.select %991, %993, %961 : vector<3x1xi1>, vector<3x1xf32>
    %c0_i32_268 = arith.constant 0 : i32
    %995 = vector.broadcast %c0_i32_268 : i32 to vector<3x1xi32>
    %996 = arith.cmpi eq, %282, %995 : vector<3x1xi32>
    %997 = vector.shape_cast %983 : vector<1x1xf32> to vector<1x1xf32>
    %998 = vector.broadcast %997 : vector<1x1xf32> to vector<3x1xf32>
    %999 = arith.select %996, %998, %962 : vector<3x1xi1>, vector<3x1xf32>
    %c0_i32_269 = arith.constant 0 : i32
    %1000 = vector.broadcast %c0_i32_269 : i32 to vector<3x1xi32>
    %1001 = arith.cmpi eq, %282, %1000 : vector<3x1xi32>
    %1002 = vector.shape_cast %989 : vector<1x1xf32> to vector<1x1xf32>
    %1003 = vector.broadcast %1002 : vector<1x1xf32> to vector<3x1xf32>
    %1004 = arith.select %1001, %1003, %963 : vector<3x1xi1>, vector<3x1xf32>
    %cst_270 = arith.constant -1.000000e+30 : f32
    %1005 = vector.broadcast %cst_270 : f32 to vector<3x32xf32>
    %1006 = arith.select %977, %1005, %953 : vector<3x32xi1>, vector<3x32xf32>
    %cst_271 = arith.constant dense<0xFF800000> : vector<3xf32>
    %1007 = vector.multi_reduction <maximumf>, %1006, %cst_271 [1] : vector<3x32xf32> to vector<3xf32>
    %1008 = vector.shape_cast %1007 : vector<3xf32> to vector<3x1xf32>
    %cst_272 = arith.constant dense<0xFF800000> : vector<1xf32>
    %1009 = vector.multi_reduction <maximumf>, %1008, %cst_272 [0] : vector<3x1xf32> to vector<1xf32>
    %1010 = vector.shape_cast %1009 : vector<1xf32> to vector<1x1xf32>
    %1011 = vector.broadcast %1010 : vector<1x1xf32> to vector<3x32xf32>
    %1012 = arith.cmpf oeq, %1006, %1011 : vector<3x32xf32>
    %cst_273 = arith.constant 9.600000e+01 : f32
    %1013 = vector.broadcast %cst_273 : f32 to vector<3x32xf32>
    %1014 = arith.select %1012, %960, %1013 : vector<3x32xi1>, vector<3x32xf32>
    %cst_274 = arith.constant dense<0x7F800000> : vector<3xf32>
    %1015 = vector.multi_reduction <minimumf>, %1014, %cst_274 [1] : vector<3x32xf32> to vector<3xf32>
    %1016 = vector.shape_cast %1015 : vector<3xf32> to vector<3x1xf32>
    %cst_275 = arith.constant dense<0x7F800000> : vector<1xf32>
    %1017 = vector.multi_reduction <minimumf>, %1016, %cst_275 [0] : vector<3x1xf32> to vector<1xf32>
    %1018 = vector.shape_cast %1017 : vector<1xf32> to vector<1x1xf32>
    %1019 = vector.broadcast %1018 : vector<1x1xf32> to vector<3x32xf32>
    %1020 = arith.cmpf oeq, %960, %1019 : vector<3x32xf32>
    %cst_276 = arith.constant 0.000000e+00 : f32
    %1021 = vector.broadcast %cst_276 : f32 to vector<3x32xf32>
    %1022 = arith.select %1020, %955, %1021 : vector<3x32xi1>, vector<3x32xf32>
    %cst_277 = arith.constant dense<0.000000e+00> : vector<3xf32>
    %1023 = vector.multi_reduction <add>, %1022, %cst_277 [1] : vector<3x32xf32> to vector<3xf32>
    %1024 = vector.shape_cast %1023 : vector<3xf32> to vector<3x1xf32>
    %cst_278 = arith.constant dense<0.000000e+00> : vector<1xf32>
    %1025 = vector.multi_reduction <add>, %1024, %cst_278 [0] : vector<3x1xf32> to vector<1xf32>
    %1026 = vector.shape_cast %1025 : vector<1xf32> to vector<1x1xf32>
    %cst_279 = arith.constant 0.000000e+00 : f32
    %1027 = vector.broadcast %cst_279 : f32 to vector<3x32xf32>
    %1028 = arith.select %1020, %957, %1027 : vector<3x32xi1>, vector<3x32xf32>
    %cst_280 = arith.constant dense<0.000000e+00> : vector<3xf32>
    %1029 = vector.multi_reduction <add>, %1028, %cst_280 [1] : vector<3x32xf32> to vector<3xf32>
    %1030 = vector.shape_cast %1029 : vector<3xf32> to vector<3x1xf32>
    %cst_281 = arith.constant dense<0.000000e+00> : vector<1xf32>
    %1031 = vector.multi_reduction <add>, %1030, %cst_281 [0] : vector<3x1xf32> to vector<1xf32>
    %1032 = vector.shape_cast %1031 : vector<1xf32> to vector<1x1xf32>
    %c1_i32_282 = arith.constant 1 : i32
    %1033 = vector.broadcast %c1_i32_282 : i32 to vector<3x1xi32>
    %1034 = arith.cmpi eq, %282, %1033 : vector<3x1xi32>
    %1035 = vector.shape_cast %1010 : vector<1x1xf32> to vector<1x1xf32>
    %1036 = vector.broadcast %1035 : vector<1x1xf32> to vector<3x1xf32>
    %1037 = arith.select %1034, %1036, %994 : vector<3x1xi1>, vector<3x1xf32>
    %c1_i32_283 = arith.constant 1 : i32
    %1038 = vector.broadcast %c1_i32_283 : i32 to vector<3x1xi32>
    %1039 = arith.cmpi eq, %282, %1038 : vector<3x1xi32>
    %1040 = vector.shape_cast %1026 : vector<1x1xf32> to vector<1x1xf32>
    %1041 = vector.broadcast %1040 : vector<1x1xf32> to vector<3x1xf32>
    %1042 = arith.select %1039, %1041, %999 : vector<3x1xi1>, vector<3x1xf32>
    %c1_i32_284 = arith.constant 1 : i32
    %1043 = vector.broadcast %c1_i32_284 : i32 to vector<3x1xi32>
    %1044 = arith.cmpi eq, %282, %1043 : vector<3x1xi32>
    %1045 = vector.shape_cast %1032 : vector<1x1xf32> to vector<1x1xf32>
    %1046 = vector.broadcast %1045 : vector<1x1xf32> to vector<3x1xf32>
    %1047 = arith.select %1044, %1046, %1004 : vector<3x1xi1>, vector<3x1xf32>
    %cst_285 = arith.constant -1.000000e+30 : f32
    %1048 = vector.broadcast %cst_285 : f32 to vector<3x32xf32>
    %1049 = arith.select %1020, %1048, %1006 : vector<3x32xi1>, vector<3x32xf32>
    %cst_286 = arith.constant dense<0xFF800000> : vector<3xf32>
    %1050 = vector.multi_reduction <maximumf>, %1049, %cst_286 [1] : vector<3x32xf32> to vector<3xf32>
    %1051 = vector.shape_cast %1050 : vector<3xf32> to vector<3x1xf32>
    %cst_287 = arith.constant dense<0xFF800000> : vector<1xf32>
    %1052 = vector.multi_reduction <maximumf>, %1051, %cst_287 [0] : vector<3x1xf32> to vector<1xf32>
    %1053 = vector.shape_cast %1052 : vector<1xf32> to vector<1x1xf32>
    %1054 = vector.broadcast %1053 : vector<1x1xf32> to vector<3x32xf32>
    %1055 = arith.cmpf oeq, %1049, %1054 : vector<3x32xf32>
    %cst_288 = arith.constant 9.600000e+01 : f32
    %1056 = vector.broadcast %cst_288 : f32 to vector<3x32xf32>
    %1057 = arith.select %1055, %960, %1056 : vector<3x32xi1>, vector<3x32xf32>
    %cst_289 = arith.constant dense<0x7F800000> : vector<3xf32>
    %1058 = vector.multi_reduction <minimumf>, %1057, %cst_289 [1] : vector<3x32xf32> to vector<3xf32>
    %1059 = vector.shape_cast %1058 : vector<3xf32> to vector<3x1xf32>
    %cst_290 = arith.constant dense<0x7F800000> : vector<1xf32>
    %1060 = vector.multi_reduction <minimumf>, %1059, %cst_290 [0] : vector<3x1xf32> to vector<1xf32>
    %1061 = vector.shape_cast %1060 : vector<1xf32> to vector<1x1xf32>
    %1062 = vector.broadcast %1061 : vector<1x1xf32> to vector<3x32xf32>
    %1063 = arith.cmpf oeq, %960, %1062 : vector<3x32xf32>
    %cst_291 = arith.constant 0.000000e+00 : f32
    %1064 = vector.broadcast %cst_291 : f32 to vector<3x32xf32>
    %1065 = arith.select %1063, %955, %1064 : vector<3x32xi1>, vector<3x32xf32>
    %cst_292 = arith.constant dense<0.000000e+00> : vector<3xf32>
    %1066 = vector.multi_reduction <add>, %1065, %cst_292 [1] : vector<3x32xf32> to vector<3xf32>
    %1067 = vector.shape_cast %1066 : vector<3xf32> to vector<3x1xf32>
    %cst_293 = arith.constant dense<0.000000e+00> : vector<1xf32>
    %1068 = vector.multi_reduction <add>, %1067, %cst_293 [0] : vector<3x1xf32> to vector<1xf32>
    %1069 = vector.shape_cast %1068 : vector<1xf32> to vector<1x1xf32>
    %cst_294 = arith.constant 0.000000e+00 : f32
    %1070 = vector.broadcast %cst_294 : f32 to vector<3x32xf32>
    %1071 = arith.select %1063, %957, %1070 : vector<3x32xi1>, vector<3x32xf32>
    %cst_295 = arith.constant dense<0.000000e+00> : vector<3xf32>
    %1072 = vector.multi_reduction <add>, %1071, %cst_295 [1] : vector<3x32xf32> to vector<3xf32>
    %1073 = vector.shape_cast %1072 : vector<3xf32> to vector<3x1xf32>
    %cst_296 = arith.constant dense<0.000000e+00> : vector<1xf32>
    %1074 = vector.multi_reduction <add>, %1073, %cst_296 [0] : vector<3x1xf32> to vector<1xf32>
    %1075 = vector.shape_cast %1074 : vector<1xf32> to vector<1x1xf32>
    %c2_i32_297 = arith.constant 2 : i32
    %1076 = vector.broadcast %c2_i32_297 : i32 to vector<3x1xi32>
    %1077 = arith.cmpi eq, %282, %1076 : vector<3x1xi32>
    %1078 = vector.shape_cast %1053 : vector<1x1xf32> to vector<1x1xf32>
    %1079 = vector.broadcast %1078 : vector<1x1xf32> to vector<3x1xf32>
    %1080 = arith.select %1077, %1079, %1037 : vector<3x1xi1>, vector<3x1xf32>
    %c2_i32_298 = arith.constant 2 : i32
    %1081 = vector.broadcast %c2_i32_298 : i32 to vector<3x1xi32>
    %1082 = arith.cmpi eq, %282, %1081 : vector<3x1xi32>
    %1083 = vector.shape_cast %1069 : vector<1x1xf32> to vector<1x1xf32>
    %1084 = vector.broadcast %1083 : vector<1x1xf32> to vector<3x1xf32>
    %1085 = arith.select %1082, %1084, %1042 : vector<3x1xi1>, vector<3x1xf32>
    %c2_i32_299 = arith.constant 2 : i32
    %1086 = vector.broadcast %c2_i32_299 : i32 to vector<3x1xi32>
    %1087 = arith.cmpi eq, %282, %1086 : vector<3x1xi32>
    %1088 = vector.shape_cast %1075 : vector<1x1xf32> to vector<1x1xf32>
    %1089 = vector.broadcast %1088 : vector<1x1xf32> to vector<3x1xf32>
    %1090 = arith.select %1087, %1089, %1047 : vector<3x1xi1>, vector<3x1xf32>
    %1091 = vector.broadcast %1090 : vector<3x1xf32> to vector<3x3xf32>
    %1092 = arith.cmpf oeq, %1091, %463 : vector<3x3xf32>
    %1093 = arith.extui %1092 : vector<3x3xi1> to vector<3x3xi32>
    %1094 = arith.sitofp %1093 : vector<3x3xi32> to vector<3x3xf32>
    %c3_i32_300 = arith.constant 3 : i32
    %1095 = vector.broadcast %c3_i32_300 : i32 to vector<3x128xi32>
    %1096 = arith.cmpi eq, %456, %1095 : vector<3x128xi32>
    %1097 = vector.shape_cast %872 : vector<3x1xf32> to vector<3x1xf32>
    %1098 = vector.broadcast %1097 : vector<3x1xf32> to vector<3x128xf32>
    %1099 = arith.select %1096, %1098, %887 : vector<3x128xi1>, vector<3x128xf32>
    %cst_301 = arith.constant dense<0.000000e+00> : vector<3x128xf32>
    %1100 = tpu.matmul %1094, %1099, %cst_301 {dimension_numbers = #tpu.dot_dimension_numbers<[1], [0], [0], [1], [0, 0, 1, 1], [], []>} : vector<3x3xf32>, vector<3x128xf32>, vector<3x128xf32> -> vector<3x128xf32>
    %cst_302 = arith.constant dense<0.000000e+00> : vector<3x32xf32>
    %1101 = tpu.matmul %1094, %922, %cst_302 {dimension_numbers = #tpu.dot_dimension_numbers<[1], [0], [0], [1], [0, 0, 1, 1], [], []>} : vector<3x3xf32>, vector<3x32xf32>, vector<3x32xf32> -> vector<3x32xf32>
    %cst_303 = arith.constant dense<0.000000e+00> : vector<3x32xf32>
    %1102 = tpu.matmul %1094, %920, %cst_303 {dimension_numbers = #tpu.dot_dimension_numbers<[1], [0], [0], [1], [0, 0, 1, 1], [], []>} : vector<3x3xf32>, vector<3x32xf32>, vector<3x32xf32> -> vector<3x32xf32>
    %1103 = tpu.iota {dimensions = array<i32: 1>} : vector<3x32xi32>
    %1104 = arith.sitofp %1103 : vector<3x32xi32> to vector<3x32xf32>
    %1105 = vector.broadcast %1085 : vector<3x1xf32> to vector<3x32xf32>
    %1106 = arith.cmpf oeq, %1105, %1104 : vector<3x32xf32>
    %1107 = arith.extui %1106 : vector<3x32xi1> to vector<3x32xi32>
    %1108 = arith.sitofp %1107 : vector<3x32xi32> to vector<3x32xf32>
    %1109 = tpu.concatenate %1108, %1101 in 1 : vector<3x32xf32>, vector<3x32xf32> -> vector<3x64xf32>
    %cst_304 = arith.constant dense<0.000000e+00> : vector<3x128xf32>
    %1110 = tpu.matmul %1109, %278, %cst_304 {dimension_numbers = #tpu.dot_dimension_numbers<[1], [0], [0], [1], [0, 0, 1, 1], [], []>} : vector<3x64xf32>, vector<64x128xf32>, vector<3x128xf32> -> vector<3x128xf32>
    %1111 = vector.extract_strided_slice %1110 {offsets = [0, 0], sizes = [3, 32], strides = [1, 1]} : vector<3x128xf32> to vector<3x32xf32>
    %1112 = arith.negf %1111 : vector<3x32xf32>
    %1113 = math.exp %1112 : vector<3x32xf32>
    %cst_305 = arith.constant 1.000000e+00 : f32
    %1114 = vector.broadcast %cst_305 : f32 to vector<3x32xf32>
    %1115 = arith.addf %1114, %1113 : vector<3x32xf32>
    %1116 = arith.divf %1114, %1115 : vector<3x32xf32>
    %1117 = vector.extract_strided_slice %1110 {offsets = [0, 32], sizes = [3, 32], strides = [1, 1]} : vector<3x128xf32> to vector<3x32xf32>
    %1118 = arith.negf %1117 : vector<3x32xf32>
    %1119 = math.exp %1118 : vector<3x32xf32>
    %cst_306 = arith.constant 1.000000e+00 : f32
    %1120 = vector.broadcast %cst_306 : f32 to vector<3x32xf32>
    %1121 = arith.addf %1120, %1119 : vector<3x32xf32>
    %1122 = arith.divf %1120, %1121 : vector<3x32xf32>
    %1123 = vector.extract_strided_slice %1110 {offsets = [0, 64], sizes = [3, 32], strides = [1, 1]} : vector<3x128xf32> to vector<3x32xf32>
    %1124 = math.tanh %1123 : vector<3x32xf32>
    %1125 = vector.extract_strided_slice %1110 {offsets = [0, 96], sizes = [3, 32], strides = [1, 1]} : vector<3x128xf32> to vector<3x32xf32>
    %1126 = arith.negf %1125 : vector<3x32xf32>
    %1127 = math.exp %1126 : vector<3x32xf32>
    %cst_307 = arith.constant 1.000000e+00 : f32
    %1128 = vector.broadcast %cst_307 : f32 to vector<3x32xf32>
    %1129 = arith.addf %1128, %1127 : vector<3x32xf32>
    %1130 = arith.divf %1128, %1129 : vector<3x32xf32>
    %1131 = arith.mulf %1122, %1102 : vector<3x32xf32>
    %1132 = arith.mulf %1116, %1124 : vector<3x32xf32>
    %1133 = arith.addf %1131, %1132 : vector<3x32xf32>
    %1134 = math.tanh %1133 : vector<3x32xf32>
    %1135 = arith.mulf %1130, %1134 : vector<3x32xf32>
    %cst_308 = arith.constant dense<0.000000e+00> : vector<3x8xf32>
    %1136 = tpu.matmul %1135, %277, %cst_308 {dimension_numbers = #tpu.dot_dimension_numbers<[1], [1], [0], [0], [0, 0, 1, 0], [], []>} : vector<3x32xf32>, vector<8x32xf32>, vector<3x8xf32> -> vector<3x8xf32>
    %cst_309 = arith.constant dense<0xFF800000> : vector<3xf32>
    %1137 = vector.multi_reduction <maximumf>, %1136, %cst_309 [1] : vector<3x8xf32> to vector<3xf32>
    %1138 = vector.shape_cast %1137 : vector<3xf32> to vector<3x1xf32>
    %1139 = vector.broadcast %1138 : vector<3x1xf32> to vector<3x8xf32>
    %1140 = arith.subf %1136, %1139 : vector<3x8xf32>
    %1141 = math.exp %1140 : vector<3x8xf32>
    %cst_310 = arith.constant dense<0.000000e+00> : vector<3xf32>
    %1142 = vector.multi_reduction <add>, %1141, %cst_310 [1] : vector<3x8xf32> to vector<3xf32>
    %1143 = vector.shape_cast %1142 : vector<3xf32> to vector<3x1xf32>
    %1144 = tpu.reciprocal %1143 {approx = true} : vector<3x1xf32> -> vector<3x1xf32>
    %1145 = vector.broadcast %1144 : vector<3x1xf32> to vector<3x8xf32>
    %1146 = arith.mulf %1141, %1145 : vector<3x8xf32>
    %cst_311 = arith.constant dense<0.000000e+00> : vector<3x32xf32>
    %1147 = tpu.matmul %1146, %277, %cst_311 {dimension_numbers = #tpu.dot_dimension_numbers<[1], [0], [0], [1], [0, 0, 1, 1], [], []>} : vector<3x8xf32>, vector<8x32xf32>, vector<3x32xf32> -> vector<3x32xf32>
    %1148 = tpu.concatenate %1135, %1147 in 1 : vector<3x32xf32>, vector<3x32xf32> -> vector<3x64xf32>
    %cst_312 = arith.constant dense<0.000000e+00> : vector<3x32xf32>
    %1149 = tpu.matmul %1148, %279, %cst_312 {dimension_numbers = #tpu.dot_dimension_numbers<[1], [0], [0], [1], [0, 0, 1, 1], [], []>} : vector<3x64xf32>, vector<64x32xf32>, vector<3x32xf32> -> vector<3x32xf32>
    %1150 = math.tanh %1149 : vector<3x32xf32>
    %cst_313 = arith.constant dense<0.000000e+00> : vector<3x32xf32>
    %1151 = tpu.matmul %1150, %280, %cst_313 {dimension_numbers = #tpu.dot_dimension_numbers<[1], [0], [0], [1], [0, 0, 1, 1], [], []>} : vector<3x32xf32>, vector<32x32xf32>, vector<3x32xf32> -> vector<3x32xf32>
    %1152 = vector.broadcast %281 : vector<1x32xf32> to vector<3x32xf32>
    %1153 = arith.addf %1151, %1152 : vector<3x32xf32>
    %cst_314 = arith.constant dense<0xFF800000> : vector<3xf32>
    %1154 = vector.multi_reduction <maximumf>, %1153, %cst_314 [1] : vector<3x32xf32> to vector<3xf32>
    %1155 = vector.shape_cast %1154 : vector<3xf32> to vector<3x1xf32>
    %1156 = vector.broadcast %1155 : vector<3x1xf32> to vector<3x32xf32>
    %1157 = arith.subf %1153, %1156 : vector<3x32xf32>
    %1158 = math.exp %1157 : vector<3x32xf32>
    %cst_315 = arith.constant dense<0.000000e+00> : vector<3xf32>
    %1159 = vector.multi_reduction <add>, %1158, %cst_315 [1] : vector<3x32xf32> to vector<3xf32>
    %1160 = vector.shape_cast %1159 : vector<3xf32> to vector<3x1xf32>
    %1161 = math.log %1160 : vector<3x1xf32>
    %1162 = arith.addf %1161, %1155 : vector<3x1xf32>
    %1163 = vector.broadcast %1162 : vector<3x1xf32> to vector<3x32xf32>
    %1164 = arith.subf %1153, %1163 : vector<3x32xf32>
    %1165 = vector.broadcast %1080 : vector<3x1xf32> to vector<3x32xf32>
    %1166 = arith.addf %1164, %1165 : vector<3x32xf32>
    %1167 = tpu.iota {dimensions = array<i32: 1>} : vector<3x32xi32>
    %1168 = arith.sitofp %1167 : vector<3x32xi32> to vector<3x32xf32>
    %1169 = tpu.iota {dimensions = array<i32: 0>} : vector<3x32xi32>
    %1170 = arith.sitofp %1169 : vector<3x32xi32> to vector<3x32xf32>
    %cst_316 = arith.constant 3.200000e+01 : f32
    %1171 = vector.broadcast %cst_316 : f32 to vector<3x32xf32>
    %1172 = arith.mulf %1170, %1171 : vector<3x32xf32>
    %1173 = arith.addf %1172, %1168 : vector<3x32xf32>
    %cst_317 = arith.constant 0.000000e+00 : f32
    %1174 = vector.broadcast %cst_317 : f32 to vector<3x1xf32>
    %cst_318 = arith.constant 0.000000e+00 : f32
    %1175 = vector.broadcast %cst_318 : f32 to vector<3x1xf32>
    %cst_319 = arith.constant 0.000000e+00 : f32
    %1176 = vector.broadcast %cst_319 : f32 to vector<3x1xf32>
    %cst_320 = arith.constant dense<0xFF800000> : vector<3xf32>
    %1177 = vector.multi_reduction <maximumf>, %1166, %cst_320 [1] : vector<3x32xf32> to vector<3xf32>
    %1178 = vector.shape_cast %1177 : vector<3xf32> to vector<3x1xf32>
    %cst_321 = arith.constant dense<0xFF800000> : vector<1xf32>
    %1179 = vector.multi_reduction <maximumf>, %1178, %cst_321 [0] : vector<3x1xf32> to vector<1xf32>
    %1180 = vector.shape_cast %1179 : vector<1xf32> to vector<1x1xf32>
    %1181 = vector.broadcast %1180 : vector<1x1xf32> to vector<3x32xf32>
    %1182 = arith.cmpf oeq, %1166, %1181 : vector<3x32xf32>
    %cst_322 = arith.constant 9.600000e+01 : f32
    %1183 = vector.broadcast %cst_322 : f32 to vector<3x32xf32>
    %1184 = arith.select %1182, %1173, %1183 : vector<3x32xi1>, vector<3x32xf32>
    %cst_323 = arith.constant dense<0x7F800000> : vector<3xf32>
    %1185 = vector.multi_reduction <minimumf>, %1184, %cst_323 [1] : vector<3x32xf32> to vector<3xf32>
    %1186 = vector.shape_cast %1185 : vector<3xf32> to vector<3x1xf32>
    %cst_324 = arith.constant dense<0x7F800000> : vector<1xf32>
    %1187 = vector.multi_reduction <minimumf>, %1186, %cst_324 [0] : vector<3x1xf32> to vector<1xf32>
    %1188 = vector.shape_cast %1187 : vector<1xf32> to vector<1x1xf32>
    %1189 = vector.broadcast %1188 : vector<1x1xf32> to vector<3x32xf32>
    %1190 = arith.cmpf oeq, %1173, %1189 : vector<3x32xf32>
    %cst_325 = arith.constant 0.000000e+00 : f32
    %1191 = vector.broadcast %cst_325 : f32 to vector<3x32xf32>
    %1192 = arith.select %1190, %1168, %1191 : vector<3x32xi1>, vector<3x32xf32>
    %cst_326 = arith.constant dense<0.000000e+00> : vector<3xf32>
    %1193 = vector.multi_reduction <add>, %1192, %cst_326 [1] : vector<3x32xf32> to vector<3xf32>
    %1194 = vector.shape_cast %1193 : vector<3xf32> to vector<3x1xf32>
    %cst_327 = arith.constant dense<0.000000e+00> : vector<1xf32>
    %1195 = vector.multi_reduction <add>, %1194, %cst_327 [0] : vector<3x1xf32> to vector<1xf32>
    %1196 = vector.shape_cast %1195 : vector<1xf32> to vector<1x1xf32>
    %cst_328 = arith.constant 0.000000e+00 : f32
    %1197 = vector.broadcast %cst_328 : f32 to vector<3x32xf32>
    %1198 = arith.select %1190, %1170, %1197 : vector<3x32xi1>, vector<3x32xf32>
    %cst_329 = arith.constant dense<0.000000e+00> : vector<3xf32>
    %1199 = vector.multi_reduction <add>, %1198, %cst_329 [1] : vector<3x32xf32> to vector<3xf32>
    %1200 = vector.shape_cast %1199 : vector<3xf32> to vector<3x1xf32>
    %cst_330 = arith.constant dense<0.000000e+00> : vector<1xf32>
    %1201 = vector.multi_reduction <add>, %1200, %cst_330 [0] : vector<3x1xf32> to vector<1xf32>
    %1202 = vector.shape_cast %1201 : vector<1xf32> to vector<1x1xf32>
    %c0_i32_331 = arith.constant 0 : i32
    %1203 = vector.broadcast %c0_i32_331 : i32 to vector<3x1xi32>
    %1204 = arith.cmpi eq, %282, %1203 : vector<3x1xi32>
    %1205 = vector.shape_cast %1180 : vector<1x1xf32> to vector<1x1xf32>
    %1206 = vector.broadcast %1205 : vector<1x1xf32> to vector<3x1xf32>
    %1207 = arith.select %1204, %1206, %1174 : vector<3x1xi1>, vector<3x1xf32>
    %c0_i32_332 = arith.constant 0 : i32
    %1208 = vector.broadcast %c0_i32_332 : i32 to vector<3x1xi32>
    %1209 = arith.cmpi eq, %282, %1208 : vector<3x1xi32>
    %1210 = vector.shape_cast %1196 : vector<1x1xf32> to vector<1x1xf32>
    %1211 = vector.broadcast %1210 : vector<1x1xf32> to vector<3x1xf32>
    %1212 = arith.select %1209, %1211, %1175 : vector<3x1xi1>, vector<3x1xf32>
    %c0_i32_333 = arith.constant 0 : i32
    %1213 = vector.broadcast %c0_i32_333 : i32 to vector<3x1xi32>
    %1214 = arith.cmpi eq, %282, %1213 : vector<3x1xi32>
    %1215 = vector.shape_cast %1202 : vector<1x1xf32> to vector<1x1xf32>
    %1216 = vector.broadcast %1215 : vector<1x1xf32> to vector<3x1xf32>
    %1217 = arith.select %1214, %1216, %1176 : vector<3x1xi1>, vector<3x1xf32>
    %cst_334 = arith.constant -1.000000e+30 : f32
    %1218 = vector.broadcast %cst_334 : f32 to vector<3x32xf32>
    %1219 = arith.select %1190, %1218, %1166 : vector<3x32xi1>, vector<3x32xf32>
    %cst_335 = arith.constant dense<0xFF800000> : vector<3xf32>
    %1220 = vector.multi_reduction <maximumf>, %1219, %cst_335 [1] : vector<3x32xf32> to vector<3xf32>
    %1221 = vector.shape_cast %1220 : vector<3xf32> to vector<3x1xf32>
    %cst_336 = arith.constant dense<0xFF800000> : vector<1xf32>
    %1222 = vector.multi_reduction <maximumf>, %1221, %cst_336 [0] : vector<3x1xf32> to vector<1xf32>
    %1223 = vector.shape_cast %1222 : vector<1xf32> to vector<1x1xf32>
    %1224 = vector.broadcast %1223 : vector<1x1xf32> to vector<3x32xf32>
    %1225 = arith.cmpf oeq, %1219, %1224 : vector<3x32xf32>
    %cst_337 = arith.constant 9.600000e+01 : f32
    %1226 = vector.broadcast %cst_337 : f32 to vector<3x32xf32>
    %1227 = arith.select %1225, %1173, %1226 : vector<3x32xi1>, vector<3x32xf32>
    %cst_338 = arith.constant dense<0x7F800000> : vector<3xf32>
    %1228 = vector.multi_reduction <minimumf>, %1227, %cst_338 [1] : vector<3x32xf32> to vector<3xf32>
    %1229 = vector.shape_cast %1228 : vector<3xf32> to vector<3x1xf32>
    %cst_339 = arith.constant dense<0x7F800000> : vector<1xf32>
    %1230 = vector.multi_reduction <minimumf>, %1229, %cst_339 [0] : vector<3x1xf32> to vector<1xf32>
    %1231 = vector.shape_cast %1230 : vector<1xf32> to vector<1x1xf32>
    %1232 = vector.broadcast %1231 : vector<1x1xf32> to vector<3x32xf32>
    %1233 = arith.cmpf oeq, %1173, %1232 : vector<3x32xf32>
    %cst_340 = arith.constant 0.000000e+00 : f32
    %1234 = vector.broadcast %cst_340 : f32 to vector<3x32xf32>
    %1235 = arith.select %1233, %1168, %1234 : vector<3x32xi1>, vector<3x32xf32>
    %cst_341 = arith.constant dense<0.000000e+00> : vector<3xf32>
    %1236 = vector.multi_reduction <add>, %1235, %cst_341 [1] : vector<3x32xf32> to vector<3xf32>
    %1237 = vector.shape_cast %1236 : vector<3xf32> to vector<3x1xf32>
    %cst_342 = arith.constant dense<0.000000e+00> : vector<1xf32>
    %1238 = vector.multi_reduction <add>, %1237, %cst_342 [0] : vector<3x1xf32> to vector<1xf32>
    %1239 = vector.shape_cast %1238 : vector<1xf32> to vector<1x1xf32>
    %cst_343 = arith.constant 0.000000e+00 : f32
    %1240 = vector.broadcast %cst_343 : f32 to vector<3x32xf32>
    %1241 = arith.select %1233, %1170, %1240 : vector<3x32xi1>, vector<3x32xf32>
    %cst_344 = arith.constant dense<0.000000e+00> : vector<3xf32>
    %1242 = vector.multi_reduction <add>, %1241, %cst_344 [1] : vector<3x32xf32> to vector<3xf32>
    %1243 = vector.shape_cast %1242 : vector<3xf32> to vector<3x1xf32>
    %cst_345 = arith.constant dense<0.000000e+00> : vector<1xf32>
    %1244 = vector.multi_reduction <add>, %1243, %cst_345 [0] : vector<3x1xf32> to vector<1xf32>
    %1245 = vector.shape_cast %1244 : vector<1xf32> to vector<1x1xf32>
    %c1_i32_346 = arith.constant 1 : i32
    %1246 = vector.broadcast %c1_i32_346 : i32 to vector<3x1xi32>
    %1247 = arith.cmpi eq, %282, %1246 : vector<3x1xi32>
    %1248 = vector.shape_cast %1223 : vector<1x1xf32> to vector<1x1xf32>
    %1249 = vector.broadcast %1248 : vector<1x1xf32> to vector<3x1xf32>
    %1250 = arith.select %1247, %1249, %1207 : vector<3x1xi1>, vector<3x1xf32>
    %c1_i32_347 = arith.constant 1 : i32
    %1251 = vector.broadcast %c1_i32_347 : i32 to vector<3x1xi32>
    %1252 = arith.cmpi eq, %282, %1251 : vector<3x1xi32>
    %1253 = vector.shape_cast %1239 : vector<1x1xf32> to vector<1x1xf32>
    %1254 = vector.broadcast %1253 : vector<1x1xf32> to vector<3x1xf32>
    %1255 = arith.select %1252, %1254, %1212 : vector<3x1xi1>, vector<3x1xf32>
    %c1_i32_348 = arith.constant 1 : i32
    %1256 = vector.broadcast %c1_i32_348 : i32 to vector<3x1xi32>
    %1257 = arith.cmpi eq, %282, %1256 : vector<3x1xi32>
    %1258 = vector.shape_cast %1245 : vector<1x1xf32> to vector<1x1xf32>
    %1259 = vector.broadcast %1258 : vector<1x1xf32> to vector<3x1xf32>
    %1260 = arith.select %1257, %1259, %1217 : vector<3x1xi1>, vector<3x1xf32>
    %cst_349 = arith.constant -1.000000e+30 : f32
    %1261 = vector.broadcast %cst_349 : f32 to vector<3x32xf32>
    %1262 = arith.select %1233, %1261, %1219 : vector<3x32xi1>, vector<3x32xf32>
    %cst_350 = arith.constant dense<0xFF800000> : vector<3xf32>
    %1263 = vector.multi_reduction <maximumf>, %1262, %cst_350 [1] : vector<3x32xf32> to vector<3xf32>
    %1264 = vector.shape_cast %1263 : vector<3xf32> to vector<3x1xf32>
    %cst_351 = arith.constant dense<0xFF800000> : vector<1xf32>
    %1265 = vector.multi_reduction <maximumf>, %1264, %cst_351 [0] : vector<3x1xf32> to vector<1xf32>
    %1266 = vector.shape_cast %1265 : vector<1xf32> to vector<1x1xf32>
    %1267 = vector.broadcast %1266 : vector<1x1xf32> to vector<3x32xf32>
    %1268 = arith.cmpf oeq, %1262, %1267 : vector<3x32xf32>
    %cst_352 = arith.constant 9.600000e+01 : f32
    %1269 = vector.broadcast %cst_352 : f32 to vector<3x32xf32>
    %1270 = arith.select %1268, %1173, %1269 : vector<3x32xi1>, vector<3x32xf32>
    %cst_353 = arith.constant dense<0x7F800000> : vector<3xf32>
    %1271 = vector.multi_reduction <minimumf>, %1270, %cst_353 [1] : vector<3x32xf32> to vector<3xf32>
    %1272 = vector.shape_cast %1271 : vector<3xf32> to vector<3x1xf32>
    %cst_354 = arith.constant dense<0x7F800000> : vector<1xf32>
    %1273 = vector.multi_reduction <minimumf>, %1272, %cst_354 [0] : vector<3x1xf32> to vector<1xf32>
    %1274 = vector.shape_cast %1273 : vector<1xf32> to vector<1x1xf32>
    %1275 = vector.broadcast %1274 : vector<1x1xf32> to vector<3x32xf32>
    %1276 = arith.cmpf oeq, %1173, %1275 : vector<3x32xf32>
    %cst_355 = arith.constant 0.000000e+00 : f32
    %1277 = vector.broadcast %cst_355 : f32 to vector<3x32xf32>
    %1278 = arith.select %1276, %1168, %1277 : vector<3x32xi1>, vector<3x32xf32>
    %cst_356 = arith.constant dense<0.000000e+00> : vector<3xf32>
    %1279 = vector.multi_reduction <add>, %1278, %cst_356 [1] : vector<3x32xf32> to vector<3xf32>
    %1280 = vector.shape_cast %1279 : vector<3xf32> to vector<3x1xf32>
    %cst_357 = arith.constant dense<0.000000e+00> : vector<1xf32>
    %1281 = vector.multi_reduction <add>, %1280, %cst_357 [0] : vector<3x1xf32> to vector<1xf32>
    %1282 = vector.shape_cast %1281 : vector<1xf32> to vector<1x1xf32>
    %cst_358 = arith.constant 0.000000e+00 : f32
    %1283 = vector.broadcast %cst_358 : f32 to vector<3x32xf32>
    %1284 = arith.select %1276, %1170, %1283 : vector<3x32xi1>, vector<3x32xf32>
    %cst_359 = arith.constant dense<0.000000e+00> : vector<3xf32>
    %1285 = vector.multi_reduction <add>, %1284, %cst_359 [1] : vector<3x32xf32> to vector<3xf32>
    %1286 = vector.shape_cast %1285 : vector<3xf32> to vector<3x1xf32>
    %cst_360 = arith.constant dense<0.000000e+00> : vector<1xf32>
    %1287 = vector.multi_reduction <add>, %1286, %cst_360 [0] : vector<3x1xf32> to vector<1xf32>
    %1288 = vector.shape_cast %1287 : vector<1xf32> to vector<1x1xf32>
    %c2_i32_361 = arith.constant 2 : i32
    %1289 = vector.broadcast %c2_i32_361 : i32 to vector<3x1xi32>
    %1290 = arith.cmpi eq, %282, %1289 : vector<3x1xi32>
    %1291 = vector.shape_cast %1266 : vector<1x1xf32> to vector<1x1xf32>
    %1292 = vector.broadcast %1291 : vector<1x1xf32> to vector<3x1xf32>
    %1293 = arith.select %1290, %1292, %1250 : vector<3x1xi1>, vector<3x1xf32>
    %c2_i32_362 = arith.constant 2 : i32
    %1294 = vector.broadcast %c2_i32_362 : i32 to vector<3x1xi32>
    %1295 = arith.cmpi eq, %282, %1294 : vector<3x1xi32>
    %1296 = vector.shape_cast %1282 : vector<1x1xf32> to vector<1x1xf32>
    %1297 = vector.broadcast %1296 : vector<1x1xf32> to vector<3x1xf32>
    %1298 = arith.select %1295, %1297, %1255 : vector<3x1xi1>, vector<3x1xf32>
    %c2_i32_363 = arith.constant 2 : i32
    %1299 = vector.broadcast %c2_i32_363 : i32 to vector<3x1xi32>
    %1300 = arith.cmpi eq, %282, %1299 : vector<3x1xi32>
    %1301 = vector.shape_cast %1288 : vector<1x1xf32> to vector<1x1xf32>
    %1302 = vector.broadcast %1301 : vector<1x1xf32> to vector<3x1xf32>
    %1303 = arith.select %1300, %1302, %1260 : vector<3x1xi1>, vector<3x1xf32>
    %1304 = vector.broadcast %1303 : vector<3x1xf32> to vector<3x3xf32>
    %1305 = arith.cmpf oeq, %1304, %463 : vector<3x3xf32>
    %1306 = arith.extui %1305 : vector<3x3xi1> to vector<3x3xi32>
    %1307 = arith.sitofp %1306 : vector<3x3xi32> to vector<3x3xf32>
    %c4_i32_364 = arith.constant 4 : i32
    %1308 = vector.broadcast %c4_i32_364 : i32 to vector<3x128xi32>
    %1309 = arith.cmpi eq, %456, %1308 : vector<3x128xi32>
    %1310 = vector.shape_cast %1085 : vector<3x1xf32> to vector<3x1xf32>
    %1311 = vector.broadcast %1310 : vector<3x1xf32> to vector<3x128xf32>
    %1312 = arith.select %1309, %1311, %1100 : vector<3x128xi1>, vector<3x128xf32>
    %cst_365 = arith.constant dense<0.000000e+00> : vector<3x128xf32>
    %1313 = tpu.matmul %1307, %1312, %cst_365 {dimension_numbers = #tpu.dot_dimension_numbers<[1], [0], [0], [1], [0, 0, 1, 1], [], []>} : vector<3x3xf32>, vector<3x128xf32>, vector<3x128xf32> -> vector<3x128xf32>
    %cst_366 = arith.constant dense<0.000000e+00> : vector<3x32xf32>
    %1314 = tpu.matmul %1307, %1135, %cst_366 {dimension_numbers = #tpu.dot_dimension_numbers<[1], [0], [0], [1], [0, 0, 1, 1], [], []>} : vector<3x3xf32>, vector<3x32xf32>, vector<3x32xf32> -> vector<3x32xf32>
    %cst_367 = arith.constant dense<0.000000e+00> : vector<3x32xf32>
    %1315 = tpu.matmul %1307, %1133, %cst_367 {dimension_numbers = #tpu.dot_dimension_numbers<[1], [0], [0], [1], [0, 0, 1, 1], [], []>} : vector<3x3xf32>, vector<3x32xf32>, vector<3x32xf32> -> vector<3x32xf32>
    %1316 = tpu.iota {dimensions = array<i32: 1>} : vector<3x32xi32>
    %1317 = arith.sitofp %1316 : vector<3x32xi32> to vector<3x32xf32>
    %1318 = vector.broadcast %1298 : vector<3x1xf32> to vector<3x32xf32>
    %1319 = arith.cmpf oeq, %1318, %1317 : vector<3x32xf32>
    %1320 = arith.extui %1319 : vector<3x32xi1> to vector<3x32xi32>
    %1321 = arith.sitofp %1320 : vector<3x32xi32> to vector<3x32xf32>
    %1322 = tpu.concatenate %1321, %1314 in 1 : vector<3x32xf32>, vector<3x32xf32> -> vector<3x64xf32>
    %cst_368 = arith.constant dense<0.000000e+00> : vector<3x128xf32>
    %1323 = tpu.matmul %1322, %278, %cst_368 {dimension_numbers = #tpu.dot_dimension_numbers<[1], [0], [0], [1], [0, 0, 1, 1], [], []>} : vector<3x64xf32>, vector<64x128xf32>, vector<3x128xf32> -> vector<3x128xf32>
    %1324 = vector.extract_strided_slice %1323 {offsets = [0, 0], sizes = [3, 32], strides = [1, 1]} : vector<3x128xf32> to vector<3x32xf32>
    %1325 = arith.negf %1324 : vector<3x32xf32>
    %1326 = math.exp %1325 : vector<3x32xf32>
    %cst_369 = arith.constant 1.000000e+00 : f32
    %1327 = vector.broadcast %cst_369 : f32 to vector<3x32xf32>
    %1328 = arith.addf %1327, %1326 : vector<3x32xf32>
    %1329 = arith.divf %1327, %1328 : vector<3x32xf32>
    %1330 = vector.extract_strided_slice %1323 {offsets = [0, 32], sizes = [3, 32], strides = [1, 1]} : vector<3x128xf32> to vector<3x32xf32>
    %1331 = arith.negf %1330 : vector<3x32xf32>
    %1332 = math.exp %1331 : vector<3x32xf32>
    %cst_370 = arith.constant 1.000000e+00 : f32
    %1333 = vector.broadcast %cst_370 : f32 to vector<3x32xf32>
    %1334 = arith.addf %1333, %1332 : vector<3x32xf32>
    %1335 = arith.divf %1333, %1334 : vector<3x32xf32>
    %1336 = vector.extract_strided_slice %1323 {offsets = [0, 64], sizes = [3, 32], strides = [1, 1]} : vector<3x128xf32> to vector<3x32xf32>
    %1337 = math.tanh %1336 : vector<3x32xf32>
    %1338 = vector.extract_strided_slice %1323 {offsets = [0, 96], sizes = [3, 32], strides = [1, 1]} : vector<3x128xf32> to vector<3x32xf32>
    %1339 = arith.negf %1338 : vector<3x32xf32>
    %1340 = math.exp %1339 : vector<3x32xf32>
    %cst_371 = arith.constant 1.000000e+00 : f32
    %1341 = vector.broadcast %cst_371 : f32 to vector<3x32xf32>
    %1342 = arith.addf %1341, %1340 : vector<3x32xf32>
    %1343 = arith.divf %1341, %1342 : vector<3x32xf32>
    %1344 = arith.mulf %1335, %1315 : vector<3x32xf32>
    %1345 = arith.mulf %1329, %1337 : vector<3x32xf32>
    %1346 = arith.addf %1344, %1345 : vector<3x32xf32>
    %1347 = math.tanh %1346 : vector<3x32xf32>
    %1348 = arith.mulf %1343, %1347 : vector<3x32xf32>
    %cst_372 = arith.constant dense<0.000000e+00> : vector<3x8xf32>
    %1349 = tpu.matmul %1348, %277, %cst_372 {dimension_numbers = #tpu.dot_dimension_numbers<[1], [1], [0], [0], [0, 0, 1, 0], [], []>} : vector<3x32xf32>, vector<8x32xf32>, vector<3x8xf32> -> vector<3x8xf32>
    %cst_373 = arith.constant dense<0xFF800000> : vector<3xf32>
    %1350 = vector.multi_reduction <maximumf>, %1349, %cst_373 [1] : vector<3x8xf32> to vector<3xf32>
    %1351 = vector.shape_cast %1350 : vector<3xf32> to vector<3x1xf32>
    %1352 = vector.broadcast %1351 : vector<3x1xf32> to vector<3x8xf32>
    %1353 = arith.subf %1349, %1352 : vector<3x8xf32>
    %1354 = math.exp %1353 : vector<3x8xf32>
    %cst_374 = arith.constant dense<0.000000e+00> : vector<3xf32>
    %1355 = vector.multi_reduction <add>, %1354, %cst_374 [1] : vector<3x8xf32> to vector<3xf32>
    %1356 = vector.shape_cast %1355 : vector<3xf32> to vector<3x1xf32>
    %1357 = tpu.reciprocal %1356 {approx = true} : vector<3x1xf32> -> vector<3x1xf32>
    %1358 = vector.broadcast %1357 : vector<3x1xf32> to vector<3x8xf32>
    %1359 = arith.mulf %1354, %1358 : vector<3x8xf32>
    %cst_375 = arith.constant dense<0.000000e+00> : vector<3x32xf32>
    %1360 = tpu.matmul %1359, %277, %cst_375 {dimension_numbers = #tpu.dot_dimension_numbers<[1], [0], [0], [1], [0, 0, 1, 1], [], []>} : vector<3x8xf32>, vector<8x32xf32>, vector<3x32xf32> -> vector<3x32xf32>
    %1361 = tpu.concatenate %1348, %1360 in 1 : vector<3x32xf32>, vector<3x32xf32> -> vector<3x64xf32>
    %cst_376 = arith.constant dense<0.000000e+00> : vector<3x32xf32>
    %1362 = tpu.matmul %1361, %279, %cst_376 {dimension_numbers = #tpu.dot_dimension_numbers<[1], [0], [0], [1], [0, 0, 1, 1], [], []>} : vector<3x64xf32>, vector<64x32xf32>, vector<3x32xf32> -> vector<3x32xf32>
    %1363 = math.tanh %1362 : vector<3x32xf32>
    %cst_377 = arith.constant dense<0.000000e+00> : vector<3x32xf32>
    %1364 = tpu.matmul %1363, %280, %cst_377 {dimension_numbers = #tpu.dot_dimension_numbers<[1], [0], [0], [1], [0, 0, 1, 1], [], []>} : vector<3x32xf32>, vector<32x32xf32>, vector<3x32xf32> -> vector<3x32xf32>
    %1365 = vector.broadcast %281 : vector<1x32xf32> to vector<3x32xf32>
    %1366 = arith.addf %1364, %1365 : vector<3x32xf32>
    %cst_378 = arith.constant dense<0xFF800000> : vector<3xf32>
    %1367 = vector.multi_reduction <maximumf>, %1366, %cst_378 [1] : vector<3x32xf32> to vector<3xf32>
    %1368 = vector.shape_cast %1367 : vector<3xf32> to vector<3x1xf32>
    %1369 = vector.broadcast %1368 : vector<3x1xf32> to vector<3x32xf32>
    %1370 = arith.subf %1366, %1369 : vector<3x32xf32>
    %1371 = math.exp %1370 : vector<3x32xf32>
    %cst_379 = arith.constant dense<0.000000e+00> : vector<3xf32>
    %1372 = vector.multi_reduction <add>, %1371, %cst_379 [1] : vector<3x32xf32> to vector<3xf32>
    %1373 = vector.shape_cast %1372 : vector<3xf32> to vector<3x1xf32>
    %1374 = math.log %1373 : vector<3x1xf32>
    %1375 = arith.addf %1374, %1368 : vector<3x1xf32>
    %1376 = vector.broadcast %1375 : vector<3x1xf32> to vector<3x32xf32>
    %1377 = arith.subf %1366, %1376 : vector<3x32xf32>
    %1378 = vector.broadcast %1293 : vector<3x1xf32> to vector<3x32xf32>
    %1379 = arith.addf %1377, %1378 : vector<3x32xf32>
    %1380 = tpu.iota {dimensions = array<i32: 1>} : vector<3x32xi32>
    %1381 = arith.sitofp %1380 : vector<3x32xi32> to vector<3x32xf32>
    %1382 = tpu.iota {dimensions = array<i32: 0>} : vector<3x32xi32>
    %1383 = arith.sitofp %1382 : vector<3x32xi32> to vector<3x32xf32>
    %cst_380 = arith.constant 3.200000e+01 : f32
    %1384 = vector.broadcast %cst_380 : f32 to vector<3x32xf32>
    %1385 = arith.mulf %1383, %1384 : vector<3x32xf32>
    %1386 = arith.addf %1385, %1381 : vector<3x32xf32>
    %cst_381 = arith.constant 0.000000e+00 : f32
    %1387 = vector.broadcast %cst_381 : f32 to vector<3x1xf32>
    %cst_382 = arith.constant 0.000000e+00 : f32
    %1388 = vector.broadcast %cst_382 : f32 to vector<3x1xf32>
    %cst_383 = arith.constant dense<0xFF800000> : vector<3xf32>
    %1389 = vector.multi_reduction <maximumf>, %1379, %cst_383 [1] : vector<3x32xf32> to vector<3xf32>
    %1390 = vector.shape_cast %1389 : vector<3xf32> to vector<3x1xf32>
    %cst_384 = arith.constant dense<0xFF800000> : vector<1xf32>
    %1391 = vector.multi_reduction <maximumf>, %1390, %cst_384 [0] : vector<3x1xf32> to vector<1xf32>
    %1392 = vector.shape_cast %1391 : vector<1xf32> to vector<1x1xf32>
    %1393 = vector.broadcast %1392 : vector<1x1xf32> to vector<3x32xf32>
    %1394 = arith.cmpf oeq, %1379, %1393 : vector<3x32xf32>
    %cst_385 = arith.constant 9.600000e+01 : f32
    %1395 = vector.broadcast %cst_385 : f32 to vector<3x32xf32>
    %1396 = arith.select %1394, %1386, %1395 : vector<3x32xi1>, vector<3x32xf32>
    %cst_386 = arith.constant dense<0x7F800000> : vector<3xf32>
    %1397 = vector.multi_reduction <minimumf>, %1396, %cst_386 [1] : vector<3x32xf32> to vector<3xf32>
    %1398 = vector.shape_cast %1397 : vector<3xf32> to vector<3x1xf32>
    %cst_387 = arith.constant dense<0x7F800000> : vector<1xf32>
    %1399 = vector.multi_reduction <minimumf>, %1398, %cst_387 [0] : vector<3x1xf32> to vector<1xf32>
    %1400 = vector.shape_cast %1399 : vector<1xf32> to vector<1x1xf32>
    %1401 = vector.broadcast %1400 : vector<1x1xf32> to vector<3x32xf32>
    %1402 = arith.cmpf oeq, %1386, %1401 : vector<3x32xf32>
    %cst_388 = arith.constant 0.000000e+00 : f32
    %1403 = vector.broadcast %cst_388 : f32 to vector<3x32xf32>
    %1404 = arith.select %1402, %1383, %1403 : vector<3x32xi1>, vector<3x32xf32>
    %cst_389 = arith.constant dense<0.000000e+00> : vector<3xf32>
    %1405 = vector.multi_reduction <add>, %1404, %cst_389 [1] : vector<3x32xf32> to vector<3xf32>
    %1406 = vector.shape_cast %1405 : vector<3xf32> to vector<3x1xf32>
    %cst_390 = arith.constant dense<0.000000e+00> : vector<1xf32>
    %1407 = vector.multi_reduction <add>, %1406, %cst_390 [0] : vector<3x1xf32> to vector<1xf32>
    %1408 = vector.shape_cast %1407 : vector<1xf32> to vector<1x1xf32>
    %c0_i32_391 = arith.constant 0 : i32
    %1409 = vector.broadcast %c0_i32_391 : i32 to vector<3x1xi32>
    %1410 = arith.cmpi eq, %282, %1409 : vector<3x1xi32>
    %1411 = vector.shape_cast %1392 : vector<1x1xf32> to vector<1x1xf32>
    %1412 = vector.broadcast %1411 : vector<1x1xf32> to vector<3x1xf32>
    %1413 = arith.select %1410, %1412, %1387 : vector<3x1xi1>, vector<3x1xf32>
    %c0_i32_392 = arith.constant 0 : i32
    %1414 = vector.broadcast %c0_i32_392 : i32 to vector<3x1xi32>
    %1415 = arith.cmpi eq, %282, %1414 : vector<3x1xi32>
    %1416 = vector.shape_cast %1408 : vector<1x1xf32> to vector<1x1xf32>
    %1417 = vector.broadcast %1416 : vector<1x1xf32> to vector<3x1xf32>
    %1418 = arith.select %1415, %1417, %1388 : vector<3x1xi1>, vector<3x1xf32>
    %cst_393 = arith.constant -1.000000e+30 : f32
    %1419 = vector.broadcast %cst_393 : f32 to vector<3x32xf32>
    %1420 = arith.select %1402, %1419, %1379 : vector<3x32xi1>, vector<3x32xf32>
    %cst_394 = arith.constant dense<0xFF800000> : vector<3xf32>
    %1421 = vector.multi_reduction <maximumf>, %1420, %cst_394 [1] : vector<3x32xf32> to vector<3xf32>
    %1422 = vector.shape_cast %1421 : vector<3xf32> to vector<3x1xf32>
    %cst_395 = arith.constant dense<0xFF800000> : vector<1xf32>
    %1423 = vector.multi_reduction <maximumf>, %1422, %cst_395 [0] : vector<3x1xf32> to vector<1xf32>
    %1424 = vector.shape_cast %1423 : vector<1xf32> to vector<1x1xf32>
    %1425 = vector.broadcast %1424 : vector<1x1xf32> to vector<3x32xf32>
    %1426 = arith.cmpf oeq, %1420, %1425 : vector<3x32xf32>
    %cst_396 = arith.constant 9.600000e+01 : f32
    %1427 = vector.broadcast %cst_396 : f32 to vector<3x32xf32>
    %1428 = arith.select %1426, %1386, %1427 : vector<3x32xi1>, vector<3x32xf32>
    %cst_397 = arith.constant dense<0x7F800000> : vector<3xf32>
    %1429 = vector.multi_reduction <minimumf>, %1428, %cst_397 [1] : vector<3x32xf32> to vector<3xf32>
    %1430 = vector.shape_cast %1429 : vector<3xf32> to vector<3x1xf32>
    %cst_398 = arith.constant dense<0x7F800000> : vector<1xf32>
    %1431 = vector.multi_reduction <minimumf>, %1430, %cst_398 [0] : vector<3x1xf32> to vector<1xf32>
    %1432 = vector.shape_cast %1431 : vector<1xf32> to vector<1x1xf32>
    %1433 = vector.broadcast %1432 : vector<1x1xf32> to vector<3x32xf32>
    %1434 = arith.cmpf oeq, %1386, %1433 : vector<3x32xf32>
    %cst_399 = arith.constant 0.000000e+00 : f32
    %1435 = vector.broadcast %cst_399 : f32 to vector<3x32xf32>
    %1436 = arith.select %1434, %1383, %1435 : vector<3x32xi1>, vector<3x32xf32>
    %cst_400 = arith.constant dense<0.000000e+00> : vector<3xf32>
    %1437 = vector.multi_reduction <add>, %1436, %cst_400 [1] : vector<3x32xf32> to vector<3xf32>
    %1438 = vector.shape_cast %1437 : vector<3xf32> to vector<3x1xf32>
    %cst_401 = arith.constant dense<0.000000e+00> : vector<1xf32>
    %1439 = vector.multi_reduction <add>, %1438, %cst_401 [0] : vector<3x1xf32> to vector<1xf32>
    %1440 = vector.shape_cast %1439 : vector<1xf32> to vector<1x1xf32>
    %c1_i32_402 = arith.constant 1 : i32
    %1441 = vector.broadcast %c1_i32_402 : i32 to vector<3x1xi32>
    %1442 = arith.cmpi eq, %282, %1441 : vector<3x1xi32>
    %1443 = vector.shape_cast %1424 : vector<1x1xf32> to vector<1x1xf32>
    %1444 = vector.broadcast %1443 : vector<1x1xf32> to vector<3x1xf32>
    %1445 = arith.select %1442, %1444, %1413 : vector<3x1xi1>, vector<3x1xf32>
    %c1_i32_403 = arith.constant 1 : i32
    %1446 = vector.broadcast %c1_i32_403 : i32 to vector<3x1xi32>
    %1447 = arith.cmpi eq, %282, %1446 : vector<3x1xi32>
    %1448 = vector.shape_cast %1440 : vector<1x1xf32> to vector<1x1xf32>
    %1449 = vector.broadcast %1448 : vector<1x1xf32> to vector<3x1xf32>
    %1450 = arith.select %1447, %1449, %1418 : vector<3x1xi1>, vector<3x1xf32>
    %cst_404 = arith.constant -1.000000e+30 : f32
    %1451 = vector.broadcast %cst_404 : f32 to vector<3x32xf32>
    %1452 = arith.select %1434, %1451, %1420 : vector<3x32xi1>, vector<3x32xf32>
    %cst_405 = arith.constant dense<0xFF800000> : vector<3xf32>
    %1453 = vector.multi_reduction <maximumf>, %1452, %cst_405 [1] : vector<3x32xf32> to vector<3xf32>
    %1454 = vector.shape_cast %1453 : vector<3xf32> to vector<3x1xf32>
    %cst_406 = arith.constant dense<0xFF800000> : vector<1xf32>
    %1455 = vector.multi_reduction <maximumf>, %1454, %cst_406 [0] : vector<3x1xf32> to vector<1xf32>
    %1456 = vector.shape_cast %1455 : vector<1xf32> to vector<1x1xf32>
    %1457 = vector.broadcast %1456 : vector<1x1xf32> to vector<3x32xf32>
    %1458 = arith.cmpf oeq, %1452, %1457 : vector<3x32xf32>
    %cst_407 = arith.constant 9.600000e+01 : f32
    %1459 = vector.broadcast %cst_407 : f32 to vector<3x32xf32>
    %1460 = arith.select %1458, %1386, %1459 : vector<3x32xi1>, vector<3x32xf32>
    %cst_408 = arith.constant dense<0x7F800000> : vector<3xf32>
    %1461 = vector.multi_reduction <minimumf>, %1460, %cst_408 [1] : vector<3x32xf32> to vector<3xf32>
    %1462 = vector.shape_cast %1461 : vector<3xf32> to vector<3x1xf32>
    %cst_409 = arith.constant dense<0x7F800000> : vector<1xf32>
    %1463 = vector.multi_reduction <minimumf>, %1462, %cst_409 [0] : vector<3x1xf32> to vector<1xf32>
    %1464 = vector.shape_cast %1463 : vector<1xf32> to vector<1x1xf32>
    %1465 = vector.broadcast %1464 : vector<1x1xf32> to vector<3x32xf32>
    %1466 = arith.cmpf oeq, %1386, %1465 : vector<3x32xf32>
    %cst_410 = arith.constant 0.000000e+00 : f32
    %1467 = vector.broadcast %cst_410 : f32 to vector<3x32xf32>
    %1468 = arith.select %1466, %1383, %1467 : vector<3x32xi1>, vector<3x32xf32>
    %cst_411 = arith.constant dense<0.000000e+00> : vector<3xf32>
    %1469 = vector.multi_reduction <add>, %1468, %cst_411 [1] : vector<3x32xf32> to vector<3xf32>
    %1470 = vector.shape_cast %1469 : vector<3xf32> to vector<3x1xf32>
    %cst_412 = arith.constant dense<0.000000e+00> : vector<1xf32>
    %1471 = vector.multi_reduction <add>, %1470, %cst_412 [0] : vector<3x1xf32> to vector<1xf32>
    %1472 = vector.shape_cast %1471 : vector<1xf32> to vector<1x1xf32>
    %c2_i32_413 = arith.constant 2 : i32
    %1473 = vector.broadcast %c2_i32_413 : i32 to vector<3x1xi32>
    %1474 = arith.cmpi eq, %282, %1473 : vector<3x1xi32>
    %1475 = vector.shape_cast %1456 : vector<1x1xf32> to vector<1x1xf32>
    %1476 = vector.broadcast %1475 : vector<1x1xf32> to vector<3x1xf32>
    %1477 = arith.select %1474, %1476, %1445 : vector<3x1xi1>, vector<3x1xf32>
    %c2_i32_414 = arith.constant 2 : i32
    %1478 = vector.broadcast %c2_i32_414 : i32 to vector<3x1xi32>
    %1479 = arith.cmpi eq, %282, %1478 : vector<3x1xi32>
    %1480 = vector.shape_cast %1472 : vector<1x1xf32> to vector<1x1xf32>
    %1481 = vector.broadcast %1480 : vector<1x1xf32> to vector<3x1xf32>
    %1482 = arith.select %1479, %1481, %1450 : vector<3x1xi1>, vector<3x1xf32>
    %1483 = vector.broadcast %1482 : vector<3x1xf32> to vector<3x3xf32>
    %1484 = arith.cmpf oeq, %1483, %463 : vector<3x3xf32>
    %1485 = arith.extui %1484 : vector<3x3xi1> to vector<3x3xi32>
    %1486 = arith.sitofp %1485 : vector<3x3xi32> to vector<3x3xf32>
    %c5_i32_415 = arith.constant 5 : i32
    %1487 = vector.broadcast %c5_i32_415 : i32 to vector<3x128xi32>
    %1488 = arith.cmpi eq, %456, %1487 : vector<3x128xi32>
    %1489 = vector.shape_cast %1298 : vector<3x1xf32> to vector<3x1xf32>
    %1490 = vector.broadcast %1489 : vector<3x1xf32> to vector<3x128xf32>
    %1491 = arith.select %1488, %1490, %1313 : vector<3x128xi1>, vector<3x128xf32>
    %cst_416 = arith.constant dense<0.000000e+00> : vector<3x128xf32>
    %1492 = tpu.matmul %1486, %1491, %cst_416 {dimension_numbers = #tpu.dot_dimension_numbers<[1], [0], [0], [1], [0, 0, 1, 1], [], []>} : vector<3x3xf32>, vector<3x128xf32>, vector<3x128xf32> -> vector<3x128xf32>
    %1493 = arith.sitofp %282 : vector<3x1xi32> to vector<3x1xf32>
    %cst_417 = arith.constant dense<0xFF800000> : vector<1xf32>
    %1494 = vector.multi_reduction <maximumf>, %1477, %cst_417 [0] : vector<3x1xf32> to vector<1xf32>
    %1495 = vector.shape_cast %1494 : vector<1xf32> to vector<1x1xf32>
    %1496 = vector.broadcast %1495 : vector<1x1xf32> to vector<3x1xf32>
    %1497 = arith.cmpf oeq, %1477, %1496 : vector<3x1xf32>
    %cst_418 = arith.constant 3.000000e+00 : f32
    %1498 = vector.broadcast %cst_418 : f32 to vector<3x1xf32>
    %1499 = arith.select %1497, %1493, %1498 : vector<3x1xi1>, vector<3x1xf32>
    %cst_419 = arith.constant dense<0x7F800000> : vector<1xf32>
    %1500 = vector.multi_reduction <minimumf>, %1499, %cst_419 [0] : vector<3x1xf32> to vector<1xf32>
    %1501 = vector.shape_cast %1500 : vector<1xf32> to vector<1x1xf32>
    %1502 = vector.broadcast %1501 : vector<1x1xf32> to vector<3x1xf32>
    %1503 = arith.cmpf oeq, %1493, %1502 : vector<3x1xf32>
    %cst_420 = arith.constant 0.000000e+00 : f32
    %1504 = vector.shape_cast %1503 : vector<3x1xi1> to vector<3x1xi1>
    %1505 = vector.broadcast %1504 : vector<3x1xi1> to vector<3x128xi1>
    %1506 = vector.broadcast %cst_420 : f32 to vector<3x128xf32>
    %1507 = arith.select %1505, %1492, %1506 : vector<3x128xi1>, vector<3x128xf32>
    %cst_421 = arith.constant dense<0.000000e+00> : vector<128xf32>
    %1508 = vector.multi_reduction <add>, %1507, %cst_421 [0] : vector<3x128xf32> to vector<128xf32>
    %1509 = vector.shape_cast %1508 : vector<128xf32> to vector<1x128xf32>
    %1510 = arith.fptosi %1509 : vector<1x128xf32> to vector<1x128xi32>
    %c0_422 = arith.constant 0 : index
    %c0_423 = arith.constant 0 : index
    %1511 = vector.load %arg5[%c0_422, %c0_423] : memref<1x128xi32, #tpu.memory_space<vmem>>, vector<1x128xi32>
    tpu.vector_store %arg5[%c0_422, %c0_423], %1510 {strides = array<i32>} : memref<1x128xi32, #tpu.memory_space<vmem>>, vector<1x128xi32>,
    return
  }
}

</mosaic_0001>

<llo_original>
// kernel: beam_search_decode.1
$region0: #{beam_search_decode.1}
  #allocation0 [shape = 'u32[]', space=smem, size = 0x4, offset = 0x4, fixed_abs, tag = 'smem constant byte address 0x4 - core index']
  #allocation1 [shape = 'u32[72,128]{1,0:T(1,128)}', space=vmem, size = 0x9000, scoped, tag = 'internal scratch']
  #allocation2 [shape = 'f32[8,32]{1,0:T(8,128)}', space=vmem, size = 0x1000, scoped, tag = 'scratch operand']
  #allocation3 [shape = 's32[1,1]{1,0:T(1,128)S(6)}', space=smem, size = 0x200, scoped, tag = 'scoped memory for beam_search_decode.1']
  #allocation4 [shape = 's32[1,1]{1,0:T(1,128)S(6)}', space=smem, size = 0x200, scoped, tag = 'scoped memory for beam_search_decode.1']
  %s0 = inlined_call_operand.vmem [shape: s32[8,1], index: 0, kind: input, shape index: {}]
  %s1 = inlined_call_operand.<no memory space> [shape: s32[1,1], index: 1, kind: input, shape index: {}]
  %s2 = inlined_call_operand.<no memory space> [shape: s32[1,1], index: 2, kind: input, shape index: {}]
  %s3 = inlined_call_operand.vmem [shape: f32[128,128], index: 3, kind: input, shape index: {}]
  %s4 = inlined_call_operand.vmem [shape: f32[104,32], index: 4, kind: input, shape index: {}]
  %s5 = inlined_call_operand.vmem [shape: s32[1,128], index: 5, kind: output, shape index: {}]
  %s6 = sld [smem:[#allocation0]]
  $region30: #{beam_search_decode.1} parent=0
    _
  %s8 = ssub.s32 1, %s6
  %s9 = scalar_select 0, %s8, %s6
  %10 = sst [smem:[#allocation3]] %s1
  %11 = sst [smem:[#allocation4]] %s2
  // Predicated region
  $region2: #{beam_search_decode.1} parent=0 // pred_check
    _
  $region3: #{beam_search_decode.1} parent=0 // pred_check_branch
    %13 = sbr.rel (0) target = $region5
  $region4: #{beam_search_decode.1} parent=0 // pred_region
    _
  $region5: #{beam_search_decode.1} parent=0 // pred_fallthru
    _
  // Predicated region
  $region6: #{beam_search_decode.1} parent=0 // pred_check
    _
  $region7: #{beam_search_decode.1} parent=0 // pred_check_branch
    %15 = sbr.rel (0) target = $region9
  $region8: #{beam_search_decode.1} parent=0 // pred_region
    _
  $region9: #{beam_search_decode.1} parent=0 // pred_fallthru
    _
  // Predicated region
  $region10: #{beam_search_decode.1} parent=0 // pred_check
    _
  $region11: #{beam_search_decode.1} parent=0 // pred_check_branch
    %17 = sbr.rel (0) target = $region13
  $region12: #{beam_search_decode.1} parent=0 // pred_region
    _
  $region13: #{beam_search_decode.1} parent=0 // pred_fallthru
    _
  // Predicated region
  $region14: #{beam_search_decode.1} parent=0 // pred_check
    _
  $region15: #{beam_search_decode.1} parent=0 // pred_check_branch
    %19 = sbr.rel (0) target = $region17
  $region16: #{beam_search_decode.1} parent=0 // pred_region
    _
  $region17: #{beam_search_decode.1} parent=0 // pred_fallthru
    _
  // Predicated region
  $region18: #{beam_search_decode.1} parent=0 // pred_check
    _
  $region19: #{beam_search_decode.1} parent=0 // pred_check_branch
    %21 = sbr.rel (0) target = $region21
  $region20: #{beam_search_decode.1} parent=0 // pred_region
    _
  $region21: #{beam_search_decode.1} parent=0 // pred_fallthru
    _
  %s22 = sld [smem:[#allocation3]]
  %s23 = sld [smem:[#allocation4]]
  %s24 = scvt.s32.f32 %s23
  %v25 = vld [vmem:[%s0] sm:$0xff]
  %v26 = vlaneseq
  %v27 = vand.u32 %v26, 127
  %28 = vset.pattern.permute.xlu0 0
  %29 = vperm.xlu0 %28, %v25
  %v30 = vpop.permute.xlu0 %29
  %vm31 = vcmp.eq.s32.totalorder %v30, %v27
  %v32 = vsel %vm31, 1, 0
  %v33 = vcvt.s32.f32 %v32
  %v34 = vld [vmem:[%s3] sm:$0xff]
  %v35 = vld [vmem:[%s3 + $0x8] sm:$0xff]
  %v36 = vld [vmem:[%s3 + $0x10] sm:$0xff]
  %v37 = vld [vmem:[%s3 + $0x18] sm:$0xff]
  %vm38 = vcmask 261120
  %v40 = vsel %vm38, %v33, 0
  %42 = vmatpush.msra.mxu0 0.0
  %43 = vmatpush.msra.mxu0 0.0
  %44 = vmatpush.msra.mxu0 0.0
  %45 = vmatpush.msra.mxu0 0.0
  %46 = vmatpush.msra.mxu0 0.0
  %47 = vmatpush.msra.mxu0 0.0
  %48 = vmatpush.msra.mxu0 0.0
  %49 = vmatpush.msra.mxu0 0.0
  %50 = vmatpush.msra.mxu0 0.0
  %51 = vmatpush.msra.mxu0 0.0
  %52 = vmatpush.msra.mxu0 0.0
  %53 = vmatpush.msra.mxu0 0.0
  %54 = vmatpush.msra.mxu0 %v37
  %55 = vmatpush.msra.mxu0 %v36
  %56 = vmatpush.msra.mxu0 %v35
  %57 = vmatpush.msra.mxu0 %v34
  %58 = vmatmul.f32.gmra.mxu0 %v40
  %v59 = vpop.f32.mrf.mxu0
  %v60 = vadd.f32 0.0, %v59
  %61 = vdwg.mxu0
  %v62 = vld [vmem:[%s3 + $0x20] sm:$0xff]
  %v63 = vld [vmem:[%s3 + $0x28] sm:$0xff]
  %v64 = vld [vmem:[%s3 + $0x30] sm:$0xff]
  %v65 = vld [vmem:[%s3 + $0x38] sm:$0xff]
  %v67 = vsel %vm38, 0.0, 0
  %69 = vmatpush.msra.mxu0 0.0
  %70 = vmatpush.msra.mxu0 0.0
  %71 = vmatpush.msra.mxu0 0.0
  %72 = vmatpush.msra.mxu0 0.0
  %73 = vmatpush.msra.mxu0 0.0
  %74 = vmatpush.msra.mxu0 0.0
  %75 = vmatpush.msra.mxu0 0.0
  %76 = vmatpush.msra.mxu0 0.0
  %77 = vmatpush.msra.mxu0 0.0
  %78 = vmatpush.msra.mxu0 0.0
  %79 = vmatpush.msra.mxu0 0.0
  %80 = vmatpush.msra.mxu0 0.0
  %81 = vmatpush.msra.mxu0 %v65
  %82 = vmatpush.msra.mxu0 %v64
  %83 = vmatpush.msra.mxu0 %v63
  %84 = vmatpush.msra.mxu0 %v62
  %85 = vmatmul.f32.gmra.mxu0 %v67
  %v86 = vpop.f32.mrf.mxu0
  %v87 = vadd.f32 0.0, %v86
  %88 = vdwg.mxu0
  %v89 = vadd.f32 %v60, %v87
  %v90 = vxor.u32 %v89, 2147483648
  %v91 = vmul.f32 %v90, 1.442695
  %v92 = vpow.pop %v91
  %v93 = vadd.f32 %v92, 1.0
  %v94 = vrcp.pop %v93
  %v95 = vmul.f32 %v93, %v94
  %v96 = vsub.f32 1.0, %v95
  %v97 = vmul.f32 %v94, %v96
  %v98 = vadd.f32 %v94, %v97
  %vm99 = vweird.f32 %v93
  %vm100 = vweird.f32 %v94
  %vm101 = vmor %vm99, %vm100
  %v102 = vsel %vm101, %v94, %v98
  %v103 = vand.u32 2147483647, %v93
  %vm104 = vcmp.eq.f32.partialorder %v103, 8.507059e+37
  %v105 = vand.u32 %v93, 2147483648
  %v106 = vor.u32 1.1754944e-38, %v105
  %v107 = vsel %vm104, %v106, %v102
  %v108 = vmul.f32 1.0, %v107
  %v109 = vtanh.pop %v89
  %v110 = vmul.f32 %v108, 0.0
  %112 = vrot.lane.b32.xlu0 %v109, 64
  %v113 = vpop.permute.xlu0 %112
  %v115 = vmul.f32 %v108, %v113
  %117 = vrot.lane.b32.xlu0 %v115, 32
  %v118 = vpop.permute.xlu0 %117
  %v120 = vadd.f32 %v110, %v118
  %v121 = vtanh.pop %v120
  %123 = vrot.lane.b32.xlu0 %v121, 64
  %v124 = vpop.permute.xlu0 %123
  %v126 = vmul.f32 %v108, %v124
  %128 = vrot.lane.b32.xlu0 %v126, 32
  %v129 = vpop.permute.xlu0 %128
  %vm131 = vcmask 253952
  %132 = vst.msk [vmem:[#allocation2] sm:$0x1] %vm131, %v129
  %p133 = scmp.gt.s32.totalorder %s22, 0
  %s134 = scalar_select %p133, 1, 0
  %v135 = vstv %s134
  %vm136 = vcmp.eq.s32.totalorder %v135, 1
  %v137 = vsel %vm136, %v126, 0.0
  %v138 = vsel %vm136, %v120, 0.0
  %140 = vrot.lane.b32.xlu0 %v137, 32
  %v141 = vpop.permute.xlu0 %140
  %v142 = vsel %vm38, %v141, 0
  %144 = vmatpush.msra.mxu0 0.0
  %145 = vmatpush.msra.mxu0 0.0
  %146 = vmatpush.msra.mxu0 0.0
  %147 = vmatpush.msra.mxu0 0.0
  %148 = vmatpush.msra.mxu0 0.0
  %149 = vmatpush.msra.mxu0 0.0
  %150 = vmatpush.msra.mxu0 0.0
  %151 = vmatpush.msra.mxu0 0.0
  %152 = vmatpush.msra.mxu0 0.0
  %153 = vmatpush.msra.mxu0 0.0
  %154 = vmatpush.msra.mxu0 0.0
  %155 = vmatpush.msra.mxu0 0.0
  %156 = vmatpush.msra.mxu0 %v65
  %157 = vmatpush.msra.mxu0 %v64
  %158 = vmatpush.msra.mxu0 %v63
  %159 = vmatpush.msra.mxu0 %v62
  %160 = vmatmul.f32.gmra.mxu0 %v142
  %v161 = vpop.f32.mrf.mxu0
  %v162 = vadd.f32 0.0, %v161
  %163 = vdwg.mxu0
  %v165 = vrot.slane %v162, 7
  %v167 = vadd.f32 %v60, %v165
  %v168 = vxor.u32 %v167, 2147483648
  %v169 = vmul.f32 %v168, 1.442695
  %v170 = vpow.pop %v169
  %v171 = vadd.f32 %v170, 1.0
  %v172 = vrcp.pop %v171
  %v173 = vmul.f32 %v171, %v172
  %v174 = vsub.f32 1.0, %v173
  %v175 = vmul.f32 %v172, %v174
  %v176 = vadd.f32 %v172, %v175
  %vm177 = vweird.f32 %v171
  %vm178 = vweird.f32 %v172
  %vm179 = vmor %vm177, %vm178
  %v180 = vsel %vm179, %v172, %v176
  %v181 = vand.u32 2147483647, %v171
  %vm182 = vcmp.eq.f32.partialorder %v181, 8.507059e+37
  %v183 = vand.u32 %v171, 2147483648
  %v184 = vor.u32 1.1754944e-38, %v183
  %v185 = vsel %vm182, %v184, %v180
  %v186 = vmul.f32 1.0, %v185
  %v187 = vtanh.pop %v167
  %v189 = vrot.slane %v138, 7
  %v191 = vmul.f32 %v186, %v189
  %193 = vrot.lane.b32.xlu0 %v187, 64
  %v194 = vpop.permute.xlu0 %193
  %v196 = vmul.f32 %v186, %v194
  %198 = vrot.lane.b32.xlu0 %v196, 32
  %v199 = vpop.permute.xlu0 %198
  %v201 = vadd.f32 %v191, %v199
  %v202 = vtanh.pop %v201
  %204 = vrot.lane.b32.xlu0 %v202, 64
  %v205 = vpop.permute.xlu0 %204
  %v207 = vmul.f32 %v186, %v205
  %209 = vrot.lane.b32.xlu0 %v207, 32
  %v210 = vpop.permute.xlu0 %209
  %vm212 = vcmask 254977
  %213 = vst.msk [vmem:[#allocation2] sm:$0x2] %vm212, %v210
  %p214 = scmp.gt.s32.totalorder %s22, 1
  %s215 = scalar_select %p214, 1, 0
  %v216 = vstv %s215
  %vm217 = vcmp.eq.s32.totalorder %v216, 1
  %v218 = vrot.slane %v137, 7
  %v220 = vsel %vm217, %v207, %v218
  %v221 = vsel %vm217, %v201, %v189
  %v223 = vrot.slane %v220, 1
  %224 = vrot.lane.b32.xlu0 %v223, 32
  %v225 = vpop.permute.xlu0 %224
  %v226 = vsel %vm38, %v225, 0
  %228 = vmatpush.msra.mxu0 0.0
  %229 = vmatpush.msra.mxu0 0.0
  %230 = vmatpush.msra.mxu0 0.0
  %231 = vmatpush.msra.mxu0 0.0
  %232 = vmatpush.msra.mxu0 0.0
  %233 = vmatpush.msra.mxu0 0.0
  %234 = vmatpush.msra.mxu0 0.0
  %235 = vmatpush.msra.mxu0 0.0
  %236 = vmatpush.msra.mxu0 0.0
  %237 = vmatpush.msra.mxu0 0.0
  %238 = vmatpush.msra.mxu0 0.0
  %239 = vmatpush.msra.mxu0 0.0
  %240 = vmatpush.msra.mxu0 %v65
  %241 = vmatpush.msra.mxu0 %v64
  %242 = vmatpush.msra.mxu0 %v63
  %243 = vmatpush.msra.mxu0 %v62
  %244 = vmatmul.f32.gmra.mxu0 %v226
  %v245 = vpop.f32.mrf.mxu0
  %v246 = vadd.f32 0.0, %v245
  %247 = vdwg.mxu0
  %v249 = vrot.slane %v246, 6
  %v251 = vadd.f32 %v60, %v249
  %v252 = vxor.u32 %v251, 2147483648
  %v253 = vmul.f32 %v252, 1.442695
  %v254 = vpow.pop %v253
  %v255 = vadd.f32 %v254, 1.0
  %v256 = vrcp.pop %v255
  %v257 = vmul.f32 %v255, %v256
  %v258 = vsub.f32 1.0, %v257
  %v259 = vmul.f32 %v256, %v258
  %v260 = vadd.f32 %v256, %v259
  %vm261 = vweird.f32 %v255
  %vm262 = vweird.f32 %v256
  %vm263 = vmor %vm261, %vm262
  %v264 = vsel %vm263, %v256, %v260
  %v265 = vand.u32 2147483647, %v255
  %vm266 = vcmp.eq.f32.partialorder %v265, 8.507059e+37
  %v267 = vand.u32 %v255, 2147483648
  %v268 = vor.u32 1.1754944e-38, %v267
  %v269 = vsel %vm266, %v268, %v264
  %v270 = vmul.f32 1.0, %v269
  %v271 = vtanh.pop %v251
  %v273 = vrot.slane %v221, 7
  %v275 = vmul.f32 %v270, %v273
  %277 = vrot.lane.b32.xlu0 %v271, 64
  %v278 = vpop.permute.xlu0 %277
  %v280 = vmul.f32 %v270, %v278
  %282 = vrot.lane.b32.xlu0 %v280, 32
  %v283 = vpop.permute.xlu0 %282
  %v285 = vadd.f32 %v275, %v283
  %v286 = vtanh.pop %v285
  %288 = vrot.lane.b32.xlu0 %v286, 64
  %v289 = vpop.permute.xlu0 %288
  %v291 = vmul.f32 %v270, %v289
  %293 = vrot.lane.b32.xlu0 %v291, 32
  %v294 = vpop.permute.xlu0 %293
  %vm296 = vcmask 256002
  %297 = vst.msk [vmem:[#allocation2] sm:$0x4] %vm296, %v294
  %p298 = scmp.gt.s32.totalorder %s22, 2
  %s299 = scalar_select %p298, 1, 0
  %v300 = vstv %s299
  %vm301 = vcmp.eq.s32.totalorder %v300, 1
  %v302 = vrot.slane %v220, 7
  %v304 = vsel %vm301, %v291, %v302
  %v305 = vsel %vm301, %v285, %v273
  %v307 = vrot.slane %v304, 2
  %308 = vrot.lane.b32.xlu0 %v307, 32
  %v309 = vpop.permute.xlu0 %308
  %v310 = vsel %vm38, %v309, 0
  %312 = vmatpush.msra.mxu0 0.0
  %313 = vmatpush.msra.mxu0 0.0
  %314 = vmatpush.msra.mxu0 0.0
  %315 = vmatpush.msra.mxu0 0.0
  %316 = vmatpush.msra.mxu0 0.0
  %317 = vmatpush.msra.mxu0 0.0
  %318 = vmatpush.msra.mxu0 0.0
  %319 = vmatpush.msra.mxu0 0.0
  %320 = vmatpush.msra.mxu0 0.0
  %321 = vmatpush.msra.mxu0 0.0
  %322 = vmatpush.msra.mxu0 0.0
  %323 = vmatpush.msra.mxu0 0.0
  %324 = vmatpush.msra.mxu0 %v65
  %325 = vmatpush.msra.mxu0 %v64
  %326 = vmatpush.msra.mxu0 %v63
  %327 = vmatpush.msra.mxu0 %v62
  %328 = vmatmul.f32.gmra.mxu0 %v310
  %v329 = vpop.f32.mrf.mxu0
  %v330 = vadd.f32 0.0, %v329
  %331 = vdwg.mxu0
  %v333 = vrot.slane %v330, 5
  %v335 = vadd.f32 %v60, %v333
  %v336 = vxor.u32 %v335, 2147483648
  %v337 = vmul.f32 %v336, 1.442695
  %v338 = vpow.pop %v337
  %v339 = vadd.f32 %v338, 1.0
  %v340 = vrcp.pop %v339
  %v341 = vmul.f32 %v339, %v340
  %v342 = vsub.f32 1.0, %v341
  %v343 = vmul.f32 %v340, %v342
  %v344 = vadd.f32 %v340, %v343
  %vm345 = vweird.f32 %v339
  %vm346 = vweird.f32 %v340
  %vm347 = vmor %vm345, %vm346
  %v348 = vsel %vm347, %v340, %v344
  %v349 = vand.u32 2147483647, %v339
  %vm350 = vcmp.eq.f32.partialorder %v349, 8.507059e+37
  %v351 = vand.u32 %v339, 2147483648
  %v352 = vor.u32 1.1754944e-38, %v351
  %v353 = vsel %vm350, %v352, %v348
  %v354 = vmul.f32 1.0, %v353
  %v355 = vtanh.pop %v335
  %v357 = vrot.slane %v305, 7
  %v359 = vmul.f32 %v354, %v357
  %361 = vrot.lane.b32.xlu0 %v355, 64
  %v362 = vpop.permute.xlu0 %361
  %v364 = vmul.f32 %v354, %v362
  %366 = vrot.lane.b32.xlu0 %v364, 32
  %v367 = vpop.permute.xlu0 %366
  %v369 = vadd.f32 %v359, %v367
  %v370 = vtanh.pop %v369
  %372 = vrot.lane.b32.xlu0 %v370, 64
  %v373 = vpop.permute.xlu0 %372
  %v375 = vmul.f32 %v354, %v373
  %377 = vrot.lane.b32.xlu0 %v375, 32
  %v378 = vpop.permute.xlu0 %377
  %vm380 = vcmask 257027
  %381 = vst.msk [vmem:[#allocation2] sm:$0x8] %vm380, %v378
  %p382 = scmp.gt.s32.totalorder %s22, 3
  %s383 = scalar_select %p382, 1, 0
  %v384 = vstv %s383
  %vm385 = vcmp.eq.s32.totalorder %v384, 1
  %v386 = vrot.slane %v304, 7
  %v388 = vsel %vm385, %v375, %v386
  %v389 = vsel %vm385, %v369, %v357
  %v391 = vrot.slane %v388, 3
  %392 = vrot.lane.b32.xlu0 %v391, 32
  %v393 = vpop.permute.xlu0 %392
  %v394 = vsel %vm38, %v393, 0
  %396 = vmatpush.msra.mxu0 0.0
  %397 = vmatpush.msra.mxu0 0.0
  %398 = vmatpush.msra.mxu0 0.0
  %399 = vmatpush.msra.mxu0 0.0
  %400 = vmatpush.msra.mxu0 0.0
  %401 = vmatpush.msra.mxu0 0.0
  %402 = vmatpush.msra.mxu0 0.0
  %403 = vmatpush.msra.mxu0 0.0
  %404 = vmatpush.msra.mxu0 0.0
  %405 = vmatpush.msra.mxu0 0.0
  %406 = vmatpush.msra.mxu0 0.0
  %407 = vmatpush.msra.mxu0 0.0
  %408 = vmatpush.msra.mxu0 %v65
  %409 = vmatpush.msra.mxu0 %v64
  %410 = vmatpush.msra.mxu0 %v63
  %411 = vmatpush.msra.mxu0 %v62
  %412 = vmatmul.f32.gmra.mxu0 %v394
  %v413 = vpop.f32.mrf.mxu0
  %v414 = vadd.f32 0.0, %v413
  %415 = vdwg.mxu0
  %v417 = vrot.slane %v414, 4
  %v419 = vadd.f32 %v60, %v417
  %v420 = vxor.u32 %v419, 2147483648
  %v421 = vmul.f32 %v420, 1.442695
  %v422 = vpow.pop %v421
  %v423 = vadd.f32 %v422, 1.0
  %v424 = vrcp.pop %v423
  %v425 = vmul.f32 %v423, %v424
  %v426 = vsub.f32 1.0, %v425
  %v427 = vmul.f32 %v424, %v426
  %v428 = vadd.f32 %v424, %v427
  %vm429 = vweird.f32 %v423
  %vm430 = vweird.f32 %v424
  %vm431 = vmor %vm429, %vm430
  %v432 = vsel %vm431, %v424, %v428
  %v433 = vand.u32 2147483647, %v423
  %vm434 = vcmp.eq.f32.partialorder %v433, 8.507059e+37
  %v435 = vand.u32 %v423, 2147483648
  %v436 = vor.u32 1.1754944e-38, %v435
  %v437 = vsel %vm434, %v436, %v432
  %v438 = vmul.f32 1.0, %v437
  %v439 = vtanh.pop %v419
  %v441 = vrot.slane %v389, 7
  %v443 = vmul.f32 %v438, %v441
  %445 = vrot.lane.b32.xlu0 %v439, 64
  %v446 = vpop.permute.xlu0 %445
  %v448 = vmul.f32 %v438, %v446
  %450 = vrot.lane.b32.xlu0 %v448, 32
  %v451 = vpop.permute.xlu0 %450
  %v453 = vadd.f32 %v443, %v451
  %v454 = vtanh.pop %v453
  %456 = vrot.lane.b32.xlu0 %v454, 64
  %v457 = vpop.permute.xlu0 %456
  %v459 = vmul.f32 %v438, %v457
  %461 = vrot.lane.b32.xlu0 %v459, 32
  %v462 = vpop.permute.xlu0 %461
  %vm464 = vcmask 258052
  %465 = vst.msk [vmem:[#allocation2] sm:$0x10] %vm464, %v462
  %p466 = scmp.gt.s32.totalorder %s22, 4
  %s467 = scalar_select %p466, 1, 0
  %v468 = vstv %s467
  %vm469 = vcmp.eq.s32.totalorder %v468, 1
  %v470 = vrot.slane %v388, 7
  %v472 = vsel %vm469, %v459, %v470
  %v473 = vsel %vm469, %v453, %v441
  %v475 = vrot.slane %v472, 4
  %476 = vrot.lane.b32.xlu0 %v475, 32
  %v477 = vpop.permute.xlu0 %476
  %v478 = vsel %vm38, %v477, 0
  %480 = vmatpush.msra.mxu0 0.0
  %481 = vmatpush.msra.mxu0 0.0
  %482 = vmatpush.msra.mxu0 0.0
  %483 = vmatpush.msra.mxu0 0.0
  %484 = vmatpush.msra.mxu0 0.0
  %485 = vmatpush.msra.mxu0 0.0
  %486 = vmatpush.msra.mxu0 0.0
  %487 = vmatpush.msra.mxu0 0.0
  %488 = vmatpush.msra.mxu0 0.0
  %489 = vmatpush.msra.mxu0 0.0
  %490 = vmatpush.msra.mxu0 0.0
  %491 = vmatpush.msra.mxu0 0.0
  %492 = vmatpush.msra.mxu0 %v65
  %493 = vmatpush.msra.mxu0 %v64
  %494 = vmatpush.msra.mxu0 %v63
  %495 = vmatpush.msra.mxu0 %v62
  %496 = vmatmul.f32.gmra.mxu0 %v478
  %v497 = vpop.f32.mrf.mxu0
  %v498 = vadd.f32 0.0, %v497
  %499 = vdwg.mxu0
  %v501 = vrot.slane %v498, 3
  %v503 = vadd.f32 %v60, %v501
  %v504 = vxor.u32 %v503, 2147483648
  %v505 = vmul.f32 %v504, 1.442695
  %v506 = vpow.pop %v505
  %v507 = vadd.f32 %v506, 1.0
  %v508 = vrcp.pop %v507
  %v509 = vmul.f32 %v507, %v508
  %v510 = vsub.f32 1.0, %v509
  %v511 = vmul.f32 %v508, %v510
  %v512 = vadd.f32 %v508, %v511
  %vm513 = vweird.f32 %v507
  %vm514 = vweird.f32 %v508
  %vm515 = vmor %vm513, %vm514
  %v516 = vsel %vm515, %v508, %v512
  %v517 = vand.u32 2147483647, %v507
  %vm518 = vcmp.eq.f32.partialorder %v517, 8.507059e+37
  %v519 = vand.u32 %v507, 2147483648
  %v520 = vor.u32 1.1754944e-38, %v519
  %v521 = vsel %vm518, %v520, %v516
  %v522 = vmul.f32 1.0, %v521
  %v523 = vtanh.pop %v503
  %v525 = vrot.slane %v473, 7
  %v527 = vmul.f32 %v522, %v525
  %529 = vrot.lane.b32.xlu0 %v523, 64
  %v530 = vpop.permute.xlu0 %529
  %v532 = vmul.f32 %v522, %v530
  %534 = vrot.lane.b32.xlu0 %v532, 32
  %v535 = vpop.permute.xlu0 %534
  %v537 = vadd.f32 %v527, %v535
  %v538 = vtanh.pop %v537
  %540 = vrot.lane.b32.xlu0 %v538, 64
  %v541 = vpop.permute.xlu0 %540
  %v543 = vmul.f32 %v522, %v541
  %545 = vrot.lane.b32.xlu0 %v543, 32
  %v546 = vpop.permute.xlu0 %545
  %vm548 = vcmask 259077
  %549 = vst.msk [vmem:[#allocation2] sm:$0x20] %vm548, %v546
  %p550 = scmp.gt.s32.totalorder %s22, 5
  %s551 = scalar_select %p550, 1, 0
  %v552 = vstv %s551
  %vm553 = vcmp.eq.s32.totalorder %v552, 1
  %v554 = vrot.slane %v472, 7
  %v556 = vsel %vm553, %v543, %v554
  %v557 = vsel %vm553, %v537, %v525
  %v559 = vrot.slane %v556, 5
  %560 = vrot.lane.b32.xlu0 %v559, 32
  %v561 = vpop.permute.xlu0 %560
  %v562 = vsel %vm38, %v561, 0
  %564 = vmatpush.msra.mxu0 0.0
  %565 = vmatpush.msra.mxu0 0.0
  %566 = vmatpush.msra.mxu0 0.0
  %567 = vmatpush.msra.mxu0 0.0
  %568 = vmatpush.msra.mxu0 0.0
  %569 = vmatpush.msra.mxu0 0.0
  %570 = vmatpush.msra.mxu0 0.0
  %571 = vmatpush.msra.mxu0 0.0
  %572 = vmatpush.msra.mxu0 0.0
  %573 = vmatpush.msra.mxu0 0.0
  %574 = vmatpush.msra.mxu0 0.0
  %575 = vmatpush.msra.mxu0 0.0
  %576 = vmatpush.msra.mxu0 %v65
  %577 = vmatpush.msra.mxu0 %v64
  %578 = vmatpush.msra.mxu0 %v63
  %579 = vmatpush.msra.mxu0 %v62
  %580 = vmatmul.f32.gmra.mxu0 %v562
  %v581 = vpop.f32.mrf.mxu0
  %v582 = vadd.f32 0.0, %v581
  %583 = vdwg.mxu0
  %v585 = vrot.slane %v582, 2
  %v587 = vadd.f32 %v60, %v585
  %v588 = vxor.u32 %v587, 2147483648
  %v589 = vmul.f32 %v588, 1.442695
  %v590 = vpow.pop %v589
  %v591 = vadd.f32 %v590, 1.0
  %v592 = vrcp.pop %v591
  %v593 = vmul.f32 %v591, %v592
  %v594 = vsub.f32 1.0, %v593
  %v595 = vmul.f32 %v592, %v594
  %v596 = vadd.f32 %v592, %v595
  %vm597 = vweird.f32 %v591
  %vm598 = vweird.f32 %v592
  %vm599 = vmor %vm597, %vm598
  %v600 = vsel %vm599, %v592, %v596
  %v601 = vand.u32 2147483647, %v591
  %vm602 = vcmp.eq.f32.partialorder %v601, 8.507059e+37
  %v603 = vand.u32 %v591, 2147483648
  %v604 = vor.u32 1.1754944e-38, %v603
  %v605 = vsel %vm602, %v604, %v600
  %v606 = vmul.f32 1.0, %v605
  %v607 = vtanh.pop %v587
  %v609 = vrot.slane %v557, 7
  %v611 = vmul.f32 %v606, %v609
  %613 = vrot.lane.b32.xlu0 %v607, 64
  %v614 = vpop.permute.xlu0 %613
  %v616 = vmul.f32 %v606, %v614
  %618 = vrot.lane.b32.xlu0 %v616, 32
  %v619 = vpop.permute.xlu0 %618
  %v621 = vadd.f32 %v611, %v619
  %v622 = vtanh.pop %v621
  %624 = vrot.lane.b32.xlu0 %v622, 64
  %v625 = vpop.permute.xlu0 %624
  %v627 = vmul.f32 %v606, %v625
  %629 = vrot.lane.b32.xlu0 %v627, 32
  %v630 = vpop.permute.xlu0 %629
  %vm632 = vcmask 260102
  %633 = vst.msk [vmem:[#allocation2] sm:$0x40] %vm632, %v630
  %p634 = scmp.gt.s32.totalorder %s22, 6
  %s635 = scalar_select %p634, 1, 0
  %v636 = vstv %s635
  %vm637 = vcmp.eq.s32.totalorder %v636, 1
  %v638 = vrot.slane %v556, 7
  %v640 = vsel %vm637, %v627, %v638
  %v641 = vsel %vm637, %v621, %v609
  %v643 = vrot.slane %v640, 6
  %644 = vrot.lane.b32.xlu0 %v643, 32
  %v645 = vpop.permute.xlu0 %644
  %v646 = vsel %vm38, %v645, 0
  %648 = vmatpush.msra.mxu0 0.0
  %649 = vmatpush.msra.mxu0 0.0
  %650 = vmatpush.msra.mxu0 0.0
  %651 = vmatpush.msra.mxu0 0.0
  %652 = vmatpush.msra.mxu0 0.0
  %653 = vmatpush.msra.mxu0 0.0
  %654 = vmatpush.msra.mxu0 0.0
  %655 = vmatpush.msra.mxu0 0.0
  %656 = vmatpush.msra.mxu0 0.0
  %657 = vmatpush.msra.mxu0 0.0
  %658 = vmatpush.msra.mxu0 0.0
  %659 = vmatpush.msra.mxu0 0.0
  %660 = vmatpush.msra.mxu0 %v65
  %661 = vmatpush.msra.mxu0 %v64
  %662 = vmatpush.msra.mxu0 %v63
  %663 = vmatpush.msra.mxu0 %v62
  %664 = vmatmul.f32.gmra.mxu0 %v646
  %v665 = vpop.f32.mrf.mxu0
  %v666 = vadd.f32 0.0, %v665
  %667 = vdwg.mxu0
  %v669 = vrot.slane %v666, 1
  %v671 = vadd.f32 %v60, %v669
  %v672 = vxor.u32 %v671, 2147483648
  %v673 = vmul.f32 %v672, 1.442695
  %v674 = vpow.pop %v673
  %v675 = vadd.f32 %v674, 1.0
  %v676 = vrcp.pop %v675
  %v677 = vmul.f32 %v675, %v676
  %v678 = vsub.f32 1.0, %v677
  %v679 = vmul.f32 %v676, %v678
  %v680 = vadd.f32 %v676, %v679
  %vm681 = vweird.f32 %v675
  %vm682 = vweird.f32 %v676
  %vm683 = vmor %vm681, %vm682
  %v684 = vsel %vm683, %v676, %v680
  %v685 = vand.u32 2147483647, %v675
  %vm686 = vcmp.eq.f32.partialorder %v685, 8.507059e+37
  %v687 = vand.u32 %v675, 2147483648
  %v688 = vor.u32 1.1754944e-38, %v687
  %v689 = vsel %vm686, %v688, %v684
  %v690 = vmul.f32 1.0, %v689
  %v691 = vtanh.pop %v671
  %v693 = vrot.slane %v641, 7
  %v695 = vmul.f32 %v690, %v693
  %697 = vrot.lane.b32.xlu0 %v691, 64
  %v698 = vpop.permute.xlu0 %697
  %v700 = vmul.f32 %v690, %v698
  %702 = vrot.lane.b32.xlu0 %v700, 32
  %v703 = vpop.permute.xlu0 %702
  %v705 = vadd.f32 %v695, %v703
  %v706 = vtanh.pop %v705
  %708 = vrot.lane.b32.xlu0 %v706, 64
  %v709 = vpop.permute.xlu0 %708
  %v711 = vmul.f32 %v690, %v709
  %713 = vrot.lane.b32.xlu0 %v711, 32
  %v714 = vpop.permute.xlu0 %713
  %vm716 = vcmask 261127
  %717 = vst.msk [vmem:[#allocation2] sm:$0x80] %vm716, %v714
  %p718 = scmp.gt.s32.totalorder %s22, 7
  %s719 = scalar_select %p718, 1, 0
  %v720 = vstv %s719
  %vm721 = vcmp.eq.s32.totalorder %v720, 1
  %v722 = vrot.slane %v640, 7
  %v724 = vsel %vm721, %v711, %v722
  %v725 = vsel %vm721, %v705, %v693
  %v726 = vlaneseq
  %v727 = vshrl.u32 %v726, 7
  %v728 = vstv %s22
  %vm729 = vcmp.lt.s32.totalorder %v727, %v728
  %v730 = vld [vmem:[#allocation2] sm:$0xff]
  %v731 = vsel %vm729, 1, 0
  %vm732 = vcmp.eq.s32.totalorder %v731, 1
  %v733 = vsel %vm732, %v730, 0.0
  %v734 = vld [vmem:[%s3 + $0x40] sm:$0xff]
  %v735 = vld [vmem:[%s3 + $0x48] sm:$0xff]
  %v736 = vld [vmem:[%s3 + $0x50] sm:$0xff]
  %v737 = vld [vmem:[%s3 + $0x58] sm:$0xff]
  %v738 = vld [vmem:[%s3 + $0x60] sm:$0xff]
  %v739 = vld [vmem:[%s3 + $0x68] sm:$0xff]
  %v740 = vld [vmem:[%s3 + $0x70] sm:$0xff]
  %v741 = vld [vmem:[%s3 + $0x78] sm:$0xff]
  %v742 = vld [vmem:[%s4] sm:$0xff]
  %v743 = vld [vmem:[%s4 + $0x8] sm:$0xff]
  %v744 = vld [vmem:[%s4 + $0x10] sm:$0xff]
  %v745 = vld [vmem:[%s4 + $0x18] sm:$0xff]
  %v746 = vld [vmem:[%s4 + $0x20] sm:$0xff]
  %v747 = vld [vmem:[%s4 + $0x28] sm:$0xff]
  %v748 = vld [vmem:[%s4 + $0x30] sm:$0xff]
  %v749 = vld [vmem:[%s4 + $0x38] sm:$0xff]
  %v750 = vld [vmem:[%s4 + $0x40] sm:$0xff]
  %v751 = vld [vmem:[%s4 + $0x48] sm:$0xff]
  %v752 = vld [vmem:[%s4 + $0x50] sm:$0xff]
  %v753 = vld [vmem:[%s4 + $0x58] sm:$0xff]
  %v754 = vld [vmem:[%s4 + $0x60] sm:$0x1]
  %v755 = vstv %s24
  %v756 = vadd.f32 %v755, 0.0
  %v757 = vcvt.s32.f32 %v27
  %vm758 = vcmp.eq.f32.partialorder %v756, %v757
  %v759 = vsel %vm758, 1, 0
  %v760 = vcvt.s32.f32 %v759
  %v762 = vrot.slane %v724, 7
  %763 = vrot.lane.b32.xlu0 %v762, 64
  %v764 = vpop.permute.xlu0 %763
  %v766 = vsel %vm38, %v760, %v764
  %vm767 = vcmask 523264
  %v769 = vsel %vm767, %v766, 0
  %771 = vmatpush.msra.mxu0 0.0
  %772 = vmatpush.msra.mxu0 0.0
  %773 = vmatpush.msra.mxu0 0.0
  %774 = vmatpush.msra.mxu0 0.0
  %775 = vmatpush.msra.mxu0 0.0
  %776 = vmatpush.msra.mxu0 0.0
  %777 = vmatpush.msra.mxu0 0.0
  %778 = vmatpush.msra.mxu0 0.0
  %779 = vmatpush.msra.mxu0 %v741
  %780 = vmatpush.msra.mxu0 %v740
  %781 = vmatpush.msra.mxu0 %v739
  %782 = vmatpush.msra.mxu0 %v738
  %783 = vmatpush.msra.mxu0 %v737
  %784 = vmatpush.msra.mxu0 %v736
  %785 = vmatpush.msra.mxu0 %v735
  %786 = vmatpush.msra.mxu0 %v734
  %787 = vmatmul.f32.gmra.mxu0 %v769
  %v788 = vpop.f32.mrf.mxu0
  %v789 = vadd.f32 0.0, %v788
  %790 = vdwg.mxu0
  %v791 = vxor.u32 %v789, 2147483648
  %v792 = vmul.f32 %v791, 1.442695
  %v793 = vpow.pop %v792
  %v794 = vadd.f32 %v793, 1.0
  %v795 = vrcp.pop %v794
  %v796 = vmul.f32 %v794, %v795
  %v797 = vsub.f32 1.0, %v796
  %v798 = vmul.f32 %v795, %v797
  %v799 = vadd.f32 %v795, %v798
  %vm800 = vweird.f32 %v794
  %vm801 = vweird.f32 %v795
  %vm802 = vmor %vm800, %vm801
  %v803 = vsel %vm802, %v795, %v799
  %v804 = vand.u32 2147483647, %v794
  %vm805 = vcmp.eq.f32.partialorder %v804, 8.507059e+37
  %v806 = vand.u32 %v794, 2147483648
  %v807 = vor.u32 1.1754944e-38, %v806
  %v808 = vsel %vm805, %v807, %v803
  %v809 = vmul.f32 1.0, %v808
  %v810 = vtanh.pop %v789
  %v812 = vrot.slane %v725, 7
  %v814 = vmul.f32 %v809, %v812
  %816 = vrot.lane.b32.xlu0 %v810, 64
  %v817 = vpop.permute.xlu0 %816
  %v819 = vmul.f32 %v809, %v817
  %821 = vrot.lane.b32.xlu0 %v819, 32
  %v822 = vpop.permute.xlu0 %821
  %v824 = vadd.f32 %v814, %v822
  %v825 = vtanh.pop %v824
  %827 = vrot.lane.b32.xlu0 %v825, 64
  %v828 = vpop.permute.xlu0 %827
  %v830 = vmul.f32 %v809, %v828
  %832 = vrot.lane.b32.xlu0 %v830, 32
  %v833 = vpop.permute.xlu0 %832
  %v834 = vsel %vm38, %v833, 0
  %v837 = vsel %vm38, %v733, 0
  %839 = vmatpush.xpose.msra.mxu0 0.0
  %840 = vmatpush.xpose.msra.mxu0 0.0
  %841 = vmatpush.xpose.msra.mxu0 0.0
  %842 = vmatpush.xpose.msra.mxu0 0.0
  %843 = vmatpush.xpose.msra.mxu0 0.0
  %844 = vmatpush.xpose.msra.mxu0 0.0
  %845 = vmatpush.xpose.msra.mxu0 0.0
  %846 = vmatpush.xpose.msra.mxu0 0.0
  %847 = vmatpush.xpose.msra.mxu0 0.0
  %848 = vmatpush.xpose.msra.mxu0 0.0
  %849 = vmatpush.xpose.msra.mxu0 0.0
  %850 = vmatpush.xpose.msra.mxu0 0.0
  %851 = vmatpush.xpose.msra.mxu0 0.0
  %852 = vmatpush.xpose.msra.mxu0 0.0
  %853 = vmatpush.xpose.msra.mxu0 0.0
  %854 = vmatpush.xpose.msra.mxu0 %v837
  %855 = vmatmul.f32.gmra.mxu0 %v834
  %v856 = vpop.f32.mrf.mxu0
  %v857 = vadd.f32 0.0, %v856
  %858 = vdwg.mxu0
  %vm859 = vcmask 57344
  %v860 = vsel %vm859, %v857, -inf
  %861 = vmax.xlane.f32.xlu0 %v860
  %v862 = vpop.xlane.xlu0 %861
  %v863 = vsub.f32 %v857, %v862
  %v864 = vmul.f32 %v863, 1.442695
  %v865 = vpow.pop %v864
  %v866 = vsel %vm859, %v865, 0.0
  %867 = vadd.xlane.f32.xlu0 %v866
  %v868 = vpop.xlane.xlu0 %867
  %v869 = vrcp.pop %v868
  %v870 = vmul.f32 %v865, %v869
  %vm871 = vcmask 64512
  %v873 = vsel %vm871, %v870, 0
  %875 = vmatpush.msra.mxu0 0.0
  %876 = vmatpush.msra.mxu0 0.0
  %877 = vmatpush.msra.mxu0 0.0
  %878 = vmatpush.msra.mxu0 0.0
  %879 = vmatpush.msra.mxu0 0.0
  %880 = vmatpush.msra.mxu0 0.0
  %881 = vmatpush.msra.mxu0 0.0
  %882 = vmatpush.msra.mxu0 0.0
  %883 = vmatpush.msra.mxu0 0.0
  %884 = vmatpush.msra.mxu0 0.0
  %885 = vmatpush.msra.mxu0 0.0
  %886 = vmatpush.msra.mxu0 0.0
  %887 = vmatpush.msra.mxu0 0.0
  %888 = vmatpush.msra.mxu0 0.0
  %889 = vmatpush.msra.mxu0 0.0
  %890 = vmatpush.msra.mxu0 %v733
  %891 = vmatmul.f32.gmra.mxu0 %v873
  %v892 = vpop.f32.mrf.mxu0
  %v893 = vadd.f32 0.0, %v892
  %894 = vdwg.mxu0
  %897 = vrot.lane.b32.xlu0 %v893, 32
  %v898 = vpop.permute.xlu0 %897
  %v900 = vsel %vm38, %v833, %v898
  %v902 = vsel %vm767, %v900, 0
  %904 = vmatpush.msra.mxu0 0.0
  %905 = vmatpush.msra.mxu0 0.0
  %906 = vmatpush.msra.mxu0 0.0
  %907 = vmatpush.msra.mxu0 0.0
  %908 = vmatpush.msra.mxu0 0.0
  %909 = vmatpush.msra.mxu0 0.0
  %910 = vmatpush.msra.mxu0 0.0
  %911 = vmatpush.msra.mxu0 0.0
  %912 = vmatpush.msra.mxu0 %v749
  %913 = vmatpush.msra.mxu0 %v748
  %914 = vmatpush.msra.mxu0 %v747
  %915 = vmatpush.msra.mxu0 %v746
  %916 = vmatpush.msra.mxu0 %v745
  %917 = vmatpush.msra.mxu0 %v744
  %918 = vmatpush.msra.mxu0 %v743
  %919 = vmatpush.msra.mxu0 %v742
  %920 = vmatmul.f32.gmra.mxu0 %v902
  %v921 = vpop.f32.mrf.mxu0
  %v922 = vadd.f32 0.0, %v921
  %923 = vdwg.mxu0
  %v924 = vtanh.pop %v922
  %v926 = vsel %vm38, %v924, 0
  %928 = vmatpush.msra.mxu0 0.0
  %929 = vmatpush.msra.mxu0 0.0
  %930 = vmatpush.msra.mxu0 0.0
  %931 = vmatpush.msra.mxu0 0.0
  %932 = vmatpush.msra.mxu0 0.0
  %933 = vmatpush.msra.mxu0 0.0
  %934 = vmatpush.msra.mxu0 0.0
  %935 = vmatpush.msra.mxu0 0.0
  %936 = vmatpush.msra.mxu0 0.0
  %937 = vmatpush.msra.mxu0 0.0
  %938 = vmatpush.msra.mxu0 0.0
  %939 = vmatpush.msra.mxu0 0.0
  %940 = vmatpush.msra.mxu0 %v753
  %941 = vmatpush.msra.mxu0 %v752
  %942 = vmatpush.msra.mxu0 %v751
  %943 = vmatpush.msra.mxu0 %v750
  %944 = vmatmul.f32.gmra.mxu0 %v926
  %v945 = vpop.f32.mrf.mxu0
  %v946 = vadd.f32 %v754, %v945
  %947 = vdwg.mxu0
  %v948 = vsel %vm131, %v946, -inf
  %949 = vmax.xlane.f32.xlu0 %v948
  %v950 = vpop.xlane.xlu0 %949
  %v951 = vsub.f32 %v946, %v950
  %v952 = vmul.f32 %v951, 1.442695
  %v953 = vpow.pop %v952
  %v954 = vsel %vm131, %v953, 0.0
  %955 = vadd.xlane.f32.xlu0 %v954
  %v956 = vpop.xlane.xlu0 %955
  %v957 = vlog2.pop %v956
  %v958 = vmul.f32 %v957, 0.6931472
  %v959 = vadd.f32 %v958, %v950
  %v960 = vsub.f32 %v946, %v959
  %v961 = vcvt.s32.f32 %v727
  %v962 = vmul.f32 %v961, 32.0
  %v963 = vadd.f32 %v962, %v757
  %v964 = vsel %vm131, %v960, -inf
  %965 = vmax.xlane.f32.xlu0 %v964
  %v966 = vpop.xlane.xlu0 %965
  %vm967 = vcmp.eq.f32.partialorder %v960, %v966
  %v968 = vsel %vm967, %v963, 32.0
  %v969 = vsel %vm131, %v968, inf
  %970 = vmin.xlane.f32.xlu0 %v969
  %v971 = vpop.xlane.xlu0 %970
  %vm972 = vcmp.eq.f32.partialorder %v963, %v971
  %v973 = vsel %vm972, %v757, 0.0
  %v974 = vsel %vm131, %v973, 0.0
  %975 = vadd.xlane.f32.xlu0 %v974
  %v976 = vpop.xlane.xlu0 %975
  %v977 = vadd.f32 %v976, 0.0
  %vm978 = vcmp.eq.s32.totalorder %v727, 0
  %v979 = vperm.slane %v966, 0
  %v980 = vsel %vm978, %v979, 0.0
  %v981 = vperm.slane %v977, 0
  %v982 = vsel %vm978, %v981, 0.0
  %v983 = vsel %vm972, -1e+30, %v960
  %v984 = vsel %vm131, %v983, -inf
  %985 = vmax.xlane.f32.xlu0 %v984
  %v986 = vpop.xlane.xlu0 %985
  %vm987 = vcmp.eq.f32.partialorder %v983, %v986
  %v988 = vsel %vm987, %v963, 32.0
  %v989 = vsel %vm131, %v988, inf
  %990 = vmin.xlane.f32.xlu0 %v989
  %v991 = vpop.xlane.xlu0 %990
  %vm992 = vcmp.eq.f32.partialorder %v963, %v991
  %v993 = vsel %vm992, %v757, 0.0
  %v994 = vsel %vm131, %v993, 0.0
  %995 = vadd.xlane.f32.xlu0 %v994
  %v996 = vpop.xlane.xlu0 %995
  %v997 = vadd.f32 %v996, 0.0
  %vm998 = vcmp.eq.s32.totalorder %v727, 1
  %v999 = vperm.slane %v986, 0
  %v1000 = vsel %vm998, %v999, %v980
  %v1001 = vperm.slane %v997, 0
  %v1002 = vsel %vm998, %v1001, %v982
  %v1003 = vsel %vm992, -1e+30, %v983
  %v1004 = vsel %vm131, %v1003, -inf
  %1005 = vmax.xlane.f32.xlu0 %v1004
  %v1006 = vpop.xlane.xlu0 %1005
  %vm1007 = vcmp.eq.f32.partialorder %v1003, %v1006
  %v1008 = vsel %vm1007, %v963, 32.0
  %v1009 = vsel %vm131, %v1008, inf
  %1010 = vmin.xlane.f32.xlu0 %v1009
  %v1011 = vpop.xlane.xlu0 %1010
  %vm1012 = vcmp.eq.f32.partialorder %v963, %v1011
  %v1013 = vsel %vm1012, %v757, 0.0
  %v1014 = vsel %vm131, %v1013, 0.0
  %1015 = vadd.xlane.f32.xlu0 %v1014
  %v1016 = vpop.xlane.xlu0 %1015
  %v1017 = vadd.f32 %v1016, 0.0
  %vm1018 = vcmp.eq.s32.totalorder %v727, 2
  %v1019 = vperm.slane %v1006, 0
  %v1020 = vsel %vm1018, %v1019, %v1000
  %v1021 = vperm.slane %v1017, 0
  %v1022 = vsel %vm1018, %v1021, %v1002
  %v1023 = vperm.slane %v830, 0
  %v1024 = vadd.f32 %v1023, 0.0
  %v1025 = vperm.slane %v824, 0
  %v1026 = vadd.f32 %v1025, 0.0
  %vm1027 = vcmp.eq.s32.totalorder %v27, 0
  %v1028 = vsel %vm1027, %v755, 0.0
  %vm1029 = vcmp.eq.f32.partialorder %v1022, %v757
  %v1030 = vsel %vm1029, 1, 0
  %v1031 = vcvt.s32.f32 %v1030
  %1033 = vrot.lane.b32.xlu0 %v1024, 64
  %v1034 = vpop.permute.xlu0 %1033
  %v1036 = vsel %vm38, %v1031, %v1034
  %v1038 = vsel %vm767, %v1036, 0
  %1040 = vmatpush.msra.mxu0 0.0
  %1041 = vmatpush.msra.mxu0 0.0
  %1042 = vmatpush.msra.mxu0 0.0
  %1043 = vmatpush.msra.mxu0 0.0
  %1044 = vmatpush.msra.mxu0 0.0
  %1045 = vmatpush.msra.mxu0 0.0
  %1046 = vmatpush.msra.mxu0 0.0
  %1047 = vmatpush.msra.mxu0 0.0
  %1048 = vmatpush.msra.mxu0 %v741
  %1049 = vmatpush.msra.mxu0 %v740
  %1050 = vmatpush.msra.mxu0 %v739
  %1051 = vmatpush.msra.mxu0 %v738
  %1052 = vmatpush.msra.mxu0 %v737
  %1053 = vmatpush.msra.mxu0 %v736
  %1054 = vmatpush.msra.mxu0 %v735
  %1055 = vmatpush.msra.mxu0 %v734
  %1056 = vmatmul.f32.gmra.mxu0 %v1038
  %v1057 = vpop.f32.mrf.mxu0
  %v1058 = vadd.f32 0.0, %v1057
  %1059 = vdwg.mxu0
  %v1060 = vxor.u32 %v1058, 2147483648
  %v1061 = vmul.f32 %v1060, 1.442695
  %v1062 = vpow.pop %v1061
  %v1063 = vadd.f32 %v1062, 1.0
  %v1064 = vrcp.pop %v1063
  %v1065 = vmul.f32 %v1063, %v1064
  %v1066 = vsub.f32 1.0, %v1065
  %v1067 = vmul.f32 %v1064, %v1066
  %v1068 = vadd.f32 %v1064, %v1067
  %vm1069 = vweird.f32 %v1063
  %vm1070 = vweird.f32 %v1064
  %vm1071 = vmor %vm1069, %vm1070
  %v1072 = vsel %vm1071, %v1064, %v1068
  %v1073 = vand.u32 2147483647, %v1063
  %vm1074 = vcmp.eq.f32.partialorder %v1073, 8.507059e+37
  %v1075 = vand.u32 %v1063, 2147483648
  %v1076 = vor.u32 1.1754944e-38, %v1075
  %v1077 = vsel %vm1074, %v1076, %v1072
  %v1078 = vmul.f32 1.0, %v1077
  %v1079 = vtanh.pop %v1058
  %v1080 = vmul.f32 %v1078, %v1026
  %1082 = vrot.lane.b32.xlu0 %v1079, 64
  %v1083 = vpop.permute.xlu0 %1082
  %v1085 = vmul.f32 %v1078, %v1083
  %1087 = vrot.lane.b32.xlu0 %v1085, 32
  %v1088 = vpop.permute.xlu0 %1087
  %v1090 = vadd.f32 %v1080, %v1088
  %v1091 = vtanh.pop %v1090
  %1093 = vrot.lane.b32.xlu0 %v1091, 64
  %v1094 = vpop.permute.xlu0 %1093
  %v1096 = vmul.f32 %v1078, %v1094
  %1098 = vrot.lane.b32.xlu0 %v1096, 32
  %v1099 = vpop.permute.xlu0 %1098
  %v1100 = vsel %vm38, %v1099, 0
  %1102 = vmatpush.xpose.msra.mxu0 0.0
  %1103 = vmatpush.xpose.msra.mxu0 0.0
  %1104 = vmatpush.xpose.msra.mxu0 0.0
  %1105 = vmatpush.xpose.msra.mxu0 0.0
  %1106 = vmatpush.xpose.msra.mxu0 0.0
  %1107 = vmatpush.xpose.msra.mxu0 0.0
  %1108 = vmatpush.xpose.msra.mxu0 0.0
  %1109 = vmatpush.xpose.msra.mxu0 0.0
  %1110 = vmatpush.xpose.msra.mxu0 0.0
  %1111 = vmatpush.xpose.msra.mxu0 0.0
  %1112 = vmatpush.xpose.msra.mxu0 0.0
  %1113 = vmatpush.xpose.msra.mxu0 0.0
  %1114 = vmatpush.xpose.msra.mxu0 0.0
  %1115 = vmatpush.xpose.msra.mxu0 0.0
  %1116 = vmatpush.xpose.msra.mxu0 0.0
  %1117 = vmatpush.xpose.msra.mxu0 %v837
  %1118 = vmatmul.f32.gmra.mxu0 %v1100
  %v1119 = vpop.f32.mrf.mxu0
  %v1120 = vadd.f32 0.0, %v1119
  %1121 = vdwg.mxu0
  %vm1122 = vcmask 59392
  %v1123 = vsel %vm1122, %v1120, -inf
  %1124 = vmax.xlane.f32.xlu0 %v1123
  %v1125 = vpop.xlane.xlu0 %1124
  %v1126 = vsub.f32 %v1120, %v1125
  %v1127 = vmul.f32 %v1126, 1.442695
  %v1128 = vpow.pop %v1127
  %v1129 = vsel %vm1122, %v1128, 0.0
  %1130 = vadd.xlane.f32.xlu0 %v1129
  %v1131 = vpop.xlane.xlu0 %1130
  %v1132 = vrcp.pop %v1131
  %v1133 = vmul.f32 %v1128, %v1132
  %v1135 = vsel %vm871, %v1133, 0
  %1137 = vmatpush.msra.mxu0 0.0
  %1138 = vmatpush.msra.mxu0 0.0
  %1139 = vmatpush.msra.mxu0 0.0
  %1140 = vmatpush.msra.mxu0 0.0
  %1141 = vmatpush.msra.mxu0 0.0
  %1142 = vmatpush.msra.mxu0 0.0
  %1143 = vmatpush.msra.mxu0 0.0
  %1144 = vmatpush.msra.mxu0 0.0
  %1145 = vmatpush.msra.mxu0 0.0
  %1146 = vmatpush.msra.mxu0 0.0
  %1147 = vmatpush.msra.mxu0 0.0
  %1148 = vmatpush.msra.mxu0 0.0
  %1149 = vmatpush.msra.mxu0 0.0
  %1150 = vmatpush.msra.mxu0 0.0
  %1151 = vmatpush.msra.mxu0 0.0
  %1152 = vmatpush.msra.mxu0 %v733
  %1153 = vmatmul.f32.gmra.mxu0 %v1135
  %v1154 = vpop.f32.mrf.mxu0
  %v1155 = vadd.f32 0.0, %v1154
  %1156 = vdwg.mxu0
  %1159 = vrot.lane.b32.xlu0 %v1155, 32
  %v1160 = vpop.permute.xlu0 %1159
  %v1162 = vsel %vm38, %v1099, %v1160
  %v1164 = vsel %vm767, %v1162, 0
  %1166 = vmatpush.msra.mxu0 0.0
  %1167 = vmatpush.msra.mxu0 0.0
  %1168 = vmatpush.msra.mxu0 0.0
  %1169 = vmatpush.msra.mxu0 0.0
  %1170 = vmatpush.msra.mxu0 0.0
  %1171 = vmatpush.msra.mxu0 0.0
  %1172 = vmatpush.msra.mxu0 0.0
  %1173 = vmatpush.msra.mxu0 0.0
  %1174 = vmatpush.msra.mxu0 %v749
  %1175 = vmatpush.msra.mxu0 %v748
  %1176 = vmatpush.msra.mxu0 %v747
  %1177 = vmatpush.msra.mxu0 %v746
  %1178 = vmatpush.msra.mxu0 %v745
  %1179 = vmatpush.msra.mxu0 %v744
  %1180 = vmatpush.msra.mxu0 %v743
  %1181 = vmatpush.msra.mxu0 %v742
  %1182 = vmatmul.f32.gmra.mxu0 %v1164
  %v1183 = vpop.f32.mrf.mxu0
  %v1184 = vadd.f32 0.0, %v1183
  %1185 = vdwg.mxu0
  %v1186 = vtanh.pop %v1184
  %v1187 = vperm.slane %v754, 0
  %v1189 = vsel %vm38, %v1186, 0
  %1191 = vmatpush.msra.mxu0 0.0
  %1192 = vmatpush.msra.mxu0 0.0
  %1193 = vmatpush.msra.mxu0 0.0
  %1194 = vmatpush.msra.mxu0 0.0
  %1195 = vmatpush.msra.mxu0 0.0
  %1196 = vmatpush.msra.mxu0 0.0
  %1197 = vmatpush.msra.mxu0 0.0
  %1198 = vmatpush.msra.mxu0 0.0
  %1199 = vmatpush.msra.mxu0 0.0
  %1200 = vmatpush.msra.mxu0 0.0
  %1201 = vmatpush.msra.mxu0 0.0
  %1202 = vmatpush.msra.mxu0 0.0
  %1203 = vmatpush.msra.mxu0 %v753
  %1204 = vmatpush.msra.mxu0 %v752
  %1205 = vmatpush.msra.mxu0 %v751
  %1206 = vmatpush.msra.mxu0 %v750
  %1207 = vmatmul.f32.gmra.mxu0 %v1189
  %v1208 = vpop.f32.mrf.mxu0
  %v1209 = vadd.f32 %v1187, %v1208
  %1210 = vdwg.mxu0
  %vm1211 = vcmask 256000
  %v1212 = vsel %vm1211, %v1209, -inf
  %1213 = vmax.xlane.f32.xlu0 %v1212
  %v1214 = vpop.xlane.xlu0 %1213
  %v1215 = vsub.f32 %v1209, %v1214
  %v1216 = vmul.f32 %v1215, 1.442695
  %v1217 = vpow.pop %v1216
  %v1218 = vsel %vm1211, %v1217, 0.0
  %1219 = vadd.xlane.f32.xlu0 %v1218
  %v1220 = vpop.xlane.xlu0 %1219
  %v1221 = vlog2.pop %v1220
  %v1222 = vmul.f32 %v1221, 0.6931472
  %v1223 = vadd.f32 %v1222, %v1214
  %v1224 = vsub.f32 %v1209, %v1223
  %v1225 = vadd.f32 %v1224, %v1020
  %v1226 = vsel %vm1211, %v1225, -inf
  %1227 = vmax.xlane.f32.xlu0 %v1226
  %v1228 = vpop.xlane.xlu0 %1227
  %vm1229 = vcmask 1042432
  %v1230 = vsel %vm1229, %v1228, -inf
  %v1231 = vrot.slane %v1230, 4
  %v1232 = vmax.f32 %v1230, %v1231
  %v1233 = vrot.slane %v1232, 2
  %v1234 = vmax.f32 %v1232, %v1233
  %v1235 = vrot.slane %v1234, 1
  %v1236 = vmax.f32 %v1234, %v1235
  %vm1237 = vcmp.eq.f32.partialorder %v1225, %v1236
  %v1238 = vsel %vm1237, %v963, 96.0
  %v1239 = vsel %vm1211, %v1238, inf
  %1240 = vmin.xlane.f32.xlu0 %v1239
  %v1241 = vpop.xlane.xlu0 %1240
  %v1242 = vsel %vm1229, %v1241, inf
  %v1243 = vrot.slane %v1242, 4
  %v1244 = vmin.f32 %v1242, %v1243
  %v1245 = vrot.slane %v1244, 2
  %v1246 = vmin.f32 %v1244, %v1245
  %v1247 = vrot.slane %v1246, 1
  %v1248 = vmin.f32 %v1246, %v1247
  %vm1249 = vcmp.eq.f32.partialorder %v963, %v1248
  %v1250 = vsel %vm1249, %v757, 0.0
  %v1251 = vsel %vm1211, %v1250, 0.0
  %1252 = vadd.xlane.f32.xlu0 %v1251
  %v1253 = vpop.xlane.xlu0 %1252
  %v1254 = vsel %vm1229, %v1253, 0.0
  %v1255 = vrot.slane %v1254, 4
  %v1256 = vadd.f32 %v1254, %v1255
  %v1257 = vrot.slane %v1256, 2
  %v1258 = vadd.f32 %v1256, %v1257
  %v1259 = vrot.slane %v1258, 1
  %v1260 = vadd.f32 %v1258, %v1259
  %v1261 = vsel %vm1249, %v961, 0.0
  %v1262 = vsel %vm1211, %v1261, 0.0
  %1263 = vadd.xlane.f32.xlu0 %v1262
  %v1264 = vpop.xlane.xlu0 %1263
  %v1265 = vsel %vm1229, %v1264, 0.0
  %v1266 = vrot.slane %v1265, 4
  %v1267 = vadd.f32 %v1265, %v1266
  %v1268 = vrot.slane %v1267, 2
  %v1269 = vadd.f32 %v1267, %v1268
  %v1270 = vrot.slane %v1269, 1
  %v1271 = vadd.f32 %v1269, %v1270
  %v1272 = vsel %vm978, %v1236, 0.0
  %v1273 = vsel %vm978, %v1260, 0.0
  %v1274 = vsel %vm978, %v1271, 0.0
  %v1275 = vsel %vm1249, -1e+30, %v1225
  %v1276 = vsel %vm1211, %v1275, -inf
  %1277 = vmax.xlane.f32.xlu0 %v1276
  %v1278 = vpop.xlane.xlu0 %1277
  %v1279 = vsel %vm1229, %v1278, -inf
  %v1280 = vrot.slane %v1279, 4
  %v1281 = vmax.f32 %v1279, %v1280
  %v1282 = vrot.slane %v1281, 2
  %v1283 = vmax.f32 %v1281, %v1282
  %v1284 = vrot.slane %v1283, 1
  %v1285 = vmax.f32 %v1283, %v1284
  %vm1286 = vcmp.eq.f32.partialorder %v1275, %v1285
  %v1287 = vsel %vm1286, %v963, 96.0
  %v1288 = vsel %vm1211, %v1287, inf
  %1289 = vmin.xlane.f32.xlu0 %v1288
  %v1290 = vpop.xlane.xlu0 %1289
  %v1291 = vsel %vm1229, %v1290, inf
  %v1292 = vrot.slane %v1291, 4
  %v1293 = vmin.f32 %v1291, %v1292
  %v1294 = vrot.slane %v1293, 2
  %v1295 = vmin.f32 %v1293, %v1294
  %v1296 = vrot.slane %v1295, 1
  %v1297 = vmin.f32 %v1295, %v1296
  %vm1298 = vcmp.eq.f32.partialorder %v963, %v1297
  %v1299 = vsel %vm1298, %v757, 0.0
  %v1300 = vsel %vm1211, %v1299, 0.0
  %1301 = vadd.xlane.f32.xlu0 %v1300
  %v1302 = vpop.xlane.xlu0 %1301
  %v1303 = vsel %vm1229, %v1302, 0.0
  %v1304 = vrot.slane %v1303, 4
  %v1305 = vadd.f32 %v1303, %v1304
  %v1306 = vrot.slane %v1305, 2
  %v1307 = vadd.f32 %v1305, %v1306
  %v1308 = vrot.slane %v1307, 1
  %v1309 = vadd.f32 %v1307, %v1308
  %v1310 = vsel %vm1298, %v961, 0.0
  %v1311 = vsel %vm1211, %v1310, 0.0
  %1312 = vadd.xlane.f32.xlu0 %v1311
  %v1313 = vpop.xlane.xlu0 %1312
  %v1314 = vsel %vm1229, %v1313, 0.0
  %v1315 = vrot.slane %v1314, 4
  %v1316 = vadd.f32 %v1314, %v1315
  %v1317 = vrot.slane %v1316, 2
  %v1318 = vadd.f32 %v1316, %v1317
  %v1319 = vrot.slane %v1318, 1
  %v1320 = vadd.f32 %v1318, %v1319
  %v1321 = vsel %vm998, %v1285, %v1272
  %v1322 = vsel %vm998, %v1309, %v1273
  %v1323 = vsel %vm998, %v1320, %v1274
  %v1324 = vsel %vm1298, -1e+30, %v1275
  %v1325 = vsel %vm1211, %v1324, -inf
  %1326 = vmax.xlane.f32.xlu0 %v1325
  %v1327 = vpop.xlane.xlu0 %1326
  %v1328 = vsel %vm1229, %v1327, -inf
  %v1329 = vrot.slane %v1328, 4
  %v1330 = vmax.f32 %v1328, %v1329
  %v1331 = vrot.slane %v1330, 2
  %v1332 = vmax.f32 %v1330, %v1331
  %v1333 = vrot.slane %v1332, 1
  %v1334 = vmax.f32 %v1332, %v1333
  %vm1335 = vcmp.eq.f32.partialorder %v1324, %v1334
  %v1336 = vsel %vm1335, %v963, 96.0
  %v1337 = vsel %vm1211, %v1336, inf
  %1338 = vmin.xlane.f32.xlu0 %v1337
  %v1339 = vpop.xlane.xlu0 %1338
  %v1340 = vsel %vm1229, %v1339, inf
  %v1341 = vrot.slane %v1340, 4
  %v1342 = vmin.f32 %v1340, %v1341
  %v1343 = vrot.slane %v1342, 2
  %v1344 = vmin.f32 %v1342, %v1343
  %v1345 = vrot.slane %v1344, 1
  %v1346 = vmin.f32 %v1344, %v1345
  %vm1347 = vcmp.eq.f32.partialorder %v963, %v1346
  %v1348 = vsel %vm1347, %v757, 0.0
  %v1349 = vsel %vm1211, %v1348, 0.0
  %1350 = vadd.xlane.f32.xlu0 %v1349
  %v1351 = vpop.xlane.xlu0 %1350
  %v1352 = vsel %vm1229, %v1351, 0.0
  %v1353 = vrot.slane %v1352, 4
  %v1354 = vadd.f32 %v1352, %v1353
  %v1355 = vrot.slane %v1354, 2
  %v1356 = vadd.f32 %v1354, %v1355
  %v1357 = vrot.slane %v1356, 1
  %v1358 = vadd.f32 %v1356, %v1357
  %v1359 = vsel %vm1347, %v961, 0.0
  %v1360 = vsel %vm1211, %v1359, 0.0
  %1361 = vadd.xlane.f32.xlu0 %v1360
  %v1362 = vpop.xlane.xlu0 %1361
  %v1363 = vsel %vm1229, %v1362, 0.0
  %v1364 = vrot.slane %v1363, 4
  %v1365 = vadd.f32 %v1363, %v1364
  %v1366 = vrot.slane %v1365, 2
  %v1367 = vadd.f32 %v1365, %v1366
  %v1368 = vrot.slane %v1367, 1
  %v1369 = vadd.f32 %v1367, %v1368
  %v1370 = vsel %vm1018, %v1334, %v1321
  %v1371 = vsel %vm1018, %v1358, %v1322
  %v1372 = vsel %vm1018, %v1369, %v1323
  %vm1373 = vcmp.eq.f32.partialorder %v1372, %v757
  %v1374 = vsel %vm1373, 1, 0
  %v1375 = vcvt.s32.f32 %v1374
  %vm1376 = vcmp.eq.s32.totalorder %v27, 1
  %v1377 = vsel %vm1376, %v1022, %v1028
  %vm1378 = vcmask 23552
  %v1380 = vsel %vm1378, %v1375, 0
  %v1383 = vsel %vm1229, %v1377, 0
  %1385 = vmatpush.msra.mxu0 0.0
  %1386 = vmatpush.msra.mxu0 0.0
  %1387 = vmatpush.msra.mxu0 0.0
  %1388 = vmatpush.msra.mxu0 0.0
  %1389 = vmatpush.msra.mxu0 0.0
  %1390 = vmatpush.msra.mxu0 0.0
  %1391 = vmatpush.msra.mxu0 0.0
  %1392 = vmatpush.msra.mxu0 0.0
  %1393 = vmatpush.msra.mxu0 0.0
  %1394 = vmatpush.msra.mxu0 0.0
  %1395 = vmatpush.msra.mxu0 0.0
  %1396 = vmatpush.msra.mxu0 0.0
  %1397 = vmatpush.msra.mxu0 0.0
  %1398 = vmatpush.msra.mxu0 0.0
  %1399 = vmatpush.msra.mxu0 0.0
  %1400 = vmatpush.msra.mxu0 %v1383
  %1401 = vmatmul.f32.gmra.mxu0 %v1380
  %v1402 = vpop.f32.mrf.mxu0
  %v1403 = vadd.f32 0.0, %v1402
  %1404 = vdwg.mxu0
  %v1405 = vsel %vm1229, %v1099, 0
  %1407 = vmatpush.msra.mxu0 0.0
  %1408 = vmatpush.msra.mxu0 0.0
  %1409 = vmatpush.msra.mxu0 0.0
  %1410 = vmatpush.msra.mxu0 0.0
  %1411 = vmatpush.msra.mxu0 0.0
  %1412 = vmatpush.msra.mxu0 0.0
  %1413 = vmatpush.msra.mxu0 0.0
  %1414 = vmatpush.msra.mxu0 0.0
  %1415 = vmatpush.msra.mxu0 0.0
  %1416 = vmatpush.msra.mxu0 0.0
  %1417 = vmatpush.msra.mxu0 0.0
  %1418 = vmatpush.msra.mxu0 0.0
  %1419 = vmatpush.msra.mxu0 0.0
  %1420 = vmatpush.msra.mxu0 0.0
  %1421 = vmatpush.msra.mxu0 0.0
  %1422 = vmatpush.msra.mxu0 %v1405
  %1423 = vmatmul.f32.gmra.mxu0 %v1380
  %v1424 = vpop.f32.mrf.mxu0
  %v1425 = vadd.f32 0.0, %v1424
  %1426 = vdwg.mxu0
  %1428 = vrot.lane.b32.xlu0 %v1090, 96
  %v1429 = vpop.permute.xlu0 %1428
  %v1430 = vsel %vm1229, %v1429, 0
  %1432 = vmatpush.msra.mxu0 0.0
  %1433 = vmatpush.msra.mxu0 0.0
  %1434 = vmatpush.msra.mxu0 0.0
  %1435 = vmatpush.msra.mxu0 0.0
  %1436 = vmatpush.msra.mxu0 0.0
  %1437 = vmatpush.msra.mxu0 0.0
  %1438 = vmatpush.msra.mxu0 0.0
  %1439 = vmatpush.msra.mxu0 0.0
  %1440 = vmatpush.msra.mxu0 0.0
  %1441 = vmatpush.msra.mxu0 0.0
  %1442 = vmatpush.msra.mxu0 0.0
  %1443 = vmatpush.msra.mxu0 0.0
  %1444 = vmatpush.msra.mxu0 0.0
  %1445 = vmatpush.msra.mxu0 0.0
  %1446 = vmatpush.msra.mxu0 0.0
  %1447 = vmatpush.msra.mxu0 %v1430
  %1448 = vmatmul.f32.gmra.mxu0 %v1380
  %v1449 = vpop.f32.mrf.mxu0
  %v1450 = vadd.f32 0.0, %v1449
  %1451 = vdwg.mxu0
  %vm1452 = vcmp.eq.f32.partialorder %v1371, %v757
  %v1453 = vsel %vm1452, 1, 0
  %v1454 = vcvt.s32.f32 %v1453
  %1456 = vrot.lane.b32.xlu0 %v1425, 32
  %v1457 = vpop.permute.xlu0 %1456
  %v1459 = vsel %vm38, %v1454, %v1457
  %v1461 = vsel %vm767, %v1459, 0
  %1463 = vmatpush.msra.mxu0 0.0
  %1464 = vmatpush.msra.mxu0 0.0
  %1465 = vmatpush.msra.mxu0 0.0
  %1466 = vmatpush.msra.mxu0 0.0
  %1467 = vmatpush.msra.mxu0 0.0
  %1468 = vmatpush.msra.mxu0 0.0
  %1469 = vmatpush.msra.mxu0 0.0
  %1470 = vmatpush.msra.mxu0 0.0
  %1471 = vmatpush.msra.mxu0 %v741
  %1472 = vmatpush.msra.mxu0 %v740
  %1473 = vmatpush.msra.mxu0 %v739
  %1474 = vmatpush.msra.mxu0 %v738
  %1475 = vmatpush.msra.mxu0 %v737
  %1476 = vmatpush.msra.mxu0 %v736
  %1477 = vmatpush.msra.mxu0 %v735
  %1478 = vmatpush.msra.mxu0 %v734
  %1479 = vmatmul.f32.gmra.mxu0 %v1461
  %v1480 = vpop.f32.mrf.mxu0
  %v1481 = vadd.f32 0.0, %v1480
  %1482 = vdwg.mxu0
  %v1483 = vxor.u32 %v1481, 2147483648
  %v1484 = vmul.f32 %v1483, 1.442695
  %v1485 = vpow.pop %v1484
  %v1486 = vadd.f32 %v1485, 1.0
  %v1487 = vrcp.pop %v1486
  %v1488 = vmul.f32 %v1486, %v1487
  %v1489 = vsub.f32 1.0, %v1488
  %v1490 = vmul.f32 %v1487, %v1489
  %v1491 = vadd.f32 %v1487, %v1490
  %vm1492 = vweird.f32 %v1486
  %vm1493 = vweird.f32 %v1487
  %vm1494 = vmor %vm1492, %vm1493
  %v1495 = vsel %vm1494, %v1487, %v1491
  %v1496 = vand.u32 2147483647, %v1486
  %vm1497 = vcmp.eq.f32.partialorder %v1496, 8.507059e+37
  %v1498 = vand.u32 %v1486, 2147483648
  %v1499 = vor.u32 1.1754944e-38, %v1498
  %v1500 = vsel %vm1497, %v1499, %v1495
  %v1501 = vmul.f32 1.0, %v1500
  %v1502 = vtanh.pop %v1481
  %1504 = vrot.lane.b32.xlu0 %v1450, 32
  %v1505 = vpop.permute.xlu0 %1504
  %v1507 = vmul.f32 %v1501, %v1505
  %1509 = vrot.lane.b32.xlu0 %v1502, 64
  %v1510 = vpop.permute.xlu0 %1509
  %v1512 = vmul.f32 %v1501, %v1510
  %1514 = vrot.lane.b32.xlu0 %v1512, 32
  %v1515 = vpop.permute.xlu0 %1514
  %v1517 = vadd.f32 %v1507, %v1515
  %v1518 = vtanh.pop %v1517
  %1520 = vrot.lane.b32.xlu0 %v1518, 64
  %v1521 = vpop.permute.xlu0 %1520
  %v1523 = vmul.f32 %v1501, %v1521
  %1525 = vrot.lane.b32.xlu0 %v1523, 32
  %v1526 = vpop.permute.xlu0 %1525
  %v1527 = vsel %vm38, %v1526, 0
  %1529 = vmatpush.xpose.msra.mxu0 0.0
  %1530 = vmatpush.xpose.msra.mxu0 0.0
  %1531 = vmatpush.xpose.msra.mxu0 0.0
  %1532 = vmatpush.xpose.msra.mxu0 0.0
  %1533 = vmatpush.xpose.msra.mxu0 0.0
  %1534 = vmatpush.xpose.msra.mxu0 0.0
  %1535 = vmatpush.xpose.msra.mxu0 0.0
  %1536 = vmatpush.xpose.msra.mxu0 0.0
  %1537 = vmatpush.xpose.msra.mxu0 0.0
  %1538 = vmatpush.xpose.msra.mxu0 0.0
  %1539 = vmatpush.xpose.msra.mxu0 0.0
  %1540 = vmatpush.xpose.msra.mxu0 0.0
  %1541 = vmatpush.xpose.msra.mxu0 0.0
  %1542 = vmatpush.xpose.msra.mxu0 0.0
  %1543 = vmatpush.xpose.msra.mxu0 0.0
  %1544 = vmatpush.xpose.msra.mxu0 %v837
  %1545 = vmatmul.f32.gmra.mxu0 %v1527
  %v1546 = vpop.f32.mrf.mxu0
  %v1547 = vadd.f32 0.0, %v1546
  %1548 = vdwg.mxu0
  %v1549 = vsel %vm1122, %v1547, -inf
  %1550 = vmax.xlane.f32.xlu0 %v1549
  %v1551 = vpop.xlane.xlu0 %1550
  %v1552 = vsub.f32 %v1547, %v1551
  %v1553 = vmul.f32 %v1552, 1.442695
  %v1554 = vpow.pop %v1553
  %v1555 = vsel %vm1122, %v1554, 0.0
  %1556 = vadd.xlane.f32.xlu0 %v1555
  %v1557 = vpop.xlane.xlu0 %1556
  %v1558 = vrcp.pop %v1557
  %v1559 = vmul.f32 %v1554, %v1558
  %v1561 = vsel %vm871, %v1559, 0
  %1563 = vmatpush.msra.mxu0 0.0
  %1564 = vmatpush.msra.mxu0 0.0
  %1565 = vmatpush.msra.mxu0 0.0
  %1566 = vmatpush.msra.mxu0 0.0
  %1567 = vmatpush.msra.mxu0 0.0
  %1568 = vmatpush.msra.mxu0 0.0
  %1569 = vmatpush.msra.mxu0 0.0
  %1570 = vmatpush.msra.mxu0 0.0
  %1571 = vmatpush.msra.mxu0 0.0
  %1572 = vmatpush.msra.mxu0 0.0
  %1573 = vmatpush.msra.mxu0 0.0
  %1574 = vmatpush.msra.mxu0 0.0
  %1575 = vmatpush.msra.mxu0 0.0
  %1576 = vmatpush.msra.mxu0 0.0
  %1577 = vmatpush.msra.mxu0 0.0
  %1578 = vmatpush.msra.mxu0 %v733
  %1579 = vmatmul.f32.gmra.mxu0 %v1561
  %v1580 = vpop.f32.mrf.mxu0
  %v1581 = vadd.f32 0.0, %v1580
  %1582 = vdwg.mxu0
  %1585 = vrot.lane.b32.xlu0 %v1581, 32
  %v1586 = vpop.permute.xlu0 %1585
  %v1588 = vsel %vm38, %v1526, %v1586
  %v1590 = vsel %vm767, %v1588, 0
  %1592 = vmatpush.msra.mxu0 0.0
  %1593 = vmatpush.msra.mxu0 0.0
  %1594 = vmatpush.msra.mxu0 0.0
  %1595 = vmatpush.msra.mxu0 0.0
  %1596 = vmatpush.msra.mxu0 0.0
  %1597 = vmatpush.msra.mxu0 0.0
  %1598 = vmatpush.msra.mxu0 0.0
  %1599 = vmatpush.msra.mxu0 0.0
  %1600 = vmatpush.msra.mxu0 %v749
  %1601 = vmatpush.msra.mxu0 %v748
  %1602 = vmatpush.msra.mxu0 %v747
  %1603 = vmatpush.msra.mxu0 %v746
  %1604 = vmatpush.msra.mxu0 %v745
  %1605 = vmatpush.msra.mxu0 %v744
  %1606 = vmatpush.msra.mxu0 %v743
  %1607 = vmatpush.msra.mxu0 %v742
  %1608 = vmatmul.f32.gmra.mxu0 %v1590
  %v1609 = vpop.f32.mrf.mxu0
  %v1610 = vadd.f32 0.0, %v1609
  %1611 = vdwg.mxu0
  %v1612 = vtanh.pop %v1610
  %v1614 = vsel %vm38, %v1612, 0
  %1616 = vmatpush.msra.mxu0 0.0
  %1617 = vmatpush.msra.mxu0 0.0
  %1618 = vmatpush.msra.mxu0 0.0
  %1619 = vmatpush.msra.mxu0 0.0
  %1620 = vmatpush.msra.mxu0 0.0
  %1621 = vmatpush.msra.mxu0 0.0
  %1622 = vmatpush.msra.mxu0 0.0
  %1623 = vmatpush.msra.mxu0 0.0
  %1624 = vmatpush.msra.mxu0 0.0
  %1625 = vmatpush.msra.mxu0 0.0
  %1626 = vmatpush.msra.mxu0 0.0
  %1627 = vmatpush.msra.mxu0 0.0
  %1628 = vmatpush.msra.mxu0 %v753
  %1629 = vmatpush.msra.mxu0 %v752
  %1630 = vmatpush.msra.mxu0 %v751
  %1631 = vmatpush.msra.mxu0 %v750
  %1632 = vmatmul.f32.gmra.mxu0 %v1614
  %v1633 = vpop.f32.mrf.mxu0
  %v1634 = vadd.f32 %v1187, %v1633
  %1635 = vdwg.mxu0
  %v1636 = vsel %vm1211, %v1634, -inf
  %1637 = vmax.xlane.f32.xlu0 %v1636
  %v1638 = vpop.xlane.xlu0 %1637
  %v1639 = vsub.f32 %v1634, %v1638
  %v1640 = vmul.f32 %v1639, 1.442695
  %v1641 = vpow.pop %v1640
  %v1642 = vsel %vm1211, %v1641, 0.0
  %1643 = vadd.xlane.f32.xlu0 %v1642
  %v1644 = vpop.xlane.xlu0 %1643
  %v1645 = vlog2.pop %v1644
  %v1646 = vmul.f32 %v1645, 0.6931472
  %v1647 = vadd.f32 %v1646, %v1638
  %v1648 = vsub.f32 %v1634, %v1647
  %v1649 = vadd.f32 %v1648, %v1370
  %v1650 = vsel %vm1211, %v1649, -inf
  %1651 = vmax.xlane.f32.xlu0 %v1650
  %v1652 = vpop.xlane.xlu0 %1651
  %v1653 = vsel %vm1229, %v1652, -inf
  %v1654 = vrot.slane %v1653, 4
  %v1655 = vmax.f32 %v1653, %v1654
  %v1656 = vrot.slane %v1655, 2
  %v1657 = vmax.f32 %v1655, %v1656
  %v1658 = vrot.slane %v1657, 1
  %v1659 = vmax.f32 %v1657, %v1658
  %vm1660 = vcmp.eq.f32.partialorder %v1649, %v1659
  %v1661 = vsel %vm1660, %v963, 96.0
  %v1662 = vsel %vm1211, %v1661, inf
  %1663 = vmin.xlane.f32.xlu0 %v1662
  %v1664 = vpop.xlane.xlu0 %1663
  %v1665 = vsel %vm1229, %v1664, inf
  %v1666 = vrot.slane %v1665, 4
  %v1667 = vmin.f32 %v1665, %v1666
  %v1668 = vrot.slane %v1667, 2
  %v1669 = vmin.f32 %v1667, %v1668
  %v1670 = vrot.slane %v1669, 1
  %v1671 = vmin.f32 %v1669, %v1670
  %vm1672 = vcmp.eq.f32.partialorder %v963, %v1671
  %v1673 = vsel %vm1672, %v757, 0.0
  %v1674 = vsel %vm1211, %v1673, 0.0
  %1675 = vadd.xlane.f32.xlu0 %v1674
  %v1676 = vpop.xlane.xlu0 %1675
  %v1677 = vsel %vm1229, %v1676, 0.0
  %v1678 = vrot.slane %v1677, 4
  %v1679 = vadd.f32 %v1677, %v1678
  %v1680 = vrot.slane %v1679, 2
  %v1681 = vadd.f32 %v1679, %v1680
  %v1682 = vrot.slane %v1681, 1
  %v1683 = vadd.f32 %v1681, %v1682
  %v1684 = vsel %vm1672, %v961, 0.0
  %v1685 = vsel %vm1211, %v1684, 0.0
  %1686 = vadd.xlane.f32.xlu0 %v1685
  %v1687 = vpop.xlane.xlu0 %1686
  %v1688 = vsel %vm1229, %v1687, 0.0
  %v1689 = vrot.slane %v1688, 4
  %v1690 = vadd.f32 %v1688, %v1689
  %v1691 = vrot.slane %v1690, 2
  %v1692 = vadd.f32 %v1690, %v1691
  %v1693 = vrot.slane %v1692, 1
  %v1694 = vadd.f32 %v1692, %v1693
  %v1695 = vsel %vm978, %v1659, 0.0
  %v1696 = vsel %vm978, %v1683, 0.0
  %v1697 = vsel %vm978, %v1694, 0.0
  %v1698 = vsel %vm1672, -1e+30, %v1649
  %v1699 = vsel %vm1211, %v1698, -inf
  %1700 = vmax.xlane.f32.xlu0 %v1699
  %v1701 = vpop.xlane.xlu0 %1700
  %v1702 = vsel %vm1229, %v1701, -inf
  %v1703 = vrot.slane %v1702, 4
  %v1704 = vmax.f32 %v1702, %v1703
  %v1705 = vrot.slane %v1704, 2
  %v1706 = vmax.f32 %v1704, %v1705
  %v1707 = vrot.slane %v1706, 1
  %v1708 = vmax.f32 %v1706, %v1707
  %vm1709 = vcmp.eq.f32.partialorder %v1698, %v1708
  %v1710 = vsel %vm1709, %v963, 96.0
  %v1711 = vsel %vm1211, %v1710, inf
  %1712 = vmin.xlane.f32.xlu0 %v1711
  %v1713 = vpop.xlane.xlu0 %1712
  %v1714 = vsel %vm1229, %v1713, inf
  %v1715 = vrot.slane %v1714, 4
  %v1716 = vmin.f32 %v1714, %v1715
  %v1717 = vrot.slane %v1716, 2
  %v1718 = vmin.f32 %v1716, %v1717
  %v1719 = vrot.slane %v1718, 1
  %v1720 = vmin.f32 %v1718, %v1719
  %vm1721 = vcmp.eq.f32.partialorder %v963, %v1720
  %v1722 = vsel %vm1721, %v757, 0.0
  %v1723 = vsel %vm1211, %v1722, 0.0
  %1724 = vadd.xlane.f32.xlu0 %v1723
  %v1725 = vpop.xlane.xlu0 %1724
  %v1726 = vsel %vm1229, %v1725, 0.0
  %v1727 = vrot.slane %v1726, 4
  %v1728 = vadd.f32 %v1726, %v1727
  %v1729 = vrot.slane %v1728, 2
  %v1730 = vadd.f32 %v1728, %v1729
  %v1731 = vrot.slane %v1730, 1
  %v1732 = vadd.f32 %v1730, %v1731
  %v1733 = vsel %vm1721, %v961, 0.0
  %v1734 = vsel %vm1211, %v1733, 0.0
  %1735 = vadd.xlane.f32.xlu0 %v1734
  %v1736 = vpop.xlane.xlu0 %1735
  %v1737 = vsel %vm1229, %v1736, 0.0
  %v1738 = vrot.slane %v1737, 4
  %v1739 = vadd.f32 %v1737, %v1738
  %v1740 = vrot.slane %v1739, 2
  %v1741 = vadd.f32 %v1739, %v1740
  %v1742 = vrot.slane %v1741, 1
  %v1743 = vadd.f32 %v1741, %v1742
  %v1744 = vsel %vm998, %v1708, %v1695
  %v1745 = vsel %vm998, %v1732, %v1696
  %v1746 = vsel %vm998, %v1743, %v1697
  %v1747 = vsel %vm1721, -1e+30, %v1698
  %v1748 = vsel %vm1211, %v1747, -inf
  %1749 = vmax.xlane.f32.xlu0 %v1748
  %v1750 = vpop.xlane.xlu0 %1749
  %v1751 = vsel %vm1229, %v1750, -inf
  %v1752 = vrot.slane %v1751, 4
  %v1753 = vmax.f32 %v1751, %v1752
  %v1754 = vrot.slane %v1753, 2
  %v1755 = vmax.f32 %v1753, %v1754
  %v1756 = vrot.slane %v1755, 1
  %v1757 = vmax.f32 %v1755, %v1756
  %vm1758 = vcmp.eq.f32.partialorder %v1747, %v1757
  %v1759 = vsel %vm1758, %v963, 96.0
  %v1760 = vsel %vm1211, %v1759, inf
  %1761 = vmin.xlane.f32.xlu0 %v1760
  %v1762 = vpop.xlane.xlu0 %1761
  %v1763 = vsel %vm1229, %v1762, inf
  %v1764 = vrot.slane %v1763, 4
  %v1765 = vmin.f32 %v1763, %v1764
  %v1766 = vrot.slane %v1765, 2
  %v1767 = vmin.f32 %v1765, %v1766
  %v1768 = vrot.slane %v1767, 1
  %v1769 = vmin.f32 %v1767, %v1768
  %vm1770 = vcmp.eq.f32.partialorder %v963, %v1769
  %v1771 = vsel %vm1770, %v757, 0.0
  %v1772 = vsel %vm1211, %v1771, 0.0
  %1773 = vadd.xlane.f32.xlu0 %v1772
  %v1774 = vpop.xlane.xlu0 %1773
  %v1775 = vsel %vm1229, %v1774, 0.0
  %v1776 = vrot.slane %v1775, 4
  %v1777 = vadd.f32 %v1775, %v1776
  %v1778 = vrot.slane %v1777, 2
  %v1779 = vadd.f32 %v1777, %v1778
  %v1780 = vrot.slane %v1779, 1
  %v1781 = vadd.f32 %v1779, %v1780
  %v1782 = vsel %vm1770, %v961, 0.0
  %v1783 = vsel %vm1211, %v1782, 0.0
  %1784 = vadd.xlane.f32.xlu0 %v1783
  %v1785 = vpop.xlane.xlu0 %1784
  %v1786 = vsel %vm1229, %v1785, 0.0
  %v1787 = vrot.slane %v1786, 4
  %v1788 = vadd.f32 %v1786, %v1787
  %v1789 = vrot.slane %v1788, 2
  %v1790 = vadd.f32 %v1788, %v1789
  %v1791 = vrot.slane %v1790, 1
  %v1792 = vadd.f32 %v1790, %v1791
  %v1793 = vsel %vm1018, %v1757, %v1744
  %v1794 = vsel %vm1018, %v1781, %v1745
  %v1795 = vsel %vm1018, %v1792, %v1746
  %vm1796 = vcmp.eq.f32.partialorder %v1795, %v757
  %v1797 = vsel %vm1796, 1, 0
  %v1798 = vcvt.s32.f32 %v1797
  %vm1799 = vcmp.eq.s32.totalorder %v27, 2
  %v1800 = vsel %vm1799, %v1371, %v1403
  %v1802 = vsel %vm1378, %v1798, 0
  %v1805 = vsel %vm1229, %v1800, 0
  %1807 = vmatpush.msra.mxu0 0.0
  %1808 = vmatpush.msra.mxu0 0.0
  %1809 = vmatpush.msra.mxu0 0.0
  %1810 = vmatpush.msra.mxu0 0.0
  %1811 = vmatpush.msra.mxu0 0.0
  %1812 = vmatpush.msra.mxu0 0.0
  %1813 = vmatpush.msra.mxu0 0.0
  %1814 = vmatpush.msra.mxu0 0.0
  %1815 = vmatpush.msra.mxu0 0.0
  %1816 = vmatpush.msra.mxu0 0.0
  %1817 = vmatpush.msra.mxu0 0.0
  %1818 = vmatpush.msra.mxu0 0.0
  %1819 = vmatpush.msra.mxu0 0.0
  %1820 = vmatpush.msra.mxu0 0.0
  %1821 = vmatpush.msra.mxu0 0.0
  %1822 = vmatpush.msra.mxu0 %v1805
  %1823 = vmatmul.f32.gmra.mxu0 %v1802
  %v1824 = vpop.f32.mrf.mxu0
  %v1825 = vadd.f32 0.0, %v1824
  %1826 = vdwg.mxu0
  %v1827 = vsel %vm1229, %v1526, 0
  %1829 = vmatpush.msra.mxu0 0.0
  %1830 = vmatpush.msra.mxu0 0.0
  %1831 = vmatpush.msra.mxu0 0.0
  %1832 = vmatpush.msra.mxu0 0.0
  %1833 = vmatpush.msra.mxu0 0.0
  %1834 = vmatpush.msra.mxu0 0.0
  %1835 = vmatpush.msra.mxu0 0.0
  %1836 = vmatpush.msra.mxu0 0.0
  %1837 = vmatpush.msra.mxu0 0.0
  %1838 = vmatpush.msra.mxu0 0.0
  %1839 = vmatpush.msra.mxu0 0.0
  %1840 = vmatpush.msra.mxu0 0.0
  %1841 = vmatpush.msra.mxu0 0.0
  %1842 = vmatpush.msra.mxu0 0.0
  %1843 = vmatpush.msra.mxu0 0.0
  %1844 = vmatpush.msra.mxu0 %v1827
  %1845 = vmatmul.f32.gmra.mxu0 %v1802
  %v1846 = vpop.f32.mrf.mxu0
  %v1847 = vadd.f32 0.0, %v1846
  %1848 = vdwg.mxu0
  %1850 = vrot.lane.b32.xlu0 %v1517, 96
  %v1851 = vpop.permute.xlu0 %1850
  %v1852 = vsel %vm1229, %v1851, 0
  %1854 = vmatpush.msra.mxu0 0.0
  %1855 = vmatpush.msra.mxu0 0.0
  %1856 = vmatpush.msra.mxu0 0.0
  %1857 = vmatpush.msra.mxu0 0.0
  %1858 = vmatpush.msra.mxu0 0.0
  %1859 = vmatpush.msra.mxu0 0.0
  %1860 = vmatpush.msra.mxu0 0.0
  %1861 = vmatpush.msra.mxu0 0.0
  %1862 = vmatpush.msra.mxu0 0.0
  %1863 = vmatpush.msra.mxu0 0.0
  %1864 = vmatpush.msra.mxu0 0.0
  %1865 = vmatpush.msra.mxu0 0.0
  %1866 = vmatpush.msra.mxu0 0.0
  %1867 = vmatpush.msra.mxu0 0.0
  %1868 = vmatpush.msra.mxu0 0.0
  %1869 = vmatpush.msra.mxu0 %v1852
  %1870 = vmatmul.f32.gmra.mxu0 %v1802
  %v1871 = vpop.f32.mrf.mxu0
  %v1872 = vadd.f32 0.0, %v1871
  %1873 = vdwg.mxu0
  %vm1874 = vcmp.eq.f32.partialorder %v1794, %v757
  %v1875 = vsel %vm1874, 1, 0
  %v1876 = vcvt.s32.f32 %v1875
  %1878 = vrot.lane.b32.xlu0 %v1847, 32
  %v1879 = vpop.permute.xlu0 %1878
  %v1881 = vsel %vm38, %v1876, %v1879
  %v1883 = vsel %vm767, %v1881, 0
  %1885 = vmatpush.msra.mxu0 0.0
  %1886 = vmatpush.msra.mxu0 0.0
  %1887 = vmatpush.msra.mxu0 0.0
  %1888 = vmatpush.msra.mxu0 0.0
  %1889 = vmatpush.msra.mxu0 0.0
  %1890 = vmatpush.msra.mxu0 0.0
  %1891 = vmatpush.msra.mxu0 0.0
  %1892 = vmatpush.msra.mxu0 0.0
  %1893 = vmatpush.msra.mxu0 %v741
  %1894 = vmatpush.msra.mxu0 %v740
  %1895 = vmatpush.msra.mxu0 %v739
  %1896 = vmatpush.msra.mxu0 %v738
  %1897 = vmatpush.msra.mxu0 %v737
  %1898 = vmatpush.msra.mxu0 %v736
  %1899 = vmatpush.msra.mxu0 %v735
  %1900 = vmatpush.msra.mxu0 %v734
  %1901 = vmatmul.f32.gmra.mxu0 %v1883
  %v1902 = vpop.f32.mrf.mxu0
  %v1903 = vadd.f32 0.0, %v1902
  %1904 = vdwg.mxu0
  %v1905 = vxor.u32 %v1903, 2147483648
  %v1906 = vmul.f32 %v1905, 1.442695
  %v1907 = vpow.pop %v1906
  %v1908 = vadd.f32 %v1907, 1.0
  %v1909 = vrcp.pop %v1908
  %v1910 = vmul.f32 %v1908, %v1909
  %v1911 = vsub.f32 1.0, %v1910
  %v1912 = vmul.f32 %v1909, %v1911
  %v1913 = vadd.f32 %v1909, %v1912
  %vm1914 = vweird.f32 %v1908
  %vm1915 = vweird.f32 %v1909
  %vm1916 = vmor %vm1914, %vm1915
  %v1917 = vsel %vm1916, %v1909, %v1913
  %v1918 = vand.u32 2147483647, %v1908
  %vm1919 = vcmp.eq.f32.partialorder %v1918, 8.507059e+37
  %v1920 = vand.u32 %v1908, 2147483648
  %v1921 = vor.u32 1.1754944e-38, %v1920
  %v1922 = vsel %vm1919, %v1921, %v1917
  %v1923 = vmul.f32 1.0, %v1922
  %v1924 = vtanh.pop %v1903
  %1926 = vrot.lane.b32.xlu0 %v1872, 32
  %v1927 = vpop.permute.xlu0 %1926
  %v1929 = vmul.f32 %v1923, %v1927
  %1931 = vrot.lane.b32.xlu0 %v1924, 64
  %v1932 = vpop.permute.xlu0 %1931
  %v1934 = vmul.f32 %v1923, %v1932
  %1936 = vrot.lane.b32.xlu0 %v1934, 32
  %v1937 = vpop.permute.xlu0 %1936
  %v1939 = vadd.f32 %v1929, %v1937
  %v1940 = vtanh.pop %v1939
  %1942 = vrot.lane.b32.xlu0 %v1940, 64
  %v1943 = vpop.permute.xlu0 %1942
  %v1945 = vmul.f32 %v1923, %v1943
  %1947 = vrot.lane.b32.xlu0 %v1945, 32
  %v1948 = vpop.permute.xlu0 %1947
  %v1949 = vsel %vm38, %v1948, 0
  %1951 = vmatpush.xpose.msra.mxu0 0.0
  %1952 = vmatpush.xpose.msra.mxu0 0.0
  %1953 = vmatpush.xpose.msra.mxu0 0.0
  %1954 = vmatpush.xpose.msra.mxu0 0.0
  %1955 = vmatpush.xpose.msra.mxu0 0.0
  %1956 = vmatpush.xpose.msra.mxu0 0.0
  %1957 = vmatpush.xpose.msra.mxu0 0.0
  %1958 = vmatpush.xpose.msra.mxu0 0.0
  %1959 = vmatpush.xpose.msra.mxu0 0.0
  %1960 = vmatpush.xpose.msra.mxu0 0.0
  %1961 = vmatpush.xpose.msra.mxu0 0.0
  %1962 = vmatpush.xpose.msra.mxu0 0.0
  %1963 = vmatpush.xpose.msra.mxu0 0.0
  %1964 = vmatpush.xpose.msra.mxu0 0.0
  %1965 = vmatpush.xpose.msra.mxu0 0.0
  %1966 = vmatpush.xpose.msra.mxu0 %v837
  %1967 = vmatmul.f32.gmra.mxu0 %v1949
  %v1968 = vpop.f32.mrf.mxu0
  %v1969 = vadd.f32 0.0, %v1968
  %1970 = vdwg.mxu0
  %v1971 = vsel %vm1122, %v1969, -inf
  %1972 = vmax.xlane.f32.xlu0 %v1971
  %v1973 = vpop.xlane.xlu0 %1972
  %v1974 = vsub.f32 %v1969, %v1973
  %v1975 = vmul.f32 %v1974, 1.442695
  %v1976 = vpow.pop %v1975
  %v1977 = vsel %vm1122, %v1976, 0.0
  %1978 = vadd.xlane.f32.xlu0 %v1977
  %v1979 = vpop.xlane.xlu0 %1978
  %v1980 = vrcp.pop %v1979
  %v1981 = vmul.f32 %v1976, %v1980
  %v1983 = vsel %vm871, %v1981, 0
  %1985 = vmatpush.msra.mxu0 0.0
  %1986 = vmatpush.msra.mxu0 0.0
  %1987 = vmatpush.msra.mxu0 0.0
  %1988 = vmatpush.msra.mxu0 0.0
  %1989 = vmatpush.msra.mxu0 0.0
  %1990 = vmatpush.msra.mxu0 0.0
  %1991 = vmatpush.msra.mxu0 0.0
  %1992 = vmatpush.msra.mxu0 0.0
  %1993 = vmatpush.msra.mxu0 0.0
  %1994 = vmatpush.msra.mxu0 0.0
  %1995 = vmatpush.msra.mxu0 0.0
  %1996 = vmatpush.msra.mxu0 0.0
  %1997 = vmatpush.msra.mxu0 0.0
  %1998 = vmatpush.msra.mxu0 0.0
  %1999 = vmatpush.msra.mxu0 0.0
  %2000 = vmatpush.msra.mxu0 %v733
  %2001 = vmatmul.f32.gmra.mxu0 %v1983
  %v2002 = vpop.f32.mrf.mxu0
  %v2003 = vadd.f32 0.0, %v2002
  %2004 = vdwg.mxu0
  %2007 = vrot.lane.b32.xlu0 %v2003, 32
  %v2008 = vpop.permute.xlu0 %2007
  %v2010 = vsel %vm38, %v1948, %v2008
  %v2012 = vsel %vm767, %v2010, 0
  %2014 = vmatpush.msra.mxu0 0.0
  %2015 = vmatpush.msra.mxu0 0.0
  %2016 = vmatpush.msra.mxu0 0.0
  %2017 = vmatpush.msra.mxu0 0.0
  %2018 = vmatpush.msra.mxu0 0.0
  %2019 = vmatpush.msra.mxu0 0.0
  %2020 = vmatpush.msra.mxu0 0.0
  %2021 = vmatpush.msra.mxu0 0.0
  %2022 = vmatpush.msra.mxu0 %v749
  %2023 = vmatpush.msra.mxu0 %v748
  %2024 = vmatpush.msra.mxu0 %v747
  %2025 = vmatpush.msra.mxu0 %v746
  %2026 = vmatpush.msra.mxu0 %v745
  %2027 = vmatpush.msra.mxu0 %v744
  %2028 = vmatpush.msra.mxu0 %v743
  %2029 = vmatpush.msra.mxu0 %v742
  %2030 = vmatmul.f32.gmra.mxu0 %v2012
  %v2031 = vpop.f32.mrf.mxu0
  %v2032 = vadd.f32 0.0, %v2031
  %2033 = vdwg.mxu0
  %v2034 = vtanh.pop %v2032
  %v2036 = vsel %vm38, %v2034, 0
  %2038 = vmatpush.msra.mxu0 0.0
  %2039 = vmatpush.msra.mxu0 0.0
  %2040 = vmatpush.msra.mxu0 0.0
  %2041 = vmatpush.msra.mxu0 0.0
  %2042 = vmatpush.msra.mxu0 0.0
  %2043 = vmatpush.msra.mxu0 0.0
  %2044 = vmatpush.msra.mxu0 0.0
  %2045 = vmatpush.msra.mxu0 0.0
  %2046 = vmatpush.msra.mxu0 0.0
  %2047 = vmatpush.msra.mxu0 0.0
  %2048 = vmatpush.msra.mxu0 0.0
  %2049 = vmatpush.msra.mxu0 0.0
  %2050 = vmatpush.msra.mxu0 %v753
  %2051 = vmatpush.msra.mxu0 %v752
  %2052 = vmatpush.msra.mxu0 %v751
  %2053 = vmatpush.msra.mxu0 %v750
  %2054 = vmatmul.f32.gmra.mxu0 %v2036
  %v2055 = vpop.f32.mrf.mxu0
  %v2056 = vadd.f32 %v1187, %v2055
  %2057 = vdwg.mxu0
  %v2058 = vsel %vm1211, %v2056, -inf
  %2059 = vmax.xlane.f32.xlu0 %v2058
  %v2060 = vpop.xlane.xlu0 %2059
  %v2061 = vsub.f32 %v2056, %v2060
  %v2062 = vmul.f32 %v2061, 1.442695
  %v2063 = vpow.pop %v2062
  %v2064 = vsel %vm1211, %v2063, 0.0
  %2065 = vadd.xlane.f32.xlu0 %v2064
  %v2066 = vpop.xlane.xlu0 %2065
  %v2067 = vlog2.pop %v2066
  %v2068 = vmul.f32 %v2067, 0.6931472
  %v2069 = vadd.f32 %v2068, %v2060
  %v2070 = vsub.f32 %v2056, %v2069
  %v2071 = vadd.f32 %v2070, %v1793
  %v2072 = vsel %vm1211, %v2071, -inf
  %2073 = vmax.xlane.f32.xlu0 %v2072
  %v2074 = vpop.xlane.xlu0 %2073
  %v2075 = vsel %vm1229, %v2074, -inf
  %v2076 = vrot.slane %v2075, 4
  %v2077 = vmax.f32 %v2075, %v2076
  %v2078 = vrot.slane %v2077, 2
  %v2079 = vmax.f32 %v2077, %v2078
  %v2080 = vrot.slane %v2079, 1
  %v2081 = vmax.f32 %v2079, %v2080
  %vm2082 = vcmp.eq.f32.partialorder %v2071, %v2081
  %v2083 = vsel %vm2082, %v963, 96.0
  %v2084 = vsel %vm1211, %v2083, inf
  %2085 = vmin.xlane.f32.xlu0 %v2084
  %v2086 = vpop.xlane.xlu0 %2085
  %v2087 = vsel %vm1229, %v2086, inf
  %v2088 = vrot.slane %v2087, 4
  %v2089 = vmin.f32 %v2087, %v2088
  %v2090 = vrot.slane %v2089, 2
  %v2091 = vmin.f32 %v2089, %v2090
  %v2092 = vrot.slane %v2091, 1
  %v2093 = vmin.f32 %v2091, %v2092
  %vm2094 = vcmp.eq.f32.partialorder %v963, %v2093
  %v2095 = vsel %vm2094, %v757, 0.0
  %v2096 = vsel %vm1211, %v2095, 0.0
  %2097 = vadd.xlane.f32.xlu0 %v2096
  %v2098 = vpop.xlane.xlu0 %2097
  %v2099 = vsel %vm1229, %v2098, 0.0
  %v2100 = vrot.slane %v2099, 4
  %v2101 = vadd.f32 %v2099, %v2100
  %v2102 = vrot.slane %v2101, 2
  %v2103 = vadd.f32 %v2101, %v2102
  %v2104 = vrot.slane %v2103, 1
  %v2105 = vadd.f32 %v2103, %v2104
  %v2106 = vsel %vm2094, %v961, 0.0
  %v2107 = vsel %vm1211, %v2106, 0.0
  %2108 = vadd.xlane.f32.xlu0 %v2107
  %v2109 = vpop.xlane.xlu0 %2108
  %v2110 = vsel %vm1229, %v2109, 0.0
  %v2111 = vrot.slane %v2110, 4
  %v2112 = vadd.f32 %v2110, %v2111
  %v2113 = vrot.slane %v2112, 2
  %v2114 = vadd.f32 %v2112, %v2113
  %v2115 = vrot.slane %v2114, 1
  %v2116 = vadd.f32 %v2114, %v2115
  %v2117 = vsel %vm978, %v2081, 0.0
  %v2118 = vsel %vm978, %v2105, 0.0
  %v2119 = vsel %vm978, %v2116, 0.0
  %v2120 = vsel %vm2094, -1e+30, %v2071
  %v2121 = vsel %vm1211, %v2120, -inf
  %2122 = vmax.xlane.f32.xlu0 %v2121
  %v2123 = vpop.xlane.xlu0 %2122
  %v2124 = vsel %vm1229, %v2123, -inf
  %v2125 = vrot.slane %v2124, 4
  %v2126 = vmax.f32 %v2124, %v2125
  %v2127 = vrot.slane %v2126, 2
  %v2128 = vmax.f32 %v2126, %v2127
  %v2129 = vrot.slane %v2128, 1
  %v2130 = vmax.f32 %v2128, %v2129
  %vm2131 = vcmp.eq.f32.partialorder %v2120, %v2130
  %v2132 = vsel %vm2131, %v963, 96.0
  %v2133 = vsel %vm1211, %v2132, inf
  %2134 = vmin.xlane.f32.xlu0 %v2133
  %v2135 = vpop.xlane.xlu0 %2134
  %v2136 = vsel %vm1229, %v2135, inf
  %v2137 = vrot.slane %v2136, 4
  %v2138 = vmin.f32 %v2136, %v2137
  %v2139 = vrot.slane %v2138, 2
  %v2140 = vmin.f32 %v2138, %v2139
  %v2141 = vrot.slane %v2140, 1
  %v2142 = vmin.f32 %v2140, %v2141
  %vm2143 = vcmp.eq.f32.partialorder %v963, %v2142
  %v2144 = vsel %vm2143, %v757, 0.0
  %v2145 = vsel %vm1211, %v2144, 0.0
  %2146 = vadd.xlane.f32.xlu0 %v2145
  %v2147 = vpop.xlane.xlu0 %2146
  %v2148 = vsel %vm1229, %v2147, 0.0
  %v2149 = vrot.slane %v2148, 4
  %v2150 = vadd.f32 %v2148, %v2149
  %v2151 = vrot.slane %v2150, 2
  %v2152 = vadd.f32 %v2150, %v2151
  %v2153 = vrot.slane %v2152, 1
  %v2154 = vadd.f32 %v2152, %v2153
  %v2155 = vsel %vm2143, %v961, 0.0
  %v2156 = vsel %vm1211, %v2155, 0.0
  %2157 = vadd.xlane.f32.xlu0 %v2156
  %v2158 = vpop.xlane.xlu0 %2157
  %v2159 = vsel %vm1229, %v2158, 0.0
  %v2160 = vrot.slane %v2159, 4
  %v2161 = vadd.f32 %v2159, %v2160
  %v2162 = vrot.slane %v2161, 2
  %v2163 = vadd.f32 %v2161, %v2162
  %v2164 = vrot.slane %v2163, 1
  %v2165 = vadd.f32 %v2163, %v2164
  %v2166 = vsel %vm998, %v2130, %v2117
  %v2167 = vsel %vm998, %v2154, %v2118
  %v2168 = vsel %vm998, %v2165, %v2119
  %v2169 = vsel %vm2143, -1e+30, %v2120
  %v2170 = vsel %vm1211, %v2169, -inf
  %2171 = vmax.xlane.f32.xlu0 %v2170
  %v2172 = vpop.xlane.xlu0 %2171
  %v2173 = vsel %vm1229, %v2172, -inf
  %v2174 = vrot.slane %v2173, 4
  %v2175 = vmax.f32 %v2173, %v2174
  %v2176 = vrot.slane %v2175, 2
  %v2177 = vmax.f32 %v2175, %v2176
  %v2178 = vrot.slane %v2177, 1
  %v2179 = vmax.f32 %v2177, %v2178
  %vm2180 = vcmp.eq.f32.partialorder %v2169, %v2179
  %v2181 = vsel %vm2180, %v963, 96.0
  %v2182 = vsel %vm1211, %v2181, inf
  %2183 = vmin.xlane.f32.xlu0 %v2182
  %v2184 = vpop.xlane.xlu0 %2183
  %v2185 = vsel %vm1229, %v2184, inf
  %v2186 = vrot.slane %v2185, 4
  %v2187 = vmin.f32 %v2185, %v2186
  %v2188 = vrot.slane %v2187, 2
  %v2189 = vmin.f32 %v2187, %v2188
  %v2190 = vrot.slane %v2189, 1
  %v2191 = vmin.f32 %v2189, %v2190
  %vm2192 = vcmp.eq.f32.partialorder %v963, %v2191
  %v2193 = vsel %vm2192, %v757, 0.0
  %v2194 = vsel %vm1211, %v2193, 0.0
  %2195 = vadd.xlane.f32.xlu0 %v2194
  %v2196 = vpop.xlane.xlu0 %2195
  %v2197 = vsel %vm1229, %v2196, 0.0
  %v2198 = vrot.slane %v2197, 4
  %v2199 = vadd.f32 %v2197, %v2198
  %v2200 = vrot.slane %v2199, 2
  %v2201 = vadd.f32 %v2199, %v2200
  %v2202 = vrot.slane %v2201, 1
  %v2203 = vadd.f32 %v2201, %v2202
  %v2204 = vsel %vm2192, %v961, 0.0
  %v2205 = vsel %vm1211, %v2204, 0.0
  %2206 = vadd.xlane.f32.xlu0 %v2205
  %v2207 = vpop.xlane.xlu0 %2206
  %v2208 = vsel %vm1229, %v2207, 0.0
  %v2209 = vrot.slane %v2208, 4
  %v2210 = vadd.f32 %v2208, %v2209
  %v2211 = vrot.slane %v2210, 2
  %v2212 = vadd.f32 %v2210, %v2211
  %v2213 = vrot.slane %v2212, 1
  %v2214 = vadd.f32 %v2212, %v2213
  %v2215 = vsel %vm1018, %v2179, %v2166
  %v2216 = vsel %vm1018, %v2203, %v2167
  %v2217 = vsel %vm1018, %v2214, %v2168
  %vm2218 = vcmp.eq.f32.partialorder %v2217, %v757
  %v2219 = vsel %vm2218, 1, 0
  %v2220 = vcvt.s32.f32 %v2219
  %vm2221 = vcmp.eq.s32.totalorder %v27, 3
  %v2222 = vsel %vm2221, %v1794, %v1825
  %v2224 = vsel %vm1378, %v2220, 0
  %v2227 = vsel %vm1229, %v2222, 0
  %2229 = vmatpush.msra.mxu0 0.0
  %2230 = vmatpush.msra.mxu0 0.0
  %2231 = vmatpush.msra.mxu0 0.0
  %2232 = vmatpush.msra.mxu0 0.0
  %2233 = vmatpush.msra.mxu0 0.0
  %2234 = vmatpush.msra.mxu0 0.0
  %2235 = vmatpush.msra.mxu0 0.0
  %2236 = vmatpush.msra.mxu0 0.0
  %2237 = vmatpush.msra.mxu0 0.0
  %2238 = vmatpush.msra.mxu0 0.0
  %2239 = vmatpush.msra.mxu0 0.0
  %2240 = vmatpush.msra.mxu0 0.0
  %2241 = vmatpush.msra.mxu0 0.0
  %2242 = vmatpush.msra.mxu0 0.0
  %2243 = vmatpush.msra.mxu0 0.0
  %2244 = vmatpush.msra.mxu0 %v2227
  %2245 = vmatmul.f32.gmra.mxu0 %v2224
  %v2246 = vpop.f32.mrf.mxu0
  %v2247 = vadd.f32 0.0, %v2246
  %2248 = vdwg.mxu0
  %v2249 = vsel %vm1229, %v1948, 0
  %2251 = vmatpush.msra.mxu0 0.0
  %2252 = vmatpush.msra.mxu0 0.0
  %2253 = vmatpush.msra.mxu0 0.0
  %2254 = vmatpush.msra.mxu0 0.0
  %2255 = vmatpush.msra.mxu0 0.0
  %2256 = vmatpush.msra.mxu0 0.0
  %2257 = vmatpush.msra.mxu0 0.0
  %2258 = vmatpush.msra.mxu0 0.0
  %2259 = vmatpush.msra.mxu0 0.0
  %2260 = vmatpush.msra.mxu0 0.0
  %2261 = vmatpush.msra.mxu0 0.0
  %2262 = vmatpush.msra.mxu0 0.0
  %2263 = vmatpush.msra.mxu0 0.0
  %2264 = vmatpush.msra.mxu0 0.0
  %2265 = vmatpush.msra.mxu0 0.0
  %2266 = vmatpush.msra.mxu0 %v2249
  %2267 = vmatmul.f32.gmra.mxu0 %v2224
  %v2268 = vpop.f32.mrf.mxu0
  %v2269 = vadd.f32 0.0, %v2268
  %2270 = vdwg.mxu0
  %2272 = vrot.lane.b32.xlu0 %v1939, 96
  %v2273 = vpop.permute.xlu0 %2272
  %v2274 = vsel %vm1229, %v2273, 0
  %2276 = vmatpush.msra.mxu0 0.0
  %2277 = vmatpush.msra.mxu0 0.0
  %2278 = vmatpush.msra.mxu0 0.0
  %2279 = vmatpush.msra.mxu0 0.0
  %2280 = vmatpush.msra.mxu0 0.0
  %2281 = vmatpush.msra.mxu0 0.0
  %2282 = vmatpush.msra.mxu0 0.0
  %2283 = vmatpush.msra.mxu0 0.0
  %2284 = vmatpush.msra.mxu0 0.0
  %2285 = vmatpush.msra.mxu0 0.0
  %2286 = vmatpush.msra.mxu0 0.0
  %2287 = vmatpush.msra.mxu0 0.0
  %2288 = vmatpush.msra.mxu0 0.0
  %2289 = vmatpush.msra.mxu0 0.0
  %2290 = vmatpush.msra.mxu0 0.0
  %2291 = vmatpush.msra.mxu0 %v2274
  %2292 = vmatmul.f32.gmra.mxu0 %v2224
  %v2293 = vpop.f32.mrf.mxu0
  %v2294 = vadd.f32 0.0, %v2293
  %2295 = vdwg.mxu0
  %vm2296 = vcmp.eq.f32.partialorder %v2216, %v757
  %v2297 = vsel %vm2296, 1, 0
  %v2298 = vcvt.s32.f32 %v2297
  %2300 = vrot.lane.b32.xlu0 %v2269, 32
  %v2301 = vpop.permute.xlu0 %2300
  %v2303 = vsel %vm38, %v2298, %v2301
  %v2305 = vsel %vm767, %v2303, 0
  %2307 = vmatpush.msra.mxu0 0.0
  %2308 = vmatpush.msra.mxu0 0.0
  %2309 = vmatpush.msra.mxu0 0.0
  %2310 = vmatpush.msra.mxu0 0.0
  %2311 = vmatpush.msra.mxu0 0.0
  %2312 = vmatpush.msra.mxu0 0.0
  %2313 = vmatpush.msra.mxu0 0.0
  %2314 = vmatpush.msra.mxu0 0.0
  %2315 = vmatpush.msra.mxu0 %v741
  %2316 = vmatpush.msra.mxu0 %v740
  %2317 = vmatpush.msra.mxu0 %v739
  %2318 = vmatpush.msra.mxu0 %v738
  %2319 = vmatpush.msra.mxu0 %v737
  %2320 = vmatpush.msra.mxu0 %v736
  %2321 = vmatpush.msra.mxu0 %v735
  %2322 = vmatpush.msra.mxu0 %v734
  %2323 = vmatmul.f32.gmra.mxu0 %v2305
  %v2324 = vpop.f32.mrf.mxu0
  %v2325 = vadd.f32 0.0, %v2324
  %2326 = vdwg.mxu0
  %v2327 = vxor.u32 %v2325, 2147483648
  %v2328 = vmul.f32 %v2327, 1.442695
  %v2329 = vpow.pop %v2328
  %v2330 = vadd.f32 %v2329, 1.0
  %v2331 = vrcp.pop %v2330
  %v2332 = vmul.f32 %v2330, %v2331
  %v2333 = vsub.f32 1.0, %v2332
  %v2334 = vmul.f32 %v2331, %v2333
  %v2335 = vadd.f32 %v2331, %v2334
  %vm2336 = vweird.f32 %v2330
  %vm2337 = vweird.f32 %v2331
  %vm2338 = vmor %vm2336, %vm2337
  %v2339 = vsel %vm2338, %v2331, %v2335
  %v2340 = vand.u32 2147483647, %v2330
  %vm2341 = vcmp.eq.f32.partialorder %v2340, 8.507059e+37
  %v2342 = vand.u32 %v2330, 2147483648
  %v2343 = vor.u32 1.1754944e-38, %v2342
  %v2344 = vsel %vm2341, %v2343, %v2339
  %v2345 = vmul.f32 1.0, %v2344
  %v2346 = vtanh.pop %v2325
  %2348 = vrot.lane.b32.xlu0 %v2294, 32
  %v2349 = vpop.permute.xlu0 %2348
  %v2351 = vmul.f32 %v2345, %v2349
  %2353 = vrot.lane.b32.xlu0 %v2346, 64
  %v2354 = vpop.permute.xlu0 %2353
  %v2356 = vmul.f32 %v2345, %v2354
  %2358 = vrot.lane.b32.xlu0 %v2356, 32
  %v2359 = vpop.permute.xlu0 %2358
  %v2361 = vadd.f32 %v2351, %v2359
  %v2362 = vtanh.pop %v2361
  %2364 = vrot.lane.b32.xlu0 %v2362, 64
  %v2365 = vpop.permute.xlu0 %2364
  %v2367 = vmul.f32 %v2345, %v2365
  %2369 = vrot.lane.b32.xlu0 %v2367, 32
  %v2370 = vpop.permute.xlu0 %2369
  %v2371 = vsel %vm38, %v2370, 0
  %2373 = vmatpush.xpose.msra.mxu0 0.0
  %2374 = vmatpush.xpose.msra.mxu0 0.0
  %2375 = vmatpush.xpose.msra.mxu0 0.0
  %2376 = vmatpush.xpose.msra.mxu0 0.0
  %2377 = vmatpush.xpose.msra.mxu0 0.0
  %2378 = vmatpush.xpose.msra.mxu0 0.0
  %2379 = vmatpush.xpose.msra.mxu0 0.0
  %2380 = vmatpush.xpose.msra.mxu0 0.0
  %2381 = vmatpush.xpose.msra.mxu0 0.0
  %2382 = vmatpush.xpose.msra.mxu0 0.0
  %2383 = vmatpush.xpose.msra.mxu0 0.0
  %2384 = vmatpush.xpose.msra.mxu0 0.0
  %2385 = vmatpush.xpose.msra.mxu0 0.0
  %2386 = vmatpush.xpose.msra.mxu0 0.0
  %2387 = vmatpush.xpose.msra.mxu0 0.0
  %2388 = vmatpush.xpose.msra.mxu0 %v837
  %2389 = vmatmul.f32.gmra.mxu0 %v2371
  %v2390 = vpop.f32.mrf.mxu0
  %v2391 = vadd.f32 0.0, %v2390
  %2392 = vdwg.mxu0
  %v2393 = vsel %vm1122, %v2391, -inf
  %2394 = vmax.xlane.f32.xlu0 %v2393
  %v2395 = vpop.xlane.xlu0 %2394
  %v2396 = vsub.f32 %v2391, %v2395
  %v2397 = vmul.f32 %v2396, 1.442695
  %v2398 = vpow.pop %v2397
  %v2399 = vsel %vm1122, %v2398, 0.0
  %2400 = vadd.xlane.f32.xlu0 %v2399
  %v2401 = vpop.xlane.xlu0 %2400
  %v2402 = vrcp.pop %v2401
  %v2403 = vmul.f32 %v2398, %v2402
  %v2405 = vsel %vm871, %v2403, 0
  %2407 = vmatpush.msra.mxu0 0.0
  %2408 = vmatpush.msra.mxu0 0.0
  %2409 = vmatpush.msra.mxu0 0.0
  %2410 = vmatpush.msra.mxu0 0.0
  %2411 = vmatpush.msra.mxu0 0.0
  %2412 = vmatpush.msra.mxu0 0.0
  %2413 = vmatpush.msra.mxu0 0.0
  %2414 = vmatpush.msra.mxu0 0.0
  %2415 = vmatpush.msra.mxu0 0.0
  %2416 = vmatpush.msra.mxu0 0.0
  %2417 = vmatpush.msra.mxu0 0.0
  %2418 = vmatpush.msra.mxu0 0.0
  %2419 = vmatpush.msra.mxu0 0.0
  %2420 = vmatpush.msra.mxu0 0.0
  %2421 = vmatpush.msra.mxu0 0.0
  %2422 = vmatpush.msra.mxu0 %v733
  %2423 = vmatmul.f32.gmra.mxu0 %v2405
  %v2424 = vpop.f32.mrf.mxu0
  %v2425 = vadd.f32 0.0, %v2424
  %2426 = vdwg.mxu0
  %2429 = vrot.lane.b32.xlu0 %v2425, 32
  %v2430 = vpop.permute.xlu0 %2429
  %v2432 = vsel %vm38, %v2370, %v2430
  %v2434 = vsel %vm767, %v2432, 0
  %2436 = vmatpush.msra.mxu0 0.0
  %2437 = vmatpush.msra.mxu0 0.0
  %2438 = vmatpush.msra.mxu0 0.0
  %2439 = vmatpush.msra.mxu0 0.0
  %2440 = vmatpush.msra.mxu0 0.0
  %2441 = vmatpush.msra.mxu0 0.0
  %2442 = vmatpush.msra.mxu0 0.0
  %2443 = vmatpush.msra.mxu0 0.0
  %2444 = vmatpush.msra.mxu0 %v749
  %2445 = vmatpush.msra.mxu0 %v748
  %2446 = vmatpush.msra.mxu0 %v747
  %2447 = vmatpush.msra.mxu0 %v746
  %2448 = vmatpush.msra.mxu0 %v745
  %2449 = vmatpush.msra.mxu0 %v744
  %2450 = vmatpush.msra.mxu0 %v743
  %2451 = vmatpush.msra.mxu0 %v742
  %2452 = vmatmul.f32.gmra.mxu0 %v2434
  %v2453 = vpop.f32.mrf.mxu0
  %v2454 = vadd.f32 0.0, %v2453
  %2455 = vdwg.mxu0
  %v2456 = vtanh.pop %v2454
  %v2458 = vsel %vm38, %v2456, 0
  %2460 = vmatpush.msra.mxu0 0.0
  %2461 = vmatpush.msra.mxu0 0.0
  %2462 = vmatpush.msra.mxu0 0.0
  %2463 = vmatpush.msra.mxu0 0.0
  %2464 = vmatpush.msra.mxu0 0.0
  %2465 = vmatpush.msra.mxu0 0.0
  %2466 = vmatpush.msra.mxu0 0.0
  %2467 = vmatpush.msra.mxu0 0.0
  %2468 = vmatpush.msra.mxu0 0.0
  %2469 = vmatpush.msra.mxu0 0.0
  %2470 = vmatpush.msra.mxu0 0.0
  %2471 = vmatpush.msra.mxu0 0.0
  %2472 = vmatpush.msra.mxu0 %v753
  %2473 = vmatpush.msra.mxu0 %v752
  %2474 = vmatpush.msra.mxu0 %v751
  %2475 = vmatpush.msra.mxu0 %v750
  %2476 = vmatmul.f32.gmra.mxu0 %v2458
  %v2477 = vpop.f32.mrf.mxu0
  %v2478 = vadd.f32 %v1187, %v2477
  %2479 = vdwg.mxu0
  %v2480 = vsel %vm1211, %v2478, -inf
  %2481 = vmax.xlane.f32.xlu0 %v2480
  %v2482 = vpop.xlane.xlu0 %2481
  %v2483 = vsub.f32 %v2478, %v2482
  %v2484 = vmul.f32 %v2483, 1.442695
  %v2485 = vpow.pop %v2484
  %v2486 = vsel %vm1211, %v2485, 0.0
  %2487 = vadd.xlane.f32.xlu0 %v2486
  %v2488 = vpop.xlane.xlu0 %2487
  %v2489 = vlog2.pop %v2488
  %v2490 = vmul.f32 %v2489, 0.6931472
  %v2491 = vadd.f32 %v2490, %v2482
  %v2492 = vsub.f32 %v2478, %v2491
  %v2493 = vadd.f32 %v2492, %v2215
  %v2494 = vsel %vm1211, %v2493, -inf
  %2495 = vmax.xlane.f32.xlu0 %v2494
  %v2496 = vpop.xlane.xlu0 %2495
  %v2497 = vsel %vm1229, %v2496, -inf
  %v2498 = vrot.slane %v2497, 4
  %v2499 = vmax.f32 %v2497, %v2498
  %v2500 = vrot.slane %v2499, 2
  %v2501 = vmax.f32 %v2499, %v2500
  %v2502 = vrot.slane %v2501, 1
  %v2503 = vmax.f32 %v2501, %v2502
  %vm2504 = vcmp.eq.f32.partialorder %v2493, %v2503
  %v2505 = vsel %vm2504, %v963, 96.0
  %v2506 = vsel %vm1211, %v2505, inf
  %2507 = vmin.xlane.f32.xlu0 %v2506
  %v2508 = vpop.xlane.xlu0 %2507
  %v2509 = vsel %vm1229, %v2508, inf
  %v2510 = vrot.slane %v2509, 4
  %v2511 = vmin.f32 %v2509, %v2510
  %v2512 = vrot.slane %v2511, 2
  %v2513 = vmin.f32 %v2511, %v2512
  %v2514 = vrot.slane %v2513, 1
  %v2515 = vmin.f32 %v2513, %v2514
  %vm2516 = vcmp.eq.f32.partialorder %v963, %v2515
  %v2517 = vsel %vm2516, %v757, 0.0
  %v2518 = vsel %vm1211, %v2517, 0.0
  %2519 = vadd.xlane.f32.xlu0 %v2518
  %v2520 = vpop.xlane.xlu0 %2519
  %v2521 = vsel %vm1229, %v2520, 0.0
  %v2522 = vrot.slane %v2521, 4
  %v2523 = vadd.f32 %v2521, %v2522
  %v2524 = vrot.slane %v2523, 2
  %v2525 = vadd.f32 %v2523, %v2524
  %v2526 = vrot.slane %v2525, 1
  %v2527 = vadd.f32 %v2525, %v2526
  %v2528 = vsel %vm2516, %v961, 0.0
  %v2529 = vsel %vm1211, %v2528, 0.0
  %2530 = vadd.xlane.f32.xlu0 %v2529
  %v2531 = vpop.xlane.xlu0 %2530
  %v2532 = vsel %vm1229, %v2531, 0.0
  %v2533 = vrot.slane %v2532, 4
  %v2534 = vadd.f32 %v2532, %v2533
  %v2535 = vrot.slane %v2534, 2
  %v2536 = vadd.f32 %v2534, %v2535
  %v2537 = vrot.slane %v2536, 1
  %v2538 = vadd.f32 %v2536, %v2537
  %v2539 = vsel %vm978, %v2503, 0.0
  %v2540 = vsel %vm978, %v2527, 0.0
  %v2541 = vsel %vm978, %v2538, 0.0
  %v2542 = vsel %vm2516, -1e+30, %v2493
  %v2543 = vsel %vm1211, %v2542, -inf
  %2544 = vmax.xlane.f32.xlu0 %v2543
  %v2545 = vpop.xlane.xlu0 %2544
  %v2546 = vsel %vm1229, %v2545, -inf
  %v2547 = vrot.slane %v2546, 4
  %v2548 = vmax.f32 %v2546, %v2547
  %v2549 = vrot.slane %v2548, 2
  %v2550 = vmax.f32 %v2548, %v2549
  %v2551 = vrot.slane %v2550, 1
  %v2552 = vmax.f32 %v2550, %v2551
  %vm2553 = vcmp.eq.f32.partialorder %v2542, %v2552
  %v2554 = vsel %vm2553, %v963, 96.0
  %v2555 = vsel %vm1211, %v2554, inf
  %2556 = vmin.xlane.f32.xlu0 %v2555
  %v2557 = vpop.xlane.xlu0 %2556
  %v2558 = vsel %vm1229, %v2557, inf
  %v2559 = vrot.slane %v2558, 4
  %v2560 = vmin.f32 %v2558, %v2559
  %v2561 = vrot.slane %v2560, 2
  %v2562 = vmin.f32 %v2560, %v2561
  %v2563 = vrot.slane %v2562, 1
  %v2564 = vmin.f32 %v2562, %v2563
  %vm2565 = vcmp.eq.f32.partialorder %v963, %v2564
  %v2566 = vsel %vm2565, %v757, 0.0
  %v2567 = vsel %vm1211, %v2566, 0.0
  %2568 = vadd.xlane.f32.xlu0 %v2567
  %v2569 = vpop.xlane.xlu0 %2568
  %v2570 = vsel %vm1229, %v2569, 0.0
  %v2571 = vrot.slane %v2570, 4
  %v2572 = vadd.f32 %v2570, %v2571
  %v2573 = vrot.slane %v2572, 2
  %v2574 = vadd.f32 %v2572, %v2573
  %v2575 = vrot.slane %v2574, 1
  %v2576 = vadd.f32 %v2574, %v2575
  %v2577 = vsel %vm2565, %v961, 0.0
  %v2578 = vsel %vm1211, %v2577, 0.0
  %2579 = vadd.xlane.f32.xlu0 %v2578
  %v2580 = vpop.xlane.xlu0 %2579
  %v2581 = vsel %vm1229, %v2580, 0.0
  %v2582 = vrot.slane %v2581, 4
  %v2583 = vadd.f32 %v2581, %v2582
  %v2584 = vrot.slane %v2583, 2
  %v2585 = vadd.f32 %v2583, %v2584
  %v2586 = vrot.slane %v2585, 1
  %v2587 = vadd.f32 %v2585, %v2586
  %v2588 = vsel %vm998, %v2552, %v2539
  %v2589 = vsel %vm998, %v2576, %v2540
  %v2590 = vsel %vm998, %v2587, %v2541
  %v2591 = vsel %vm2565, -1e+30, %v2542
  %v2592 = vsel %vm1211, %v2591, -inf
  %2593 = vmax.xlane.f32.xlu0 %v2592
  %v2594 = vpop.xlane.xlu0 %2593
  %v2595 = vsel %vm1229, %v2594, -inf
  %v2596 = vrot.slane %v2595, 4
  %v2597 = vmax.f32 %v2595, %v2596
  %v2598 = vrot.slane %v2597, 2
  %v2599 = vmax.f32 %v2597, %v2598
  %v2600 = vrot.slane %v2599, 1
  %v2601 = vmax.f32 %v2599, %v2600
  %vm2602 = vcmp.eq.f32.partialorder %v2591, %v2601
  %v2603 = vsel %vm2602, %v963, 96.0
  %v2604 = vsel %vm1211, %v2603, inf
  %2605 = vmin.xlane.f32.xlu0 %v2604
  %v2606 = vpop.xlane.xlu0 %2605
  %v2607 = vsel %vm1229, %v2606, inf
  %v2608 = vrot.slane %v2607, 4
  %v2609 = vmin.f32 %v2607, %v2608
  %v2610 = vrot.slane %v2609, 2
  %v2611 = vmin.f32 %v2609, %v2610
  %v2612 = vrot.slane %v2611, 1
  %v2613 = vmin.f32 %v2611, %v2612
  %vm2614 = vcmp.eq.f32.partialorder %v963, %v2613
  %v2615 = vsel %vm2614, %v757, 0.0
  %v2616 = vsel %vm1211, %v2615, 0.0
  %2617 = vadd.xlane.f32.xlu0 %v2616
  %v2618 = vpop.xlane.xlu0 %2617
  %v2619 = vsel %vm1229, %v2618, 0.0
  %v2620 = vrot.slane %v2619, 4
  %v2621 = vadd.f32 %v2619, %v2620
  %v2622 = vrot.slane %v2621, 2
  %v2623 = vadd.f32 %v2621, %v2622
  %v2624 = vrot.slane %v2623, 1
  %v2625 = vadd.f32 %v2623, %v2624
  %v2626 = vsel %vm2614, %v961, 0.0
  %v2627 = vsel %vm1211, %v2626, 0.0
  %2628 = vadd.xlane.f32.xlu0 %v2627
  %v2629 = vpop.xlane.xlu0 %2628
  %v2630 = vsel %vm1229, %v2629, 0.0
  %v2631 = vrot.slane %v2630, 4
  %v2632 = vadd.f32 %v2630, %v2631
  %v2633 = vrot.slane %v2632, 2
  %v2634 = vadd.f32 %v2632, %v2633
  %v2635 = vrot.slane %v2634, 1
  %v2636 = vadd.f32 %v2634, %v2635
  %v2637 = vsel %vm1018, %v2601, %v2588
  %v2638 = vsel %vm1018, %v2625, %v2589
  %v2639 = vsel %vm1018, %v2636, %v2590
  %vm2640 = vcmp.eq.f32.partialorder %v2639, %v757
  %v2641 = vsel %vm2640, 1, 0
  %v2642 = vcvt.s32.f32 %v2641
  %vm2643 = vcmp.eq.s32.totalorder %v27, 4
  %v2644 = vsel %vm2643, %v2216, %v2247
  %v2646 = vsel %vm1378, %v2642, 0
  %v2649 = vsel %vm1229, %v2644, 0
  %2651 = vmatpush.msra.mxu0 0.0
  %2652 = vmatpush.msra.mxu0 0.0
  %2653 = vmatpush.msra.mxu0 0.0
  %2654 = vmatpush.msra.mxu0 0.0
  %2655 = vmatpush.msra.mxu0 0.0
  %2656 = vmatpush.msra.mxu0 0.0
  %2657 = vmatpush.msra.mxu0 0.0
  %2658 = vmatpush.msra.mxu0 0.0
  %2659 = vmatpush.msra.mxu0 0.0
  %2660 = vmatpush.msra.mxu0 0.0
  %2661 = vmatpush.msra.mxu0 0.0
  %2662 = vmatpush.msra.mxu0 0.0
  %2663 = vmatpush.msra.mxu0 0.0
  %2664 = vmatpush.msra.mxu0 0.0
  %2665 = vmatpush.msra.mxu0 0.0
  %2666 = vmatpush.msra.mxu0 %v2649
  %2667 = vmatmul.f32.gmra.mxu0 %v2646
  %v2668 = vpop.f32.mrf.mxu0
  %v2669 = vadd.f32 0.0, %v2668
  %2670 = vdwg.mxu0
  %v2671 = vsel %vm1229, %v2370, 0
  %2673 = vmatpush.msra.mxu0 0.0
  %2674 = vmatpush.msra.mxu0 0.0
  %2675 = vmatpush.msra.mxu0 0.0
  %2676 = vmatpush.msra.mxu0 0.0
  %2677 = vmatpush.msra.mxu0 0.0
  %2678 = vmatpush.msra.mxu0 0.0
  %2679 = vmatpush.msra.mxu0 0.0
  %2680 = vmatpush.msra.mxu0 0.0
  %2681 = vmatpush.msra.mxu0 0.0
  %2682 = vmatpush.msra.mxu0 0.0
  %2683 = vmatpush.msra.mxu0 0.0
  %2684 = vmatpush.msra.mxu0 0.0
  %2685 = vmatpush.msra.mxu0 0.0
  %2686 = vmatpush.msra.mxu0 0.0
  %2687 = vmatpush.msra.mxu0 0.0
  %2688 = vmatpush.msra.mxu0 %v2671
  %2689 = vmatmul.f32.gmra.mxu0 %v2646
  %v2690 = vpop.f32.mrf.mxu0
  %v2691 = vadd.f32 0.0, %v2690
  %2692 = vdwg.mxu0
  %2694 = vrot.lane.b32.xlu0 %v2361, 96
  %v2695 = vpop.permute.xlu0 %2694
  %v2696 = vsel %vm1229, %v2695, 0
  %2698 = vmatpush.msra.mxu0 0.0
  %2699 = vmatpush.msra.mxu0 0.0
  %2700 = vmatpush.msra.mxu0 0.0
  %2701 = vmatpush.msra.mxu0 0.0
  %2702 = vmatpush.msra.mxu0 0.0
  %2703 = vmatpush.msra.mxu0 0.0
  %2704 = vmatpush.msra.mxu0 0.0
  %2705 = vmatpush.msra.mxu0 0.0
  %2706 = vmatpush.msra.mxu0 0.0
  %2707 = vmatpush.msra.mxu0 0.0
  %2708 = vmatpush.msra.mxu0 0.0
  %2709 = vmatpush.msra.mxu0 0.0
  %2710 = vmatpush.msra.mxu0 0.0
  %2711 = vmatpush.msra.mxu0 0.0
  %2712 = vmatpush.msra.mxu0 0.0
  %2713 = vmatpush.msra.mxu0 %v2696
  %2714 = vmatmul.f32.gmra.mxu0 %v2646
  %v2715 = vpop.f32.mrf.mxu0
  %v2716 = vadd.f32 0.0, %v2715
  %2717 = vdwg.mxu0
  %vm2718 = vcmp.eq.f32.partialorder %v2638, %v757
  %v2719 = vsel %vm2718, 1, 0
  %v2720 = vcvt.s32.f32 %v2719
  %2722 = vrot.lane.b32.xlu0 %v2691, 32
  %v2723 = vpop.permute.xlu0 %2722
  %v2725 = vsel %vm38, %v2720, %v2723
  %v2727 = vsel %vm767, %v2725, 0
  %2729 = vmatpush.msra.mxu0 0.0
  %2730 = vmatpush.msra.mxu0 0.0
  %2731 = vmatpush.msra.mxu0 0.0
  %2732 = vmatpush.msra.mxu0 0.0
  %2733 = vmatpush.msra.mxu0 0.0
  %2734 = vmatpush.msra.mxu0 0.0
  %2735 = vmatpush.msra.mxu0 0.0
  %2736 = vmatpush.msra.mxu0 0.0
  %2737 = vmatpush.msra.mxu0 %v741
  %2738 = vmatpush.msra.mxu0 %v740
  %2739 = vmatpush.msra.mxu0 %v739
  %2740 = vmatpush.msra.mxu0 %v738
  %2741 = vmatpush.msra.mxu0 %v737
  %2742 = vmatpush.msra.mxu0 %v736
  %2743 = vmatpush.msra.mxu0 %v735
  %2744 = vmatpush.msra.mxu0 %v734
  %2745 = vmatmul.f32.gmra.mxu0 %v2727
  %v2746 = vpop.f32.mrf.mxu0
  %v2747 = vadd.f32 0.0, %v2746
  %2748 = vdwg.mxu0
  %v2749 = vxor.u32 %v2747, 2147483648
  %v2750 = vmul.f32 %v2749, 1.442695
  %v2751 = vpow.pop %v2750
  %v2752 = vadd.f32 %v2751, 1.0
  %v2753 = vrcp.pop %v2752
  %v2754 = vmul.f32 %v2752, %v2753
  %v2755 = vsub.f32 1.0, %v2754
  %v2756 = vmul.f32 %v2753, %v2755
  %v2757 = vadd.f32 %v2753, %v2756
  %vm2758 = vweird.f32 %v2752
  %vm2759 = vweird.f32 %v2753
  %vm2760 = vmor %vm2758, %vm2759
  %v2761 = vsel %vm2760, %v2753, %v2757
  %v2762 = vand.u32 2147483647, %v2752
  %vm2763 = vcmp.eq.f32.partialorder %v2762, 8.507059e+37
  %v2764 = vand.u32 %v2752, 2147483648
  %v2765 = vor.u32 1.1754944e-38, %v2764
  %v2766 = vsel %vm2763, %v2765, %v2761
  %v2767 = vmul.f32 1.0, %v2766
  %v2768 = vtanh.pop %v2747
  %2770 = vrot.lane.b32.xlu0 %v2716, 32
  %v2771 = vpop.permute.xlu0 %2770
  %v2773 = vmul.f32 %v2767, %v2771
  %2775 = vrot.lane.b32.xlu0 %v2768, 64
  %v2776 = vpop.permute.xlu0 %2775
  %v2778 = vmul.f32 %v2767, %v2776
  %2780 = vrot.lane.b32.xlu0 %v2778, 32
  %v2781 = vpop.permute.xlu0 %2780
  %v2783 = vadd.f32 %v2773, %v2781
  %v2784 = vtanh.pop %v2783
  %2786 = vrot.lane.b32.xlu0 %v2784, 64
  %v2787 = vpop.permute.xlu0 %2786
  %v2789 = vmul.f32 %v2767, %v2787
  %2791 = vrot.lane.b32.xlu0 %v2789, 32
  %v2792 = vpop.permute.xlu0 %2791
  %v2793 = vsel %vm38, %v2792, 0
  %2795 = vmatpush.xpose.msra.mxu0 0.0
  %2796 = vmatpush.xpose.msra.mxu0 0.0
  %2797 = vmatpush.xpose.msra.mxu0 0.0
  %2798 = vmatpush.xpose.msra.mxu0 0.0
  %2799 = vmatpush.xpose.msra.mxu0 0.0
  %2800 = vmatpush.xpose.msra.mxu0 0.0
  %2801 = vmatpush.xpose.msra.mxu0 0.0
  %2802 = vmatpush.xpose.msra.mxu0 0.0
  %2803 = vmatpush.xpose.msra.mxu0 0.0
  %2804 = vmatpush.xpose.msra.mxu0 0.0
  %2805 = vmatpush.xpose.msra.mxu0 0.0
  %2806 = vmatpush.xpose.msra.mxu0 0.0
  %2807 = vmatpush.xpose.msra.mxu0 0.0
  %2808 = vmatpush.xpose.msra.mxu0 0.0
  %2809 = vmatpush.xpose.msra.mxu0 0.0
  %2810 = vmatpush.xpose.msra.mxu0 %v837
  %2811 = vmatmul.f32.gmra.mxu0 %v2793
  %v2812 = vpop.f32.mrf.mxu0
  %v2813 = vadd.f32 0.0, %v2812
  %2814 = vdwg.mxu0
  %v2815 = vsel %vm1122, %v2813, -inf
  %2816 = vmax.xlane.f32.xlu0 %v2815
  %v2817 = vpop.xlane.xlu0 %2816
  %v2818 = vsub.f32 %v2813, %v2817
  %v2819 = vmul.f32 %v2818, 1.442695
  %v2820 = vpow.pop %v2819
  %v2821 = vsel %vm1122, %v2820, 0.0
  %2822 = vadd.xlane.f32.xlu0 %v2821
  %v2823 = vpop.xlane.xlu0 %2822
  %v2824 = vrcp.pop %v2823
  %v2825 = vmul.f32 %v2820, %v2824
  %v2827 = vsel %vm871, %v2825, 0
  %2829 = vmatpush.msra.mxu0 0.0
  %2830 = vmatpush.msra.mxu0 0.0
  %2831 = vmatpush.msra.mxu0 0.0
  %2832 = vmatpush.msra.mxu0 0.0
  %2833 = vmatpush.msra.mxu0 0.0
  %2834 = vmatpush.msra.mxu0 0.0
  %2835 = vmatpush.msra.mxu0 0.0
  %2836 = vmatpush.msra.mxu0 0.0
  %2837 = vmatpush.msra.mxu0 0.0
  %2838 = vmatpush.msra.mxu0 0.0
  %2839 = vmatpush.msra.mxu0 0.0
  %2840 = vmatpush.msra.mxu0 0.0
  %2841 = vmatpush.msra.mxu0 0.0
  %2842 = vmatpush.msra.mxu0 0.0
  %2843 = vmatpush.msra.mxu0 0.0
  %2844 = vmatpush.msra.mxu0 %v733
  %2845 = vmatmul.f32.gmra.mxu0 %v2827
  %v2846 = vpop.f32.mrf.mxu0
  %v2847 = vadd.f32 0.0, %v2846
  %2848 = vdwg.mxu0
  %2851 = vrot.lane.b32.xlu0 %v2847, 32
  %v2852 = vpop.permute.xlu0 %2851
  %v2854 = vsel %vm38, %v2792, %v2852
  %v2856 = vsel %vm767, %v2854, 0
  %2858 = vmatpush.msra.mxu0 0.0
  %2859 = vmatpush.msra.mxu0 0.0
  %2860 = vmatpush.msra.mxu0 0.0
  %2861 = vmatpush.msra.mxu0 0.0
  %2862 = vmatpush.msra.mxu0 0.0
  %2863 = vmatpush.msra.mxu0 0.0
  %2864 = vmatpush.msra.mxu0 0.0
  %2865 = vmatpush.msra.mxu0 0.0
  %2866 = vmatpush.msra.mxu0 %v749
  %2867 = vmatpush.msra.mxu0 %v748
  %2868 = vmatpush.msra.mxu0 %v747
  %2869 = vmatpush.msra.mxu0 %v746
  %2870 = vmatpush.msra.mxu0 %v745
  %2871 = vmatpush.msra.mxu0 %v744
  %2872 = vmatpush.msra.mxu0 %v743
  %2873 = vmatpush.msra.mxu0 %v742
  %2874 = vmatmul.f32.gmra.mxu0 %v2856
  %v2875 = vpop.f32.mrf.mxu0
  %v2876 = vadd.f32 0.0, %v2875
  %2877 = vdwg.mxu0
  %v2878 = vtanh.pop %v2876
  %v2880 = vsel %vm38, %v2878, 0
  %2882 = vmatpush.msra.mxu0 0.0
  %2883 = vmatpush.msra.mxu0 0.0
  %2884 = vmatpush.msra.mxu0 0.0
  %2885 = vmatpush.msra.mxu0 0.0
  %2886 = vmatpush.msra.mxu0 0.0
  %2887 = vmatpush.msra.mxu0 0.0
  %2888 = vmatpush.msra.mxu0 0.0
  %2889 = vmatpush.msra.mxu0 0.0
  %2890 = vmatpush.msra.mxu0 0.0
  %2891 = vmatpush.msra.mxu0 0.0
  %2892 = vmatpush.msra.mxu0 0.0
  %2893 = vmatpush.msra.mxu0 0.0
  %2894 = vmatpush.msra.mxu0 %v753
  %2895 = vmatpush.msra.mxu0 %v752
  %2896 = vmatpush.msra.mxu0 %v751
  %2897 = vmatpush.msra.mxu0 %v750
  %2898 = vmatmul.f32.gmra.mxu0 %v2880
  %v2899 = vpop.f32.mrf.mxu0
  %v2900 = vadd.f32 %v1187, %v2899
  %2901 = vdwg.mxu0
  %v2902 = vsel %vm1211, %v2900, -inf
  %2903 = vmax.xlane.f32.xlu0 %v2902
  %v2904 = vpop.xlane.xlu0 %2903
  %v2905 = vsub.f32 %v2900, %v2904
  %v2906 = vmul.f32 %v2905, 1.442695
  %v2907 = vpow.pop %v2906
  %v2908 = vsel %vm1211, %v2907, 0.0
  %2909 = vadd.xlane.f32.xlu0 %v2908
  %v2910 = vpop.xlane.xlu0 %2909
  %v2911 = vlog2.pop %v2910
  %v2912 = vmul.f32 %v2911, 0.6931472
  %v2913 = vadd.f32 %v2912, %v2904
  %v2914 = vsub.f32 %v2900, %v2913
  %v2915 = vadd.f32 %v2914, %v2637
  %v2916 = vsel %vm1211, %v2915, -inf
  %2917 = vmax.xlane.f32.xlu0 %v2916
  %v2918 = vpop.xlane.xlu0 %2917
  %v2919 = vsel %vm1229, %v2918, -inf
  %v2920 = vrot.slane %v2919, 4
  %v2921 = vmax.f32 %v2919, %v2920
  %v2922 = vrot.slane %v2921, 2
  %v2923 = vmax.f32 %v2921, %v2922
  %v2924 = vrot.slane %v2923, 1
  %v2925 = vmax.f32 %v2923, %v2924
  %vm2926 = vcmp.eq.f32.partialorder %v2915, %v2925
  %v2927 = vsel %vm2926, %v963, 96.0
  %v2928 = vsel %vm1211, %v2927, inf
  %2929 = vmin.xlane.f32.xlu0 %v2928
  %v2930 = vpop.xlane.xlu0 %2929
  %v2931 = vsel %vm1229, %v2930, inf
  %v2932 = vrot.slane %v2931, 4
  %v2933 = vmin.f32 %v2931, %v2932
  %v2934 = vrot.slane %v2933, 2
  %v2935 = vmin.f32 %v2933, %v2934
  %v2936 = vrot.slane %v2935, 1
  %v2937 = vmin.f32 %v2935, %v2936
  %vm2938 = vcmp.eq.f32.partialorder %v963, %v2937
  %v2939 = vsel %vm2938, %v961, 0.0
  %v2940 = vsel %vm1211, %v2939, 0.0
  %2941 = vadd.xlane.f32.xlu0 %v2940
  %v2942 = vpop.xlane.xlu0 %2941
  %v2943 = vsel %vm1229, %v2942, 0.0
  %v2944 = vrot.slane %v2943, 4
  %v2945 = vadd.f32 %v2943, %v2944
  %v2946 = vrot.slane %v2945, 2
  %v2947 = vadd.f32 %v2945, %v2946
  %v2948 = vrot.slane %v2947, 1
  %v2949 = vadd.f32 %v2947, %v2948
  %v2950 = vsel %vm978, %v2925, 0.0
  %v2951 = vsel %vm978, %v2949, 0.0
  %v2952 = vsel %vm2938, -1e+30, %v2915
  %v2953 = vsel %vm1211, %v2952, -inf
  %2954 = vmax.xlane.f32.xlu0 %v2953
  %v2955 = vpop.xlane.xlu0 %2954
  %v2956 = vsel %vm1229, %v2955, -inf
  %v2957 = vrot.slane %v2956, 4
  %v2958 = vmax.f32 %v2956, %v2957
  %v2959 = vrot.slane %v2958, 2
  %v2960 = vmax.f32 %v2958, %v2959
  %v2961 = vrot.slane %v2960, 1
  %v2962 = vmax.f32 %v2960, %v2961
  %vm2963 = vcmp.eq.f32.partialorder %v2952, %v2962
  %v2964 = vsel %vm2963, %v963, 96.0
  %v2965 = vsel %vm1211, %v2964, inf
  %2966 = vmin.xlane.f32.xlu0 %v2965
  %v2967 = vpop.xlane.xlu0 %2966
  %v2968 = vsel %vm1229, %v2967, inf
  %v2969 = vrot.slane %v2968, 4
  %v2970 = vmin.f32 %v2968, %v2969
  %v2971 = vrot.slane %v2970, 2
  %v2972 = vmin.f32 %v2970, %v2971
  %v2973 = vrot.slane %v2972, 1
  %v2974 = vmin.f32 %v2972, %v2973
  %vm2975 = vcmp.eq.f32.partialorder %v963, %v2974
  %v2976 = vsel %vm2975, %v961, 0.0
  %v2977 = vsel %vm1211, %v2976, 0.0
  %2978 = vadd.xlane.f32.xlu0 %v2977
  %v2979 = vpop.xlane.xlu0 %2978
  %v2980 = vsel %vm1229, %v2979, 0.0
  %v2981 = vrot.slane %v2980, 4
  %v2982 = vadd.f32 %v2980, %v2981
  %v2983 = vrot.slane %v2982, 2
  %v2984 = vadd.f32 %v2982, %v2983
  %v2985 = vrot.slane %v2984, 1
  %v2986 = vadd.f32 %v2984, %v2985
  %v2987 = vsel %vm998, %v2962, %v2950
  %v2988 = vsel %vm998, %v2986, %v2951
  %v2989 = vsel %vm2975, -1e+30, %v2952
  %v2990 = vsel %vm1211, %v2989, -inf
  %2991 = vmax.xlane.f32.xlu0 %v2990
  %v2992 = vpop.xlane.xlu0 %2991
  %v2993 = vsel %vm1229, %v2992, -inf
  %v2994 = vrot.slane %v2993, 4
  %v2995 = vmax.f32 %v2993, %v2994
  %v2996 = vrot.slane %v2995, 2
  %v2997 = vmax.f32 %v2995, %v2996
  %v2998 = vrot.slane %v2997, 1
  %v2999 = vmax.f32 %v2997, %v2998
  %vm3000 = vcmp.eq.f32.partialorder %v2989, %v2999
  %v3001 = vsel %vm3000, %v963, 96.0
  %v3002 = vsel %vm1211, %v3001, inf
  %3003 = vmin.xlane.f32.xlu0 %v3002
  %v3004 = vpop.xlane.xlu0 %3003
  %v3005 = vsel %vm1229, %v3004, inf
  %v3006 = vrot.slane %v3005, 4
  %v3007 = vmin.f32 %v3005, %v3006
  %v3008 = vrot.slane %v3007, 2
  %v3009 = vmin.f32 %v3007, %v3008
  %v3010 = vrot.slane %v3009, 1
  %v3011 = vmin.f32 %v3009, %v3010
  %vm3012 = vcmp.eq.f32.partialorder %v963, %v3011
  %v3013 = vsel %vm3012, %v961, 0.0
  %v3014 = vsel %vm1211, %v3013, 0.0
  %3015 = vadd.xlane.f32.xlu0 %v3014
  %v3016 = vpop.xlane.xlu0 %3015
  %v3017 = vsel %vm1229, %v3016, 0.0
  %v3018 = vrot.slane %v3017, 4
  %v3019 = vadd.f32 %v3017, %v3018
  %v3020 = vrot.slane %v3019, 2
  %v3021 = vadd.f32 %v3019, %v3020
  %v3022 = vrot.slane %v3021, 1
  %v3023 = vadd.f32 %v3021, %v3022
  %v3024 = vsel %vm1018, %v2999, %v2987
  %v3025 = vsel %vm1018, %v3023, %v2988
  %vm3026 = vcmp.eq.f32.partialorder %v3025, %v757
  %v3027 = vsel %vm3026, 1, 0
  %v3028 = vcvt.s32.f32 %v3027
  %vm3029 = vcmp.eq.s32.totalorder %v27, 5
  %v3030 = vsel %vm3029, %v2638, %v2669
  %v3032 = vsel %vm1378, %v3028, 0
  %v3035 = vsel %vm1229, %v3030, 0
  %3037 = vmatpush.msra.mxu0 0.0
  %3038 = vmatpush.msra.mxu0 0.0
  %3039 = vmatpush.msra.mxu0 0.0
  %3040 = vmatpush.msra.mxu0 0.0
  %3041 = vmatpush.msra.mxu0 0.0
  %3042 = vmatpush.msra.mxu0 0.0
  %3043 = vmatpush.msra.mxu0 0.0
  %3044 = vmatpush.msra.mxu0 0.0
  %3045 = vmatpush.msra.mxu0 0.0
  %3046 = vmatpush.msra.mxu0 0.0
  %3047 = vmatpush.msra.mxu0 0.0
  %3048 = vmatpush.msra.mxu0 0.0
  %3049 = vmatpush.msra.mxu0 0.0
  %3050 = vmatpush.msra.mxu0 0.0
  %3051 = vmatpush.msra.mxu0 0.0
  %3052 = vmatpush.msra.mxu0 %v3035
  %3053 = vmatmul.f32.gmra.mxu0 %v3032
  %v3054 = vpop.f32.mrf.mxu0
  %v3055 = vadd.f32 0.0, %v3054
  %3056 = vdwg.mxu0
  %v3057 = vsel %vm1229, %v3024, -inf
  %v3058 = vrot.slane %v3057, 4
  %v3059 = vmax.f32 %v3057, %v3058
  %v3060 = vrot.slane %v3059, 2
  %v3061 = vmax.f32 %v3059, %v3060
  %v3062 = vrot.slane %v3061, 1
  %v3063 = vmax.f32 %v3061, %v3062
  %vm3064 = vcmp.eq.f32.partialorder %v3024, %v3063
  %v3065 = vsel %vm3064, %v961, 3.0
  %v3066 = vsel %vm1229, %v3065, inf
  %v3067 = vrot.slane %v3066, 4
  %v3068 = vmin.f32 %v3066, %v3067
  %v3069 = vrot.slane %v3068, 2
  %v3070 = vmin.f32 %v3068, %v3069
  %v3071 = vrot.slane %v3070, 1
  %v3072 = vmin.f32 %v3070, %v3071
  %vm3073 = vcmp.eq.f32.partialorder %v961, %v3072
  %v3074 = vsel %vm3073, 1, 0
  %vm3075 = vcmp.eq.s32.totalorder %v3074, 1
  %v3076 = vsel %vm3075, %v3055, 0.0
  %v3077 = vsel %vm1229, %v3076, 0.0
  %v3078 = vrot.slane %v3077, 4
  %v3079 = vadd.f32 %v3077, %v3078
  %v3080 = vrot.slane %v3079, 2
  %v3081 = vadd.f32 %v3079, %v3080
  %v3082 = vrot.slane %v3081, 1
  %v3083 = vadd.f32 %v3081, %v3082
  %v3084 = vcvt.f32.s32.to.zero.pseudo %v3083
  %3085 = vst [vmem:[%s5] sm:$0x1] %v3084
  // Predicated region
  $region22: #{beam_search_decode.1} parent=0 // pred_check
    _
  $region23: #{beam_search_decode.1} parent=0 // pred_check_branch
    %3087 = sbr.rel (0) target = $region25
  $region24: #{beam_search_decode.1} parent=0 // pred_region
    _
  $region25: #{beam_search_decode.1} parent=0 // pred_fallthru
    _
  // Predicated region
  $region26: #{beam_search_decode.1} parent=0 // pred_check
    _
  $region27: #{beam_search_decode.1} parent=0 // pred_check_branch
    %3089 = sbr.rel (0) target = $region29
  $region28: #{beam_search_decode.1} parent=0 // pred_region
    _
  $region29: #{beam_search_decode.1} parent=0 // pred_fallthru
    _

</llo_original>
